<compile_context>
chip_gen: v7x
topology: tpu7x:2x2x1
jax: 0.10.0
libtpu: 0.0.40
codegen_flags: <defaults>
</compile_context>

<pallas_src>
import functools
from typing import NamedTuple

import jax
import jax.numpy as jnp
from jax import lax
from jax.experimental import pallas as pl
from jax.experimental.pallas import tpu as pltpu

LANES = 128                      # lane width: all feature dims padded to this
F_IN, F_HID, F_OUT = 16, 32, 2   # logical GCN feature dims


def _round_up(x, m):
    return ((x + m - 1) // m) * m


def _pick_tile(n, candidates):
    """Largest candidate tile that divides n (n is a multiple of 128)."""
    for c in candidates:
        if c <= n and n % c == 0:
            return c
    return 128


class GCNPlan(NamedTuple):
    n: int             # real node count
    n_pad: int         # padded node count (multiple of every tile below)
    fused: bool        # whole forward in one pallas_call, A resident in VMEM
    tm: int            # aggregation row tile
    tk: int            # aggregation K (A columns / Z rows) tile
    tm_t: int          # feature-transform row tile
    z_resident: bool   # keep Z fully VMEM-resident in the aggregation kernel
    vmem_limit: int    # vmem_limit_bytes for CompilerParams


_FUSED_VMEM_BUDGET = 40 * 1024 * 1024    # safe on v7x (64 MiB physical VMEM)
_Z_RESIDENT_BUDGET = 16 * 1024 * 1024


def make_gcn_plan(num_nodes, *, force_streamed=False):
    n128 = _round_up(num_nodes, LANES)

    # ---- fused path eligibility: A_hat resident across BOTH layers ----------
    tm_f = _pick_tile(n128, (512, 256, 128))
    if n128 // tm_f < 2 and tm_f > 128:
        tm_f = 128
    fused_bytes = (2 * n128 * n128 * 2        # A_hat bf16, double-buffered
                   + 2 * n128 * LANES * 2     # X bf16, double-buffered
                   + 2 * n128 * LANES * 2     # H / Z scratches (bf16)
                   + 2 * tm_f * LANES * 4     # f32 output block, double-buffered
                   + 4 * LANES * LANES * 4)   # weights + biases
    if not force_streamed and fused_bytes <= _FUSED_VMEM_BUDGET:
        limit = int(min(max(2 * fused_bytes, 32 * 1024 * 1024), 64 * 1024 * 1024))
        return GCNPlan(num_nodes, n128, True, tm_f, n128, n128, True, limit)

    # ---- streamed path -------------------------------------------------------
    # Large K tiles amortize the ~0.35us/step overhead on the HBM-bound A
    # stream; capped by graph size so small graphs are not over-padded.
    tk = 128
    for cand in (1024, 512, 256):
        if cand <= n128:
            tk = cand
            break
    n_pad = _round_up(num_nodes, tk)          # tm divides tk, so one pad size
    tm = min(256, tk)
    if n_pad // tm < 2 and tm > 128:          # keep >=2 row tiles (v7x dual TC)
        tm = 128
    tm_t = _pick_tile(n_pad, (1024, 512, 256, 128))

    z_resident = (2 * n_pad * LANES * 2) <= _Z_RESIDENT_BUDGET
    z_bytes = (2 * n_pad * LANES * 2) if z_resident else (2 * tk * LANES * 2)
    streamed_bytes = (2 * tm * tk * 2          # A tile bf16, double-buffered
                      + z_bytes                # Z (resident or K-tiled)
                      + 2 * tm * LANES * 4     # output block, double-buffered
                      + tm * LANES * 4         # f32 accumulator
                      + 2 * LANES * 4)         # bias
    limit = int(min(max(2 * streamed_bytes, 32 * 1024 * 1024), 64 * 1024 * 1024))
    return GCNPlan(num_nodes, n_pad, False, tm, tk, tm_t, z_resident, limit)


# ---------------------------------------------------------------------------
# Kernel 1 (streamed path): feature transform  Z = X @ W  (row-tiled, bf16 in,
# f32 MXU accumulation, bf16 out).
# ---------------------------------------------------------------------------
def _transform_kernel(x_ref, w_ref, z_ref):
    z_ref[...] = jnp.dot(
        x_ref[...], w_ref[...], preferred_element_type=jnp.float32
    ).astype(z_ref.dtype)


def feature_transform(x, w, *, tm, vmem_limit):
    n, f_in = x.shape
    f_out = w.shape[1]
    return pl.pallas_call(
        _transform_kernel,
        out_shape=jax.ShapeDtypeStruct((n, f_out), jnp.bfloat16),
        grid_spec=pltpu.PrefetchScalarGridSpec(
            num_scalar_prefetch=0,
            grid=(n // tm,),
            in_specs=[
                pl.BlockSpec((tm, f_in), lambda i: (i, 0)),
                pl.BlockSpec((f_in, f_out), lambda i: (0, 0)),
            ],
            out_specs=pl.BlockSpec((tm, f_out), lambda i: (i, 0)),
        ),
        compiler_params=pltpu.CompilerParams(
            dimension_semantics=("parallel",),
            vmem_limit_bytes=vmem_limit,
        ),
    )(x, w)


# ---------------------------------------------------------------------------
# Kernel 2 (streamed path): aggregation  OUT = A_hat @ Z + b  (+ optional ReLU)
# grid = (row tiles, K tiles); only A_hat is streamed from HBM, Z is resident.
# ---------------------------------------------------------------------------
def _aggregate_kernel(a_ref, z_ref, b_ref, o_ref, acc_ref, *,
                      tk, z_resident, apply_relu):
    k = pl.program_id(1)

    @pl.when(k == 0)
    def _():
        acc_ref[...] = jnp.zeros_like(acc_ref)

    if z_resident:
        z_tile = z_ref[pl.ds(pl.multiple_of(k * tk, tk), tk), :]
    else:
        z_tile = z_ref[...]
    acc_ref[...] += jnp.dot(a_ref[...], z_tile,
                            preferred_element_type=jnp.float32)

    @pl.when(k == pl.num_programs(1) - 1)
    def _():
        out = acc_ref[...] + b_ref[...]
        if apply_relu:
            out = jnp.maximum(out, 0.0)
        o_ref[...] = out.astype(o_ref.dtype)


def aggregate(a_pad, z, b, *, plan, apply_relu, out_dtype):
    n_pad, tm, tk = plan.n_pad, plan.tm, plan.tk
    f = z.shape[1]
    if plan.z_resident:
        # Constant block index -> Z is DMA'd into VMEM exactly once, never
        # re-streamed per row tile.
        z_spec = pl.BlockSpec((n_pad, f), lambda i, k: (0, 0))
    else:
        z_spec = pl.BlockSpec((tk, f), lambda i, k: (k, 0))
    kernel = functools.partial(_aggregate_kernel, tk=tk,
                               z_resident=plan.z_resident,
                               apply_relu=apply_relu)
    # TODO(synk): after tile-size tuning, try pipeline_mode=pl.Buffered(3) on
    # the A_hat BlockSpec to smooth DMA jitter (measure before keeping).
    return pl.pallas_call(
        kernel,
        out_shape=jax.ShapeDtypeStruct((n_pad, f), out_dtype),
        grid_spec=pltpu.PrefetchScalarGridSpec(
            num_scalar_prefetch=0,
            grid=(n_pad // tm, n_pad // tk),
            in_specs=[
                pl.BlockSpec((tm, tk), lambda i, k: (i, k)),   # A_hat (HBM-bound)
                z_spec,                                        # Z (resident)
                pl.BlockSpec((1, f), lambda i, k: (0, 0)),     # bias (resident)
            ],
            out_specs=pl.BlockSpec((tm, f), lambda i, k: (i, 0)),
            scratch_shapes=[pltpu.VMEM((tm, f), jnp.float32)],
        ),
        compiler_params=pltpu.CompilerParams(
            dimension_semantics=("parallel", "arbitrary"),
            vmem_limit_bytes=plan.vmem_limit,
        ),
    )(a_pad, z, b)


# ---------------------------------------------------------------------------
# Fused kernel (small graphs): both GCNConv layers in one pallas_call with
# A_hat resident in VMEM -> A leaves HBM exactly once instead of twice.
# Grid iterates (sequentially) over output row tiles; H and Z live in
# persistent VMEM scratch computed at grid step 0.
# ---------------------------------------------------------------------------
def _fused_kernel(a_ref, x_ref, w1_ref, b1_ref, w2_ref, b2_ref,
                  o_ref, h_ref, z_ref, *, tm, n_tiles):
    i = pl.program_id(0)

    @pl.when(i == 0)
    def _():
        # Layer-1 feature transform: Z <- X @ W1   (tile-by-tile, bf16 store).
        def l1(t, c):
            r = pl.multiple_of(t * tm, tm)
            z1 = jnp.dot(x_ref[pl.ds(r, tm), :], w1_ref[...],
                         preferred_element_type=jnp.float32)
            z_ref[pl.ds(r, tm), :] = z1.astype(z_ref.dtype)
            return c
        lax.fori_loop(0, n_tiles, l1, 0, unroll=True)

        # Layer-1 aggregation + bias + ReLU: H <- relu(A @ Z + b1).
        def l2(t, c):
            r = pl.multiple_of(t * tm, tm)
            h = jnp.dot(a_ref[pl.ds(r, tm), :], z_ref[...],
                        preferred_element_type=jnp.float32)
            h = jnp.maximum(h + b1_ref[...], 0.0)
            h_ref[pl.ds(r, tm), :] = h.astype(h_ref.dtype)
            return c
        lax.fori_loop(0, n_tiles, l2, 0, unroll=True)

        # Layer-2 feature transform: Z <- H @ W2.
        def l3(t, c):
            r = pl.multiple_of(t * tm, tm)
            z2 = jnp.dot(h_ref[pl.ds(r, tm), :], w2_ref[...],
                         preferred_element_type=jnp.float32)
            z_ref[pl.ds(r, tm), :] = z2.astype(z_ref.dtype)
            return c
        lax.fori_loop(0, n_tiles, l3, 0, unroll=True)

    # Every grid step: layer-2 aggregation for this row tile (A stays in VMEM).
    r = pl.multiple_of(i * tm, tm)
    out = jnp.dot(a_ref[pl.ds(r, tm), :], z_ref[...],
                  preferred_element_type=jnp.float32) + b2_ref[...]
    o_ref[...] = out.astype(o_ref.dtype)


def gcn_fused(a_pad, x_pad, w1p, b1p, w2p, b2p, *, plan):
    n_pad, tm = plan.n_pad, plan.tm
    n_tiles = n_pad // tm
    kernel = functools.partial(_fused_kernel, tm=tm, n_tiles=n_tiles)
    return pl.pallas_call(
        kernel,
        out_shape=jax.ShapeDtypeStruct((n_pad, LANES), jnp.float32),
        grid_spec=pltpu.PrefetchScalarGridSpec(
            num_scalar_prefetch=0,
            grid=(n_tiles,),
            in_specs=[
                pl.BlockSpec((n_pad, n_pad), lambda i: (0, 0)),   # A resident
                pl.BlockSpec((n_pad, LANES), lambda i: (0, 0)),   # X resident
                pl.BlockSpec((LANES, LANES), lambda i: (0, 0)),   # W1
                pl.BlockSpec((1, LANES), lambda i: (0, 0)),       # b1
                pl.BlockSpec((LANES, LANES), lambda i: (0, 0)),   # W2
                pl.BlockSpec((1, LANES), lambda i: (0, 0)),       # b2
            ],
            out_specs=pl.BlockSpec((tm, LANES), lambda i: (i, 0)),
            scratch_shapes=[
                pltpu.VMEM((n_pad, LANES), jnp.bfloat16),   # H
                pltpu.VMEM((n_pad, LANES), jnp.bfloat16),   # Z (layer 1 then 2)
            ],
        ),
        compiler_params=pltpu.CompilerParams(
            # Must be sequential: the H/Z scratch filled at grid step 0 is
            # consumed by every later row tile (megacore sharding would break
            # that). Large graphs use the streamed path with a "parallel" row
            # axis instead.
            dimension_semantics=("arbitrary",),
            vmem_limit_bytes=plan.vmem_limit,
        ),
    )(a_pad, x_pad, w1p, b1p, w2p, b2p)


# ---------------------------------------------------------------------------
# Per-graph / per-model preparation (hoisted out of the forward path).
# ---------------------------------------------------------------------------
def build_normalized_adj(edge_index, num_nodes):
    """Dense A_hat = D^-1/2 (A + I) D^-1/2 from a [2, E] edge_index."""
    src, dst = edge_index
    a = jnp.zeros((num_nodes, num_nodes), jnp.float32)
    a = a.at[src, dst].set(1.0)
    a = a.at[dst, src].set(1.0)                     # undirected nx graph edges
    a = a + jnp.eye(num_nodes, dtype=jnp.float32)   # self-loops
    deg = jnp.sum(a, axis=1)
    d_inv_sqrt = jnp.where(deg > 0, 1.0 / jnp.sqrt(deg), 0.0)
    return d_inv_sqrt[:, None] * a * d_inv_sqrt[None, :]


def prepare_adjacency(a_hat, plan):
    """Padded bf16 A_hat, built ONCE per graph. Padding columns stay exactly
    zero so padded (bias-only) H rows never contribute to real outputs."""
    n, n_pad = plan.n, plan.n_pad
    a_pad = jnp.zeros((n_pad, n_pad), jnp.bfloat16)
    return a_pad.at[:n, :n].set(a_hat.astype(jnp.bfloat16))


def prepare_params(w1, b1, w2, b2):
    """Zero-pad every feature dim to 128 lanes; bf16 weights, f32 biases."""
    f_in, f_hid = w1.shape
    f_out = w2.shape[1]
    w1p = jnp.zeros((LANES, LANES), jnp.float32).at[:f_in, :f_hid].set(w1)
    b1p = jnp.zeros((1, LANES), jnp.float32).at[:, :f_hid].set(b1.reshape(1, -1))
    w2p = jnp.zeros((LANES, LANES), jnp.float32).at[:f_hid, :f_out].set(w2)
    b2p = jnp.zeros((1, LANES), jnp.float32).at[:, :f_out].set(b2.reshape(1, -1))
    return (w1p.astype(jnp.bfloat16), b1p, w2p.astype(jnp.bfloat16), b2p)


# ---------------------------------------------------------------------------
# Full forward (Pallas hot path).
# ---------------------------------------------------------------------------
def gcn_forward(a_pad, x, params, *, plan):
    """out = A_hat @ relu(A_hat @ (X W1) + b1) @ W2 + b2 (PyG GCN forward)."""
    w1p, b1p, w2p, b2p = params
    n, n_pad = plan.n, plan.n_pad

    x_pad = jnp.zeros((n_pad, LANES), jnp.bfloat16)
    x_pad = x_pad.at[:n, :x.shape[1]].set(x.astype(jnp.bfloat16))

    if plan.fused:
        out = gcn_fused(a_pad, x_pad, w1p, b1p, w2p, b2p, plan=plan)
    else:
        # Layer 1: H = relu(A_hat @ (X W1) + b1)
        z1 = feature_transform(x_pad, w1p, tm=plan.tm_t, vmem_limit=plan.vmem_limit)
        h = aggregate(a_pad, z1, b1p, plan=plan, apply_relu=True,
                      out_dtype=jnp.bfloat16)
        # Layer 2: OUT = A_hat @ (H W2) + b2
        z2 = feature_transform(h, w2p, tm=plan.tm_t, vmem_limit=plan.vmem_limit)
        out = aggregate(a_pad, z2, b2p, plan=plan, apply_relu=False,
                        out_dtype=jnp.float32)

    return out[:n, :F_OUT]


def reference_forward(a_hat, x, w1, b1, w2, b2):
    h = jnp.maximum(a_hat @ (x @ w1) + b1, 0.0)
    return a_hat @ (h @ w2) + b2


if __name__ == "__main__":
    key = jax.random.PRNGKey(0)
    k_x, k_w1, k_b1, k_w2, k_b2 = jax.random.split(key, 5)

    num_nodes = 300

    # Deterministic small graph: ring + a few chords (stand-in for nx graph G).
    edges = [(i, (i + 1) % num_nodes) for i in range(num_nodes)]
    edges += [(0, 150), (75, 225), (30, 270)]
    edge_index = jnp.array(edges, dtype=jnp.int32).T              # [2, E]

    # Node features (analogue of torch.rand((num_nodes, 16))).
    x = jax.random.uniform(k_x, (num_nodes, F_IN), dtype=jnp.float32)

    # Deterministic parameter init (glorot-ish); weights stored [in, out].
    w1 = jax.random.normal(k_w1, (F_IN, F_HID), jnp.float32) / jnp.sqrt(F_IN)
    b1 = jax.random.normal(k_b1, (1, F_HID), jnp.float32) * 0.01
    w2 = jax.random.normal(k_w2, (F_HID, F_OUT), jnp.float32) / jnp.sqrt(F_HID)
    b2 = jax.random.normal(k_b2, (1, F_OUT), jnp.float32) * 0.01

    a_hat = build_normalized_adj(edge_index, num_nodes)
    params = prepare_params(w1, b1, w2, b2)
    ref = reference_forward(a_hat, x, w1, b1, w2, b2)

    # Path 1: fused (A_hat resident in VMEM across both layers) — auto-picked
    # for this small graph.
    plan_fused = make_gcn_plan(num_nodes)
    a_pad_fused = prepare_adjacency(a_hat, plan_fused)
    out_fused = jax.block_until_ready(
        gcn_forward(a_pad_fused, x, params, plan=plan_fused))

    # Path 2: streamed (tiled A_hat, VMEM-resident Z) — forced here for coverage.
    plan_str = make_gcn_plan(num_nodes, force_streamed=True)
    a_pad_str = prepare_adjacency(a_hat, plan_str)
    out_str = jax.block_until_ready(
        gcn_forward(a_pad_str, x, params, plan=plan_str))

    assert out_fused.shape == (num_nodes, F_OUT)
    assert out_str.shape == (num_nodes, F_OUT)
    # bf16 A_hat / bf16 intermediates vs f32 reference -> loose tolerance.
    assert jnp.allclose(out_fused, ref, atol=5e-2, rtol=5e-2), float(
        jnp.max(jnp.abs(out_fused - ref)))
    assert jnp.allclose(out_str, ref, atol=5e-2, rtol=5e-2), float(
        jnp.max(jnp.abs(out_str - ref)))

    print("KERNEL_OK")
</pallas_src>

<mosaic_0001>
module attributes {stable_mosaic.version = 11 : i64} {
  func.func @_fused_kernel(%arg0: i32, %arg1: memref<384x384xbf16, #tpu.memory_space<vmem>>, %arg2: memref<384x128xbf16, #tpu.memory_space<vmem>>, %arg3: memref<128x128xbf16, #tpu.memory_space<vmem>>, %arg4: memref<1x128xf32, #tpu.memory_space<vmem>>, %arg5: memref<128x128xbf16, #tpu.memory_space<vmem>>, %arg6: memref<1x128xf32, #tpu.memory_space<vmem>>, %arg7: memref<128x128xf32, #tpu.memory_space<vmem>>, %arg8: memref<384x128xbf16, #tpu.memory_space<vmem>>, %arg9: memref<384x128xbf16, #tpu.memory_space<vmem>>) attributes {dimension_semantics = [#tpu.dimension_semantics<arbitrary>], iteration_bounds = array<i64: 3>, scalar_prefetch = 0 : i64, scratch_operands = 2 : i64, tpu.core_type = #tpu.core_type<tc>, window_params = [{pipeline_mode = #tpu.pipeline_mode<synchronous>, transform_indices = @transform_0, window_bounds = array<i64: 384, 384>}, {pipeline_mode = #tpu.pipeline_mode<synchronous>, transform_indices = @transform_1, window_bounds = array<i64: 384, 128>}, {pipeline_mode = #tpu.pipeline_mode<synchronous>, transform_indices = @transform_2, window_bounds = array<i64: 128, 128>}, {pipeline_mode = #tpu.pipeline_mode<synchronous>, transform_indices = @transform_3, window_bounds = array<i64: 1, 128>}, {pipeline_mode = #tpu.pipeline_mode<synchronous>, transform_indices = @transform_4, window_bounds = array<i64: 128, 128>}, {pipeline_mode = #tpu.pipeline_mode<synchronous>, transform_indices = @transform_5, window_bounds = array<i64: 1, 128>}, {transform_indices = @transform_6, window_bounds = array<i64: 128, 128>}]} {
    %c0_i32 = arith.constant 0 : i32
    %0 = arith.cmpi eq, %arg0, %c0_i32 : i32
    %1 = arith.extui %0 : i1 to i32
    %c0_i32_0 = arith.constant 0 : i32
    %2 = arith.cmpi ne, %1, %c0_i32_0 : i32
    scf.if %2 {
      %c0_i32_7 = arith.constant 0 : i32
      %c128_i32_8 = arith.constant 128 : i32
      %13 = arith.muli %c0_i32_7, %c128_i32_8 : i32
      %14 = tpu.assume_multiple %13, 128 : i32
      %15 = arith.index_cast %14 : i32 to index
      %c0_9 = arith.constant 0 : index
      %16 = vector.load %arg2[%15, %c0_9] : memref<384x128xbf16, #tpu.memory_space<vmem>>, vector<128x128xbf16>
      %c0_10 = arith.constant 0 : index
      %c0_11 = arith.constant 0 : index
      %17 = vector.load %arg3[%c0_10, %c0_11] : memref<128x128xbf16, #tpu.memory_space<vmem>>, vector<128x128xbf16>
      %cst_12 = arith.constant dense<0.000000e+00> : vector<128x128xf32>
      %18 = tpu.matmul %16, %17, %cst_12 {dimension_numbers = #tpu.dot_dimension_numbers<[1], [0], [0], [1], [0, 0, 1, 1], [], []>} : vector<128x128xbf16>, vector<128x128xbf16>, vector<128x128xf32> -> vector<128x128xf32>
      %19 = arith.truncf %18 : vector<128x128xf32> to vector<128x128xbf16>
      %20 = arith.index_cast %14 : i32 to index
      %c0_13 = arith.constant 0 : index
      %21 = vector.load %arg9[%20, %c0_13] : memref<384x128xbf16, #tpu.memory_space<vmem>>, vector<128x128xbf16>
      tpu.vector_store %arg9[%20, %c0_13], %19 {strides = array<i32>} : memref<384x128xbf16, #tpu.memory_space<vmem>>, vector<128x128xbf16>,
      %c1_i32 = arith.constant 1 : i32
      %c128_i32_14 = arith.constant 128 : i32
      %22 = arith.muli %c1_i32, %c128_i32_14 : i32
      %23 = tpu.assume_multiple %22, 128 : i32
      %24 = arith.index_cast %23 : i32 to index
      %c0_15 = arith.constant 0 : index
      %25 = vector.load %arg2[%24, %c0_15] : memref<384x128xbf16, #tpu.memory_space<vmem>>, vector<128x128xbf16>
      %c0_16 = arith.constant 0 : index
      %c0_17 = arith.constant 0 : index
      %26 = vector.load %arg3[%c0_16, %c0_17] : memref<128x128xbf16, #tpu.memory_space<vmem>>, vector<128x128xbf16>
      %cst_18 = arith.constant dense<0.000000e+00> : vector<128x128xf32>
      %27 = tpu.matmul %25, %26, %cst_18 {dimension_numbers = #tpu.dot_dimension_numbers<[1], [0], [0], [1], [0, 0, 1, 1], [], []>} : vector<128x128xbf16>, vector<128x128xbf16>, vector<128x128xf32> -> vector<128x128xf32>
      %28 = arith.truncf %27 : vector<128x128xf32> to vector<128x128xbf16>
      %29 = arith.index_cast %23 : i32 to index
      %c0_19 = arith.constant 0 : index
      %30 = vector.load %arg9[%29, %c0_19] : memref<384x128xbf16, #tpu.memory_space<vmem>>, vector<128x128xbf16>
      tpu.vector_store %arg9[%29, %c0_19], %28 {strides = array<i32>} : memref<384x128xbf16, #tpu.memory_space<vmem>>, vector<128x128xbf16>,
      %c2_i32 = arith.constant 2 : i32
      %c128_i32_20 = arith.constant 128 : i32
      %31 = arith.muli %c2_i32, %c128_i32_20 : i32
      %32 = tpu.assume_multiple %31, 128 : i32
      %33 = arith.index_cast %32 : i32 to index
      %c0_21 = arith.constant 0 : index
      %34 = vector.load %arg2[%33, %c0_21] : memref<384x128xbf16, #tpu.memory_space<vmem>>, vector<128x128xbf16>
      %c0_22 = arith.constant 0 : index
      %c0_23 = arith.constant 0 : index
      %35 = vector.load %arg3[%c0_22, %c0_23] : memref<128x128xbf16, #tpu.memory_space<vmem>>, vector<128x128xbf16>
      %cst_24 = arith.constant dense<0.000000e+00> : vector<128x128xf32>
      %36 = tpu.matmul %34, %35, %cst_24 {dimension_numbers = #tpu.dot_dimension_numbers<[1], [0], [0], [1], [0, 0, 1, 1], [], []>} : vector<128x128xbf16>, vector<128x128xbf16>, vector<128x128xf32> -> vector<128x128xf32>
      %37 = arith.truncf %36 : vector<128x128xf32> to vector<128x128xbf16>
      %38 = arith.index_cast %32 : i32 to index
      %c0_25 = arith.constant 0 : index
      %39 = vector.load %arg9[%38, %c0_25] : memref<384x128xbf16, #tpu.memory_space<vmem>>, vector<128x128xbf16>
      tpu.vector_store %arg9[%38, %c0_25], %37 {strides = array<i32>} : memref<384x128xbf16, #tpu.memory_space<vmem>>, vector<128x128xbf16>,
      %c3_i32 = arith.constant 3 : i32
      %c0_i32_26 = arith.constant 0 : i32
      %c128_i32_27 = arith.constant 128 : i32
      %40 = arith.muli %c0_i32_26, %c128_i32_27 : i32
      %41 = tpu.assume_multiple %40, 128 : i32
      %42 = arith.index_cast %41 : i32 to index
      %c0_28 = arith.constant 0 : index
      %43 = vector.load %arg1[%42, %c0_28] : memref<384x384xbf16, #tpu.memory_space<vmem>>, vector<128x384xbf16>
      %c0_29 = arith.constant 0 : index
      %c0_30 = arith.constant 0 : index
      %44 = vector.load %arg9[%c0_29, %c0_30] : memref<384x128xbf16, #tpu.memory_space<vmem>>, vector<384x128xbf16>
      %cst_31 = arith.constant dense<0.000000e+00> : vector<128x128xf32>
      %45 = tpu.matmul %43, %44, %cst_31 {dimension_numbers = #tpu.dot_dimension_numbers<[1], [0], [0], [1], [0, 0, 1, 1], [], []>} : vector<128x384xbf16>, vector<384x128xbf16>, vector<128x128xf32> -> vector<128x128xf32>
      %c0_32 = arith.constant 0 : index
      %c0_33 = arith.constant 0 : index
      %46 = vector.load %arg4[%c0_32, %c0_33] : memref<1x128xf32, #tpu.memory_space<vmem>>, vector<1x128xf32>
      %47 = vector.broadcast %46 : vector<1x128xf32> to vector<128x128xf32>
      %48 = arith.addf %45, %47 : vector<128x128xf32>
      %cst_34 = arith.constant 0.000000e+00 : f32
      %49 = vector.broadcast %cst_34 : f32 to vector<128x128xf32>
      %50 = arith.maximumf %48, %49 : vector<128x128xf32>
      %51 = arith.truncf %50 : vector<128x128xf32> to vector<128x128xbf16>
      %52 = arith.index_cast %41 : i32 to index
      %c0_35 = arith.constant 0 : index
      %53 = vector.load %arg8[%52, %c0_35] : memref<384x128xbf16, #tpu.memory_space<vmem>>, vector<128x128xbf16>
      tpu.vector_store %arg8[%52, %c0_35], %51 {strides = array<i32>} : memref<384x128xbf16, #tpu.memory_space<vmem>>, vector<128x128xbf16>,
      %c1_i32_36 = arith.constant 1 : i32
      %c128_i32_37 = arith.constant 128 : i32
      %54 = arith.muli %c1_i32_36, %c128_i32_37 : i32
      %55 = tpu.assume_multiple %54, 128 : i32
      %56 = arith.index_cast %55 : i32 to index
      %c0_38 = arith.constant 0 : index
      %57 = vector.load %arg1[%56, %c0_38] : memref<384x384xbf16, #tpu.memory_space<vmem>>, vector<128x384xbf16>
      %c0_39 = arith.constant 0 : index
      %c0_40 = arith.constant 0 : index
      %58 = vector.load %arg9[%c0_39, %c0_40] : memref<384x128xbf16, #tpu.memory_space<vmem>>, vector<384x128xbf16>
      %cst_41 = arith.constant dense<0.000000e+00> : vector<128x128xf32>
      %59 = tpu.matmul %57, %58, %cst_41 {dimension_numbers = #tpu.dot_dimension_numbers<[1], [0], [0], [1], [0, 0, 1, 1], [], []>} : vector<128x384xbf16>, vector<384x128xbf16>, vector<128x128xf32> -> vector<128x128xf32>
      %c0_42 = arith.constant 0 : index
      %c0_43 = arith.constant 0 : index
      %60 = vector.load %arg4[%c0_42, %c0_43] : memref<1x128xf32, #tpu.memory_space<vmem>>, vector<1x128xf32>
      %61 = vector.broadcast %60 : vector<1x128xf32> to vector<128x128xf32>
      %62 = arith.addf %59, %61 : vector<128x128xf32>
      %cst_44 = arith.constant 0.000000e+00 : f32
      %63 = vector.broadcast %cst_44 : f32 to vector<128x128xf32>
      %64 = arith.maximumf %62, %63 : vector<128x128xf32>
      %65 = arith.truncf %64 : vector<128x128xf32> to vector<128x128xbf16>
      %66 = arith.index_cast %55 : i32 to index
      %c0_45 = arith.constant 0 : index
      %67 = vector.load %arg8[%66, %c0_45] : memref<384x128xbf16, #tpu.memory_space<vmem>>, vector<128x128xbf16>
      tpu.vector_store %arg8[%66, %c0_45], %65 {strides = array<i32>} : memref<384x128xbf16, #tpu.memory_space<vmem>>, vector<128x128xbf16>,
      %c2_i32_46 = arith.constant 2 : i32
      %c128_i32_47 = arith.constant 128 : i32
      %68 = arith.muli %c2_i32_46, %c128_i32_47 : i32
      %69 = tpu.assume_multiple %68, 128 : i32
      %70 = arith.index_cast %69 : i32 to index
      %c0_48 = arith.constant 0 : index
      %71 = vector.load %arg1[%70, %c0_48] : memref<384x384xbf16, #tpu.memory_space<vmem>>, vector<128x384xbf16>
      %c0_49 = arith.constant 0 : index
      %c0_50 = arith.constant 0 : index
      %72 = vector.load %arg9[%c0_49, %c0_50] : memref<384x128xbf16, #tpu.memory_space<vmem>>, vector<384x128xbf16>
      %cst_51 = arith.constant dense<0.000000e+00> : vector<128x128xf32>
      %73 = tpu.matmul %71, %72, %cst_51 {dimension_numbers = #tpu.dot_dimension_numbers<[1], [0], [0], [1], [0, 0, 1, 1], [], []>} : vector<128x384xbf16>, vector<384x128xbf16>, vector<128x128xf32> -> vector<128x128xf32>
      %c0_52 = arith.constant 0 : index
      %c0_53 = arith.constant 0 : index
      %74 = vector.load %arg4[%c0_52, %c0_53] : memref<1x128xf32, #tpu.memory_space<vmem>>, vector<1x128xf32>
      %75 = vector.broadcast %74 : vector<1x128xf32> to vector<128x128xf32>
      %76 = arith.addf %73, %75 : vector<128x128xf32>
      %cst_54 = arith.constant 0.000000e+00 : f32
      %77 = vector.broadcast %cst_54 : f32 to vector<128x128xf32>
      %78 = arith.maximumf %76, %77 : vector<128x128xf32>
      %79 = arith.truncf %78 : vector<128x128xf32> to vector<128x128xbf16>
      %80 = arith.index_cast %69 : i32 to index
      %c0_55 = arith.constant 0 : index
      %81 = vector.load %arg8[%80, %c0_55] : memref<384x128xbf16, #tpu.memory_space<vmem>>, vector<128x128xbf16>
      tpu.vector_store %arg8[%80, %c0_55], %79 {strides = array<i32>} : memref<384x128xbf16, #tpu.memory_space<vmem>>, vector<128x128xbf16>,
      %c3_i32_56 = arith.constant 3 : i32
      %c0_i32_57 = arith.constant 0 : i32
      %c128_i32_58 = arith.constant 128 : i32
      %82 = arith.muli %c0_i32_57, %c128_i32_58 : i32
      %83 = tpu.assume_multiple %82, 128 : i32
      %84 = arith.index_cast %83 : i32 to index
      %c0_59 = arith.constant 0 : index
      %85 = vector.load %arg8[%84, %c0_59] : memref<384x128xbf16, #tpu.memory_space<vmem>>, vector<128x128xbf16>
      %c0_60 = arith.constant 0 : index
      %c0_61 = arith.constant 0 : index
      %86 = vector.load %arg5[%c0_60, %c0_61] : memref<128x128xbf16, #tpu.memory_space<vmem>>, vector<128x128xbf16>
      %cst_62 = arith.constant dense<0.000000e+00> : vector<128x128xf32>
      %87 = tpu.matmul %85, %86, %cst_62 {dimension_numbers = #tpu.dot_dimension_numbers<[1], [0], [0], [1], [0, 0, 1, 1], [], []>} : vector<128x128xbf16>, vector<128x128xbf16>, vector<128x128xf32> -> vector<128x128xf32>
      %88 = arith.truncf %87 : vector<128x128xf32> to vector<128x128xbf16>
      %89 = arith.index_cast %83 : i32 to index
      %c0_63 = arith.constant 0 : index
      %90 = vector.load %arg9[%89, %c0_63] : memref<384x128xbf16, #tpu.memory_space<vmem>>, vector<128x128xbf16>
      tpu.vector_store %arg9[%89, %c0_63], %88 {strides = array<i32>} : memref<384x128xbf16, #tpu.memory_space<vmem>>, vector<128x128xbf16>,
      %c1_i32_64 = arith.constant 1 : i32
      %c128_i32_65 = arith.constant 128 : i32
      %91 = arith.muli %c1_i32_64, %c128_i32_65 : i32
      %92 = tpu.assume_multiple %91, 128 : i32
      %93 = arith.index_cast %92 : i32 to index
      %c0_66 = arith.constant 0 : index
      %94 = vector.load %arg8[%93, %c0_66] : memref<384x128xbf16, #tpu.memory_space<vmem>>, vector<128x128xbf16>
      %c0_67 = arith.constant 0 : index
      %c0_68 = arith.constant 0 : index
      %95 = vector.load %arg5[%c0_67, %c0_68] : memref<128x128xbf16, #tpu.memory_space<vmem>>, vector<128x128xbf16>
      %cst_69 = arith.constant dense<0.000000e+00> : vector<128x128xf32>
      %96 = tpu.matmul %94, %95, %cst_69 {dimension_numbers = #tpu.dot_dimension_numbers<[1], [0], [0], [1], [0, 0, 1, 1], [], []>} : vector<128x128xbf16>, vector<128x128xbf16>, vector<128x128xf32> -> vector<128x128xf32>
      %97 = arith.truncf %96 : vector<128x128xf32> to vector<128x128xbf16>
      %98 = arith.index_cast %92 : i32 to index
      %c0_70 = arith.constant 0 : index
      %99 = vector.load %arg9[%98, %c0_70] : memref<384x128xbf16, #tpu.memory_space<vmem>>, vector<128x128xbf16>
      tpu.vector_store %arg9[%98, %c0_70], %97 {strides = array<i32>} : memref<384x128xbf16, #tpu.memory_space<vmem>>, vector<128x128xbf16>,
      %c2_i32_71 = arith.constant 2 : i32
      %c128_i32_72 = arith.constant 128 : i32
      %100 = arith.muli %c2_i32_71, %c128_i32_72 : i32
      %101 = tpu.assume_multiple %100, 128 : i32
      %102 = arith.index_cast %101 : i32 to index
      %c0_73 = arith.constant 0 : index
      %103 = vector.load %arg8[%102, %c0_73] : memref<384x128xbf16, #tpu.memory_space<vmem>>, vector<128x128xbf16>
      %c0_74 = arith.constant 0 : index
      %c0_75 = arith.constant 0 : index
      %104 = vector.load %arg5[%c0_74, %c0_75] : memref<128x128xbf16, #tpu.memory_space<vmem>>, vector<128x128xbf16>
      %cst_76 = arith.constant dense<0.000000e+00> : vector<128x128xf32>
      %105 = tpu.matmul %103, %104, %cst_76 {dimension_numbers = #tpu.dot_dimension_numbers<[1], [0], [0], [1], [0, 0, 1, 1], [], []>} : vector<128x128xbf16>, vector<128x128xbf16>, vector<128x128xf32> -> vector<128x128xf32>
      %106 = arith.truncf %105 : vector<128x128xf32> to vector<128x128xbf16>
      %107 = arith.index_cast %101 : i32 to index
      %c0_77 = arith.constant 0 : index
      %108 = vector.load %arg9[%107, %c0_77] : memref<384x128xbf16, #tpu.memory_space<vmem>>, vector<128x128xbf16>
      tpu.vector_store %arg9[%107, %c0_77], %106 {strides = array<i32>} : memref<384x128xbf16, #tpu.memory_space<vmem>>, vector<128x128xbf16>,
      %c3_i32_78 = arith.constant 3 : i32
    } else {
    }
    %c128_i32 = arith.constant 128 : i32
    %3 = arith.muli %arg0, %c128_i32 : i32
    %4 = tpu.assume_multiple %3, 128 : i32
    %5 = arith.index_cast %4 : i32 to index
    %c0 = arith.constant 0 : index
    %6 = vector.load %arg1[%5, %c0] : memref<384x384xbf16, #tpu.memory_space<vmem>>, vector<128x384xbf16>
    %c0_1 = arith.constant 0 : index
    %c0_2 = arith.constant 0 : index
    %7 = vector.load %arg9[%c0_1, %c0_2] : memref<384x128xbf16, #tpu.memory_space<vmem>>, vector<384x128xbf16>
    %cst = arith.constant dense<0.000000e+00> : vector<128x128xf32>
    %8 = tpu.matmul %6, %7, %cst {dimension_numbers = #tpu.dot_dimension_numbers<[1], [0], [0], [1], [0, 0, 1, 1], [], []>} : vector<128x384xbf16>, vector<384x128xbf16>, vector<128x128xf32> -> vector<128x128xf32>
    %c0_3 = arith.constant 0 : index
    %c0_4 = arith.constant 0 : index
    %9 = vector.load %arg6[%c0_3, %c0_4] : memref<1x128xf32, #tpu.memory_space<vmem>>, vector<1x128xf32>
    %10 = vector.broadcast %9 : vector<1x128xf32> to vector<128x128xf32>
    %11 = arith.addf %8, %10 : vector<128x128xf32>
    %c0_5 = arith.constant 0 : index
    %c0_6 = arith.constant 0 : index
    %12 = vector.load %arg7[%c0_5, %c0_6] : memref<128x128xf32, #tpu.memory_space<vmem>>, vector<128x128xf32>
    tpu.vector_store %arg7[%c0_5, %c0_6], %11 {strides = array<i32>} : memref<128x128xf32, #tpu.memory_space<vmem>>, vector<128x128xf32>,
    return
  }
  func.func @transform_0(%arg0: i32) -> (i32, i32) {
    %c0_i32 = arith.constant 0 : i32
    %c0_i32_0 = arith.constant 0 : i32
    %c0_i32_1 = arith.constant 0 : i32
    return %c0_i32, %c0_i32_0 : i32, i32
  }
  func.func @transform_1(%arg0: i32) -> (i32, i32) {
    %c0_i32 = arith.constant 0 : i32
    %c0_i32_0 = arith.constant 0 : i32
    %c0_i32_1 = arith.constant 0 : i32
    return %c0_i32, %c0_i32_0 : i32, i32
  }
  func.func @transform_2(%arg0: i32) -> (i32, i32) {
    %c0_i32 = arith.constant 0 : i32
    %c0_i32_0 = arith.constant 0 : i32
    %c0_i32_1 = arith.constant 0 : i32
    return %c0_i32, %c0_i32_0 : i32, i32
  }
  func.func @transform_3(%arg0: i32) -> (i32, i32) {
    %c0_i32 = arith.constant 0 : i32
    %c0_i32_0 = arith.constant 0 : i32
    %c0_i32_1 = arith.constant 0 : i32
    return %c0_i32, %c0_i32_0 : i32, i32
  }
  func.func @transform_4(%arg0: i32) -> (i32, i32) {
    %c0_i32 = arith.constant 0 : i32
    %c0_i32_0 = arith.constant 0 : i32
    %c0_i32_1 = arith.constant 0 : i32
    return %c0_i32, %c0_i32_0 : i32, i32
  }
  func.func @transform_5(%arg0: i32) -> (i32, i32) {
    %c0_i32 = arith.constant 0 : i32
    %c0_i32_0 = arith.constant 0 : i32
    %c0_i32_1 = arith.constant 0 : i32
    return %c0_i32, %c0_i32_0 : i32, i32
  }
  func.func @transform_6(%arg0: i32) -> (i32, i32) {
    %c0_i32 = arith.constant 0 : i32
    %c0_i32_0 = arith.constant 0 : i32
    return %arg0, %c0_i32 : i32, i32
  }
}

</mosaic_0001>

<llo_original>
// kernel: tpu_custom_call.1
$region0: #{tpu_custom_call.1}
  #allocation0 [shape = 'u32[]', space=smem, size = 0x4, offset = 0x4, fixed_abs, tag = 'smem constant byte address 0x4 - core index']
  #allocation1 [shape = 'u32[144,128]{1,0:T(1,128)}', space=vmem, size = 0x12000, scoped, tag = 'internal scratch']
  #allocation2 [shape = 'bf16[384,128]{1,0:T(16,128)(2,1)}', space=vmem, size = 0x18000, scoped, tag = 'scratch operand']
  #allocation3 [shape = 'bf16[384,128]{1,0:T(16,128)(2,1)}', space=vmem, size = 0x18000, scoped, tag = 'scratch operand']
  %s0 = inlined_call_operand.hbm [shape: bf16[384,384], index: 0, kind: input, shape index: {}]
  %s1 = inlined_call_operand.hbm [shape: bf16[384,128], index: 1, kind: input, shape index: {}]
  %s2 = inlined_call_operand.hbm [shape: bf16[128,128], index: 2, kind: input, shape index: {}]
  %s3 = inlined_call_operand.vmem [shape: f32[1,128], index: 3, kind: input, shape index: {}]
  %s4 = inlined_call_operand.hbm [shape: bf16[128,128], index: 4, kind: input, shape index: {}]
  %s5 = inlined_call_operand.vmem [shape: f32[1,128], index: 5, kind: input, shape index: {}]
  %s6 = inlined_call_operand.hbm [shape: f32[384,128], index: 6, kind: output, shape index: {}]
  %s7 = sld [smem:[#allocation0]]
  $region77: #{tpu_custom_call.1} parent=0
    _
  %s9 = ssub.s32 1, %s7
  %s10 = scalar_select 0, %s9, %s7
  $region1: #{tpu_custom_call.1} parent=0
    #allocation4 [shape = 'u8[294912]{0}', space=vmem, size = 0x48000, scoped, tag = 'input window, operand 0, single buffered']
    #allocation5 [shape = 's32[2]{0}', space=sflag, size = 0x8, scoped, tag = 'scoped memory for tpu_custom_call.1']
    #allocation6 [shape = 's32[2]{0}', space=sflag, size = 0x8, scoped, tag = 'scoped memory for tpu_custom_call.1']
    #allocation7 [shape = 'u8[98304]{0}', space=vmem, size = 0x18000, scoped, tag = 'input window, operand 1, single buffered']
    #allocation8 [shape = 's32[1]{0}', space=sflag, size = 0x4, scoped, tag = 'scoped memory for tpu_custom_call.1']
    #allocation9 [shape = 'u8[32768]{0}', space=vmem, size = 0x8000, scoped, tag = 'input window, operand 2, single buffered']
    #allocation10 [shape = 'u8[32768]{0}', space=vmem, size = 0x8000, scoped, tag = 'input window, operand 4, single buffered']
    #allocation11 [shape = 's32[1]{0}', space=sflag, size = 0x4, scoped, tag = 'scoped memory for tpu_custom_call.1']
    #allocation12 [shape = 'u8[131072]{0}', space=vmem, size = 0x20000, scoped, tag = 'output window, operand 0']
    %11 = vsyncpa [#allocation5], 0
    %12 = vsyncpa [#allocation8], 0
    %13 = vsyncpa [#allocation11], 0
    %14 = vsyncpa [#allocation6], 0
    %s15 = scalar_lea.sflag [#allocation6], 1
    %16 = vsyncpa %s15, 0
    loop: start=0, step=1, limit=5
    $region2: #{tpu_custom_call.1} parent=1 // loop_pre_header
      _
    $region3: #{tpu_custom_call.1} parent=1 // loop_header
      %s18 = sphi 0, %s22
      %p19 = scmp.ge.s32.totalorder %s18, 5
      %s26 = sphi 0, %s26
      %s28 = sphi 0, %s26
      %s29 = sphi 0, %s28
      %s43 = sphi 0, %s29
      %s47 = sphi 0, %s47
      %s49 = sphi 0, %s47
      %s50 = sphi 0, %s49
      %s64 = sphi 0, %s50
      %s68 = sphi 0, %s68
      %s70 = sphi 0, %s68
      %s71 = sphi 0, %s70
      %s85 = sphi 0, %s71
      %s89 = sphi 0, %s89
      %s91 = sphi 0, %s89
      %s92 = sphi 0, %s91
      %s106 = sphi 0, %s92
      %s110 = sphi 0, %s110
      %s112 = sphi 0, %s110
      %s113 = sphi 0, %s112
      %s127 = sphi 0, %s113
      %s131 = sphi 0, %s131
      %s133 = sphi 0, %s131
      %s134 = sphi 0, %s133
      %s148 = sphi 0, %s134
      %s154 = sphi 0, %s156
      %s157 = sphi 0, %s154
      %s158 = sphi 0, %s157
      %s174 = sphi 0, %s158
    $region4: #{tpu_custom_call.1} parent=1 // loop_header_branch
      %21 = sbr.rel (%p19) target = $region8
    $region5: #{tpu_custom_call.1} parent=1 // loop_body
      %s23 = ssub.s32 %s18, 1
      %s24 = ssub.s32 %s18, 2
      %s25 = sadd.s32 %s18, 1
      %s27 = sadd.s32 %s26, 1
      %p30 = scmp.eq.s32.totalorder %s18, 2
      %p31 = scmp.ne.s32.totalorder %s26, %s28
      %p32 = scmp.eq.s32.totalorder %s18, 0
      %p33 = por %p31, %p32
      %p34 = scmp.ne.s32.totalorder %s26, %s28
      %p35 = scmp.eq.s32.totalorder %s23, 2
      %p36 = por %p34, %p35
      %p37 = scmp.ne.s32.totalorder %s28, %s29
      %p38 = scmp.eq.s32.totalorder %s23, 0
      %p39 = por %p37, %p38
      %p40 = scmp.ne.s32.totalorder %s28, %s29
      %p41 = scmp.eq.s32.totalorder %s24, 2
      %p42 = por %p40, %p41
      %p44 = scmp.ne.s32.totalorder %s29, %s43
      %p45 = scmp.eq.s32.totalorder %s24, 0
      %p46 = por %p44, %p45
      %s48 = sadd.s32 %s47, 1
      %p51 = scmp.eq.s32.totalorder %s18, 2
      %p52 = scmp.ne.s32.totalorder %s47, %s49
      %p53 = scmp.eq.s32.totalorder %s18, 0
      %p54 = por %p52, %p53
      %p55 = scmp.ne.s32.totalorder %s47, %s49
      %p56 = scmp.eq.s32.totalorder %s23, 2
      %p57 = por %p55, %p56
      %p58 = scmp.ne.s32.totalorder %s49, %s50
      %p59 = scmp.eq.s32.totalorder %s23, 0
      %p60 = por %p58, %p59
      %p61 = scmp.ne.s32.totalorder %s49, %s50
      %p62 = scmp.eq.s32.totalorder %s24, 2
      %p63 = por %p61, %p62
      %p65 = scmp.ne.s32.totalorder %s50, %s64
      %p66 = scmp.eq.s32.totalorder %s24, 0
      %p67 = por %p65, %p66
      %s69 = sadd.s32 %s68, 1
      %p72 = scmp.eq.s32.totalorder %s18, 2
      %p73 = scmp.ne.s32.totalorder %s68, %s70
      %p74 = scmp.eq.s32.totalorder %s18, 0
      %p75 = por %p73, %p74
      %p76 = scmp.ne.s32.totalorder %s68, %s70
      %p77 = scmp.eq.s32.totalorder %s23, 2
      %p78 = por %p76, %p77
      %p79 = scmp.ne.s32.totalorder %s70, %s71
      %p80 = scmp.eq.s32.totalorder %s23, 0
      %p81 = por %p79, %p80
      %p82 = scmp.ne.s32.totalorder %s70, %s71
      %p83 = scmp.eq.s32.totalorder %s24, 2
      %p84 = por %p82, %p83
      %p86 = scmp.ne.s32.totalorder %s71, %s85
      %p87 = scmp.eq.s32.totalorder %s24, 0
      %p88 = por %p86, %p87
      %s90 = sadd.s32 %s89, 1
      %p93 = scmp.eq.s32.totalorder %s18, 2
      %p94 = scmp.ne.s32.totalorder %s89, %s91
      %p95 = scmp.eq.s32.totalorder %s18, 0
      %p96 = por %p94, %p95
      %p97 = scmp.ne.s32.totalorder %s89, %s91
      %p98 = scmp.eq.s32.totalorder %s23, 2
      %p99 = por %p97, %p98
      %p100 = scmp.ne.s32.totalorder %s91, %s92
      %p101 = scmp.eq.s32.totalorder %s23, 0
      %p102 = por %p100, %p101
      %p103 = scmp.ne.s32.totalorder %s91, %s92
      %p104 = scmp.eq.s32.totalorder %s24, 2
      %p105 = por %p103, %p104
      %p107 = scmp.ne.s32.totalorder %s92, %s106
      %p108 = scmp.eq.s32.totalorder %s24, 0
      %p109 = por %p107, %p108
      %s111 = sadd.s32 %s110, 1
      %p114 = scmp.eq.s32.totalorder %s18, 2
      %p115 = scmp.ne.s32.totalorder %s110, %s112
      %p116 = scmp.eq.s32.totalorder %s18, 0
      %p117 = por %p115, %p116
      %p118 = scmp.ne.s32.totalorder %s110, %s112
      %p119 = scmp.eq.s32.totalorder %s23, 2
      %p120 = por %p118, %p119
      %p121 = scmp.ne.s32.totalorder %s112, %s113
      %p122 = scmp.eq.s32.totalorder %s23, 0
      %p123 = por %p121, %p122
      %p124 = scmp.ne.s32.totalorder %s112, %s113
      %p125 = scmp.eq.s32.totalorder %s24, 2
      %p126 = por %p124, %p125
      %p128 = scmp.ne.s32.totalorder %s113, %s127
      %p129 = scmp.eq.s32.totalorder %s24, 0
      %p130 = por %p128, %p129
      %s132 = sadd.s32 %s131, 1
      %p135 = scmp.eq.s32.totalorder %s18, 2
      %p136 = scmp.ne.s32.totalorder %s131, %s133
      %p137 = scmp.eq.s32.totalorder %s18, 0
      %p138 = por %p136, %p137
      %p139 = scmp.ne.s32.totalorder %s131, %s133
      %p140 = scmp.eq.s32.totalorder %s23, 2
      %p141 = por %p139, %p140
      %p142 = scmp.ne.s32.totalorder %s133, %s134
      %p143 = scmp.eq.s32.totalorder %s23, 0
      %p144 = por %p142, %p143
      %p145 = scmp.ne.s32.totalorder %s133, %s134
      %p146 = scmp.eq.s32.totalorder %s24, 2
      %p147 = por %p145, %p146
      %p149 = scmp.ne.s32.totalorder %s134, %s148
      %p150 = scmp.eq.s32.totalorder %s24, 0
      %p151 = por %p149, %p150
      %s152 = ssub.s32 %s18, %s25
      %p153 = scmp.eq.s32.totalorder %s152, 0
      %s155 = sadd.s32 %s154, 1
      %s156 = scalar_select %p153, %s154, %s155
      %p159 = pneg %p153
      %p160 = scmp.eq.s32.totalorder %s18, 2
      %p161 = por %p159, %p160
      %p162 = scmp.ne.s32.totalorder %s154, %s157
      %p163 = scmp.eq.s32.totalorder %s18, 0
      %p164 = por %p162, %p163
      %p165 = scmp.ne.s32.totalorder %s154, %s157
      %p166 = scmp.eq.s32.totalorder %s23, 2
      %p167 = por %p165, %p166
      %p168 = scmp.ne.s32.totalorder %s157, %s158
      %p169 = scmp.eq.s32.totalorder %s23, 0
      %p170 = por %p168, %p169
      %p171 = scmp.ne.s32.totalorder %s157, %s158
      %p172 = scmp.eq.s32.totalorder %s24, 2
      %p173 = por %p171, %p172
      %p175 = scmp.ne.s32.totalorder %s158, %s174
      %p176 = scmp.eq.s32.totalorder %s24, 0
      %p177 = por %p175, %p176
      %p178 = scmp.le.s32.totalorder 1, %s18
      %p179 = scmp.lt.s32.totalorder %s18, 4
      %p180 = pnand %p178, %p179
      %p181 = pneg %p180
      // Predicated region
      $region9: #{tpu_custom_call.1} parent=5 // pred_check
        _
      $region10: #{tpu_custom_call.1} parent=5 // pred_check_branch
        %183 = sbr.rel (%p180) target = $region12
      $region11: #{tpu_custom_call.1} parent=5 // pred_region
        %s184 = ssub.s32 %s18, 1
        // Predicated region
        $region13: #{tpu_custom_call.1} parent=11 // pred_check
          %p185 = pneg %p39
        $region14: #{tpu_custom_call.1} parent=11 // pred_check_branch
          %187 = sbr.rel (%p185) target = $region16
        $region15: #{tpu_custom_call.1} parent=11 // pred_region
          %s189 = ssub.s32 9216, 9216
          %190 = vsyncadd [#allocation5], %s189
          %s191 = sshll.u32 [#allocation4], 4
          %s192 = int_to_ptr.vmem [resolvable:$true] %s191
          %197 = dma.hbm_to_vmem [thread:$0]  %s0, 9216, %s192, [#allocation5], 192, 192, 12
        $region16: #{tpu_custom_call.1} parent=11 // pred_fallthru
          _
        // Predicated region
        $region17: #{tpu_custom_call.1} parent=11 // pred_check
          %p198 = pneg %p60
        $region18: #{tpu_custom_call.1} parent=11 // pred_check_branch
          %200 = sbr.rel (%p198) target = $region20
        $region19: #{tpu_custom_call.1} parent=11 // pred_region
          %s202 = ssub.s32 3072, 3072
          %203 = vsyncadd [#allocation8], %s202
          %s204 = sshll.u32 [#allocation7], 4
          %s205 = int_to_ptr.vmem [resolvable:$true] %s204
          %210 = dma.hbm_to_vmem [thread:$0]  %s1, 3072, %s205, [#allocation8], 64, 64, 4
        $region20: #{tpu_custom_call.1} parent=11 // pred_fallthru
          _
        // Predicated region
        $region21: #{tpu_custom_call.1} parent=11 // pred_check
          %p211 = pneg %p81
        $region22: #{tpu_custom_call.1} parent=11 // pred_check_branch
          %213 = sbr.rel (%p211) target = $region24
        $region23: #{tpu_custom_call.1} parent=11 // pred_region
          %s215 = ssub.s32 1024, 1024
          %216 = vsyncadd [#allocation8], %s215
          %s217 = sshll.u32 [#allocation9], 4
          %s218 = int_to_ptr.vmem [resolvable:$true] %s217
          %223 = dma.hbm_to_vmem [thread:$0]  %s2, 1024, %s218, [#allocation8], 64, 64, 4
        $region24: #{tpu_custom_call.1} parent=11 // pred_fallthru
          _
        // Predicated region
        $region25: #{tpu_custom_call.1} parent=11 // pred_check
          %p224 = pneg %p102
        $region26: #{tpu_custom_call.1} parent=11 // pred_check_branch
          %226 = sbr.rel (%p224) target = $region28
        $region27: #{tpu_custom_call.1} parent=11 // pred_region
          _
        $region28: #{tpu_custom_call.1} parent=11 // pred_fallthru
          _
        // Predicated region
        $region29: #{tpu_custom_call.1} parent=11 // pred_check
          %p227 = pneg %p123
        $region30: #{tpu_custom_call.1} parent=11 // pred_check_branch
          %229 = sbr.rel (%p227) target = $region32
        $region31: #{tpu_custom_call.1} parent=11 // pred_region
          %s231 = ssub.s32 1024, 1024
          %232 = vsyncadd [#allocation11], %s231
          %s233 = sshll.u32 [#allocation10], 4
          %s234 = int_to_ptr.vmem [resolvable:$true] %s233
          %239 = dma.hbm_to_vmem [thread:$0]  %s4, 1024, %s234, [#allocation11], 64, 64, 4
        $region32: #{tpu_custom_call.1} parent=11 // pred_fallthru
          _
        // Predicated region
        $region33: #{tpu_custom_call.1} parent=11 // pred_check
          %p240 = pneg %p144
        $region34: #{tpu_custom_call.1} parent=11 // pred_check_branch
          %242 = sbr.rel (%p240) target = $region36
        $region35: #{tpu_custom_call.1} parent=11 // pred_region
          _
        $region36: #{tpu_custom_call.1} parent=11 // pred_fallthru
          _
      $region12: #{tpu_custom_call.1} parent=5 // pred_fallthru
        _
      %p243 = scmp.lt.s32.totalorder %s18, 3
      // Predicated region
      $region37: #{tpu_custom_call.1} parent=5 // pred_check
        %p244 = pneg %p243
      $region38: #{tpu_custom_call.1} parent=5 // pred_check_branch
        %246 = sbr.rel (%p244) target = $region40
      $region39: #{tpu_custom_call.1} parent=5 // pred_region
        _
      $region40: #{tpu_custom_call.1} parent=5 // pred_fallthru
        _
      %p247 = scmp.le.s32.totalorder 1, %s18
      %p248 = scmp.lt.s32.totalorder %s18, 4
      %p249 = pnand %p247, %p248
      %p250 = pneg %p249
      // Predicated region
      $region41: #{tpu_custom_call.1} parent=5 // pred_check
        _
      $region42: #{tpu_custom_call.1} parent=5 // pred_check_branch
        %252 = sbr.rel (%p249) target = $region44
      $region43: #{tpu_custom_call.1} parent=5 // pred_region
        %s253 = ssub.s32 %s18, 1
        // Predicated region
        $region45: #{tpu_custom_call.1} parent=43 // pred_check
          %p254 = pneg %p39
        $region46: #{tpu_custom_call.1} parent=43 // pred_check_branch
          %256 = sbr.rel (%p254) target = $region48
        $region47: #{tpu_custom_call.1} parent=43 // pred_region
          %257 = dma.done [#allocation5], 9216
        $region48: #{tpu_custom_call.1} parent=43 // pred_fallthru
          _
        // Predicated region
        $region49: #{tpu_custom_call.1} parent=43 // pred_check
          %p258 = pneg %p60
        $region50: #{tpu_custom_call.1} parent=43 // pred_check_branch
          %260 = sbr.rel (%p258) target = $region52
        $region51: #{tpu_custom_call.1} parent=43 // pred_region
          %261 = dma.done [#allocation8], 3072
        $region52: #{tpu_custom_call.1} parent=43 // pred_fallthru
          _
        // Predicated region
        $region53: #{tpu_custom_call.1} parent=43 // pred_check
          %p262 = pneg %p81
        $region54: #{tpu_custom_call.1} parent=43 // pred_check_branch
          %264 = sbr.rel (%p262) target = $region56
        $region55: #{tpu_custom_call.1} parent=43 // pred_region
          %265 = dma.done [#allocation8], 1024
        $region56: #{tpu_custom_call.1} parent=43 // pred_fallthru
          _
        // Predicated region
        $region57: #{tpu_custom_call.1} parent=43 // pred_check
          %p266 = pneg %p123
        $region58: #{tpu_custom_call.1} parent=43 // pred_check_branch
          %268 = sbr.rel (%p266) target = $region60
        $region59: #{tpu_custom_call.1} parent=43 // pred_region
          %269 = dma.done [#allocation11], 1024
        $region60: #{tpu_custom_call.1} parent=43 // pred_fallthru
          _
        %p270 = pneg %p39
        %p271 = pneg %p36
        %p272 = pneg %p60
        %p273 = pneg %p57
        %p274 = pneg %p81
        %p275 = pneg %p78
        %p276 = pneg %p102
        %p277 = pneg %p99
        %p278 = pneg %p123
        %p279 = pneg %p120
        %p280 = pneg %p144
        %p281 = pneg %p141
        %p282 = pneg %p170
        %p283 = pneg %p167
        %s284 = sand.u32 %s157, 1
        %s285 = scalar_lea.sflag [#allocation6], %s284
        %s286 = sand.u32 %s157, 1
        %s287 = smul.addr %s286, 128
        %s288 = scalar_lea.vmem [#allocation12], %s287
        %s289 = smul.u32 16, %s23
        %p291 = scmp.eq.s32.totalorder %s23, 0
        // Predicated region
        $region61: #{tpu_custom_call.1} parent=43 // pred_check
          %p292 = pneg %p291
        $region62: #{tpu_custom_call.1} parent=43 // pred_check_branch
          %294 = sbr.rel (%p292) target = $region64
        $region63: #{tpu_custom_call.1} parent=43 // pred_region
          %v295 = vld [vmem:[#allocation7] sm:$0xf]
          %v296 = vld [vmem:[#allocation7 + $0x4] sm:$0xf]
          %v297 = vld [vmem:[#allocation7 + $0x8] sm:$0xf]
          %v298 = vld [vmem:[#allocation7 + $0xc] sm:$0xf]
          %v299 = vld [vmem:[#allocation7 + $0x10] sm:$0xf]
          %v300 = vld [vmem:[#allocation7 + $0x14] sm:$0xf]
          %v301 = vld [vmem:[#allocation7 + $0x18] sm:$0xf]
          %v302 = vld [vmem:[#allocation7 + $0x1c] sm:$0xf]
          %v303 = vld [vmem:[#allocation7 + $0x20] sm:$0xf]
          %v304 = vld [vmem:[#allocation7 + $0x24] sm:$0xf]
          %v305 = vld [vmem:[#allocation7 + $0x28] sm:$0xf]
          %v306 = vld [vmem:[#allocation7 + $0x2c] sm:$0xf]
          %v307 = vld [vmem:[#allocation7 + $0x30] sm:$0xf]
          %v308 = vld [vmem:[#allocation7 + $0x34] sm:$0xf]
          %v309 = vld [vmem:[#allocation7 + $0x38] sm:$0xf]
          %v310 = vld [vmem:[#allocation7 + $0x3c] sm:$0xf]
          %v311 = vld [vmem:[#allocation9] sm:$0xf]
          %v312 = vld [vmem:[#allocation9 + $0x4] sm:$0xf]
          %v313 = vld [vmem:[#allocation9 + $0x8] sm:$0xf]
          %v314 = vld [vmem:[#allocation9 + $0xc] sm:$0xf]
          %v315 = vld [vmem:[#allocation9 + $0x10] sm:$0xf]
          %v316 = vld [vmem:[#allocation9 + $0x14] sm:$0xf]
          %v317 = vld [vmem:[#allocation9 + $0x18] sm:$0xf]
          %v318 = vld [vmem:[#allocation9 + $0x1c] sm:$0xf]
          %v319 = vld [vmem:[#allocation9 + $0x20] sm:$0xf]
          %v320 = vld [vmem:[#allocation9 + $0x24] sm:$0xf]
          %v321 = vld [vmem:[#allocation9 + $0x28] sm:$0xf]
          %v322 = vld [vmem:[#allocation9 + $0x2c] sm:$0xf]
          %v323 = vld [vmem:[#allocation9 + $0x30] sm:$0xf]
          %v324 = vld [vmem:[#allocation9 + $0x34] sm:$0xf]
          %v325 = vld [vmem:[#allocation9 + $0x38] sm:$0xf]
          %v326 = vld [vmem:[#allocation9 + $0x3c] sm:$0xf]
          %v343 = vunpack.c.l.b16 %v295
          %v344 = vunpack.c.l.b16 %v296
          %v345 = vunpack.c.l.b16 %v297
          %v346 = vunpack.c.l.b16 %v298
          %v347 = vunpack.c.l.b16 %v299
          %v348 = vunpack.c.l.b16 %v300
          %v349 = vunpack.c.l.b16 %v301
          %v350 = vunpack.c.l.b16 %v302
          %v351 = vunpack.c.l.b16 %v303
          %v352 = vunpack.c.l.b16 %v304
          %v353 = vunpack.c.l.b16 %v305
          %v354 = vunpack.c.l.b16 %v306
          %v355 = vunpack.c.l.b16 %v307
          %v356 = vunpack.c.l.b16 %v308
          %v357 = vunpack.c.l.b16 %v309
          %v358 = vunpack.c.l.b16 %v310
          %v359 = vpack.c.b16 %v344, %v343
          %v360 = vpack.c.b16 %v346, %v345
          %v361 = vpack.c.b16 %v348, %v347
          %v362 = vpack.c.b16 %v350, %v349
          %v363 = vpack.c.b16 %v352, %v351
          %v364 = vpack.c.b16 %v354, %v353
          %v365 = vpack.c.b16 %v356, %v355
          %v366 = vpack.c.b16 %v358, %v357
          %v391 = vunpack.c.l.b16 %v311
          %v392 = vunpack.c.l.b16 %v312
          %v393 = vunpack.c.l.b16 %v313
          %v394 = vunpack.c.l.b16 %v314
          %v395 = vunpack.c.l.b16 %v315
          %v396 = vunpack.c.l.b16 %v316
          %v397 = vunpack.c.l.b16 %v317
          %v398 = vunpack.c.l.b16 %v318
          %v399 = vunpack.c.l.b16 %v319
          %v400 = vunpack.c.l.b16 %v320
          %v401 = vunpack.c.l.b16 %v321
          %v402 = vunpack.c.l.b16 %v322
          %v403 = vunpack.c.l.b16 %v323
          %v404 = vunpack.c.l.b16 %v324
          %v405 = vunpack.c.l.b16 %v325
          %v406 = vunpack.c.l.b16 %v326
          %v407 = vpack.c.b16 %v392, %v391
          %v408 = vpack.c.b16 %v394, %v393
          %v409 = vpack.c.b16 %v396, %v395
          %v410 = vpack.c.b16 %v398, %v397
          %v411 = vpack.c.b16 %v400, %v399
          %v412 = vpack.c.b16 %v402, %v401
          %v413 = vpack.c.b16 %v404, %v403
          %v414 = vpack.c.b16 %v406, %v405
          %423 = vmatprep.subr.bf16.mxu0 0
          %424 = vmatpush1.bf16.msra.mxu0 %v407
          %425 = vmatprep.subr.bf16.mxu0 0
          %426 = vmatpush1.bf16.msra.mxu0 %v408
          %427 = vmatprep.subr.bf16.mxu0 0
          %428 = vmatpush1.bf16.msra.mxu0 %v409
          %429 = vmatprep.subr.bf16.mxu0 0
          %430 = vmatpush1.bf16.msra.mxu0 %v410
          %431 = vmatprep.subr.bf16.mxu0 0
          %432 = vmatpush1.bf16.msra.mxu0 %v411
          %433 = vmatprep.subr.bf16.mxu0 0
          %434 = vmatpush1.bf16.msra.mxu0 %v412
          %435 = vmatprep.subr.bf16.mxu0 0
          %436 = vmatpush1.bf16.msra.mxu0 %v413
          %437 = vmatprep.subr.bf16.mxu0 0
          %438 = vmatpush1.bf16.msra.mxu0 %v414
          %439 = vmatprep.subr.bf16.mxu0 0
          %440 = vmatpush1.bf16.msra.mxu0 0
          %441 = vmatprep.subr.bf16.mxu0 0
          %442 = vmatpush1.bf16.msra.mxu0 0
          %443 = vmatprep.subr.bf16.mxu0 0
          %444 = vmatpush1.bf16.msra.mxu0 0
          %445 = vmatprep.subr.bf16.mxu0 0
          %446 = vmatpush1.bf16.msra.mxu0 0
          %447 = vmatprep.subr.bf16.mxu0 0
          %448 = vmatpush1.bf16.msra.mxu0 0
          %449 = vmatprep.subr.bf16.mxu0 0
          %450 = vmatpush1.bf16.msra.mxu0 0
          %451 = vmatprep.subr.bf16.mxu0 0
          %452 = vmatpush1.bf16.msra.mxu0 0
          %453 = vmatprep.subr.bf16.mxu0 0
          %454 = vmatpush1.bf16.msra.mxu0 0
          %455 = vmatprep.mubr.bf16.mxu0 0
          %456 = vmatmul.mubr.bf16.gmra.mrb[0].mxu0 %v359
          %v457 = vpop.f32.mrb[0].mxu0
          %v458 = vadd.f32 0.0, %v457
          %v459 = vpop.f32.mrb[0].mxu0
          %v460 = vpop.f32.mrb[0].mxu0
          %v461 = vadd.f32 0.0, %v460
          %v462 = vpop.f32.mrb[0].mxu0
          %463 = vmatprep.mubr.bf16.mxu0 0
          %464 = vmatmul.mubr.bf16.gmra.mrb[0].mxu0 %v360
          %v465 = vpop.f32.mrb[0].mxu0
          %v466 = vadd.f32 0.0, %v465
          %v467 = vpop.f32.mrb[0].mxu0
          %v468 = vpop.f32.mrb[0].mxu0
          %v469 = vadd.f32 0.0, %v468
          %v470 = vpop.f32.mrb[0].mxu0
          %471 = vmatprep.mubr.bf16.mxu0 0
          %472 = vmatmul.mubr.bf16.gmra.mrb[0].mxu0 %v361
          %v473 = vpop.f32.mrb[0].mxu0
          %v474 = vadd.f32 0.0, %v473
          %v475 = vpop.f32.mrb[0].mxu0
          %v476 = vpop.f32.mrb[0].mxu0
          %v477 = vadd.f32 0.0, %v476
          %v478 = vpop.f32.mrb[0].mxu0
          %479 = vmatprep.mubr.bf16.mxu0 0
          %480 = vmatmul.mubr.bf16.gmra.mrb[0].mxu0 %v362
          %v481 = vpop.f32.mrb[0].mxu0
          %v482 = vadd.f32 0.0, %v481
          %v483 = vpop.f32.mrb[0].mxu0
          %v484 = vpop.f32.mrb[0].mxu0
          %v485 = vadd.f32 0.0, %v484
          %v486 = vpop.f32.mrb[0].mxu0
          %487 = vmatprep.mubr.bf16.mxu0 0
          %488 = vmatmul.mubr.bf16.gmra.mrb[0].mxu0 %v363
          %v489 = vpop.f32.mrb[0].mxu0
          %v490 = vadd.f32 0.0, %v489
          %v491 = vpop.f32.mrb[0].mxu0
          %v492 = vpop.f32.mrb[0].mxu0
          %v493 = vadd.f32 0.0, %v492
          %v494 = vpop.f32.mrb[0].mxu0
          %495 = vmatprep.mubr.bf16.mxu0 0
          %496 = vmatmul.mubr.bf16.gmra.mrb[0].mxu0 %v364
          %v497 = vpop.f32.mrb[0].mxu0
          %v498 = vadd.f32 0.0, %v497
          %v499 = vpop.f32.mrb[0].mxu0
          %v500 = vpop.f32.mrb[0].mxu0
          %v501 = vadd.f32 0.0, %v500
          %v502 = vpop.f32.mrb[0].mxu0
          %503 = vmatprep.mubr.bf16.mxu0 0
          %504 = vmatmul.mubr.bf16.gmra.mrb[0].mxu0 %v365
          %v505 = vpop.f32.mrb[0].mxu0
          %v506 = vadd.f32 0.0, %v505
          %v507 = vpop.f32.mrb[0].mxu0
          %v508 = vpop.f32.mrb[0].mxu0
          %v509 = vadd.f32 0.0, %v508
          %v510 = vpop.f32.mrb[0].mxu0
          %511 = vmatprep.mubr.bf16.mxu0 0
          %512 = vmatmul.mubr.bf16.gmra.mrb[0].mxu0 %v366
          %v513 = vpop.f32.mrb[0].mxu0
          %v514 = vadd.f32 0.0, %v513
          %v515 = vpop.f32.mrb[0].mxu0
          %v516 = vpop.f32.mrb[0].mxu0
          %v517 = vadd.f32 0.0, %v516
          %v518 = vpop.f32.mrb[0].mxu0
          %519 = vdwg.mxu0
          %v520 = vpack.c.bf16 %v461, %v458
          %v521 = vpack.c.bf16 %v469, %v466
          %v522 = vpack.c.bf16 %v477, %v474
          %v523 = vpack.c.bf16 %v485, %v482
          %v524 = vpack.c.bf16 %v493, %v490
          %v525 = vpack.c.bf16 %v501, %v498
          %v526 = vpack.c.bf16 %v509, %v506
          %v527 = vpack.c.bf16 %v517, %v514
          %528 = vst [vmem:[#allocation3] sm:$0xff] %v520
          %529 = vst [vmem:[#allocation3 + $0x8] sm:$0xff] %v521
          %530 = vst [vmem:[#allocation3 + $0x10] sm:$0xff] %v522
          %531 = vst [vmem:[#allocation3 + $0x18] sm:$0xff] %v523
          %532 = vst [vmem:[#allocation3 + $0x20] sm:$0xff] %v524
          %533 = vst [vmem:[#allocation3 + $0x28] sm:$0xff] %v525
          %534 = vst [vmem:[#allocation3 + $0x30] sm:$0xff] %v526
          %535 = vst [vmem:[#allocation3 + $0x38] sm:$0xff] %v527
          %s536 = scalar_lea.vmem [#allocation7], 64
          %v537 = vld [vmem:[%s536] sm:$0xf]
          %v538 = vld [vmem:[%s536 + $0x4] sm:$0xf]
          %v539 = vld [vmem:[%s536 + $0x8] sm:$0xf]
          %v540 = vld [vmem:[%s536 + $0xc] sm:$0xf]
          %v541 = vld [vmem:[%s536 + $0x10] sm:$0xf]
          %v542 = vld [vmem:[%s536 + $0x14] sm:$0xf]
          %v543 = vld [vmem:[%s536 + $0x18] sm:$0xf]
          %v544 = vld [vmem:[%s536 + $0x1c] sm:$0xf]
          %v545 = vld [vmem:[%s536 + $0x20] sm:$0xf]
          %v546 = vld [vmem:[%s536 + $0x24] sm:$0xf]
          %v547 = vld [vmem:[%s536 + $0x28] sm:$0xf]
          %v548 = vld [vmem:[%s536 + $0x2c] sm:$0xf]
          %v549 = vld [vmem:[%s536 + $0x30] sm:$0xf]
          %v550 = vld [vmem:[%s536 + $0x34] sm:$0xf]
          %v551 = vld [vmem:[%s536 + $0x38] sm:$0xf]
          %v552 = vld [vmem:[%s536 + $0x3c] sm:$0xf]
          %v553 = vld [vmem:[#allocation9] sm:$0xf]
          %v554 = vld [vmem:[#allocation9 + $0x4] sm:$0xf]
          %v555 = vld [vmem:[#allocation9 + $0x8] sm:$0xf]
          %v556 = vld [vmem:[#allocation9 + $0xc] sm:$0xf]
          %v557 = vld [vmem:[#allocation9 + $0x10] sm:$0xf]
          %v558 = vld [vmem:[#allocation9 + $0x14] sm:$0xf]
          %v559 = vld [vmem:[#allocation9 + $0x18] sm:$0xf]
          %v560 = vld [vmem:[#allocation9 + $0x1c] sm:$0xf]
          %v561 = vld [vmem:[#allocation9 + $0x20] sm:$0xf]
          %v562 = vld [vmem:[#allocation9 + $0x24] sm:$0xf]
          %v563 = vld [vmem:[#allocation9 + $0x28] sm:$0xf]
          %v564 = vld [vmem:[#allocation9 + $0x2c] sm:$0xf]
          %v565 = vld [vmem:[#allocation9 + $0x30] sm:$0xf]
          %v566 = vld [vmem:[#allocation9 + $0x34] sm:$0xf]
          %v567 = vld [vmem:[#allocation9 + $0x38] sm:$0xf]
          %v568 = vld [vmem:[#allocation9 + $0x3c] sm:$0xf]
          %v585 = vunpack.c.l.b16 %v537
          %v586 = vunpack.c.l.b16 %v538
          %v587 = vunpack.c.l.b16 %v539
          %v588 = vunpack.c.l.b16 %v540
          %v589 = vunpack.c.l.b16 %v541
          %v590 = vunpack.c.l.b16 %v542
          %v591 = vunpack.c.l.b16 %v543
          %v592 = vunpack.c.l.b16 %v544
          %v593 = vunpack.c.l.b16 %v545
          %v594 = vunpack.c.l.b16 %v546
          %v595 = vunpack.c.l.b16 %v547
          %v596 = vunpack.c.l.b16 %v548
          %v597 = vunpack.c.l.b16 %v549
          %v598 = vunpack.c.l.b16 %v550
          %v599 = vunpack.c.l.b16 %v551
          %v600 = vunpack.c.l.b16 %v552
          %v601 = vpack.c.b16 %v586, %v585
          %v602 = vpack.c.b16 %v588, %v587
          %v603 = vpack.c.b16 %v590, %v589
          %v604 = vpack.c.b16 %v592, %v591
          %v605 = vpack.c.b16 %v594, %v593
          %v606 = vpack.c.b16 %v596, %v595
          %v607 = vpack.c.b16 %v598, %v597
          %v608 = vpack.c.b16 %v600, %v599
          %v633 = vunpack.c.l.b16 %v553
          %v634 = vunpack.c.l.b16 %v554
          %v635 = vunpack.c.l.b16 %v555
          %v636 = vunpack.c.l.b16 %v556
          %v637 = vunpack.c.l.b16 %v557
          %v638 = vunpack.c.l.b16 %v558
          %v639 = vunpack.c.l.b16 %v559
          %v640 = vunpack.c.l.b16 %v560
          %v641 = vunpack.c.l.b16 %v561
          %v642 = vunpack.c.l.b16 %v562
          %v643 = vunpack.c.l.b16 %v563
          %v644 = vunpack.c.l.b16 %v564
          %v645 = vunpack.c.l.b16 %v565
          %v646 = vunpack.c.l.b16 %v566
          %v647 = vunpack.c.l.b16 %v567
          %v648 = vunpack.c.l.b16 %v568
          %v649 = vpack.c.b16 %v634, %v633
          %v650 = vpack.c.b16 %v636, %v635
          %v651 = vpack.c.b16 %v638, %v637
          %v652 = vpack.c.b16 %v640, %v639
          %v653 = vpack.c.b16 %v642, %v641
          %v654 = vpack.c.b16 %v644, %v643
          %v655 = vpack.c.b16 %v646, %v645
          %v656 = vpack.c.b16 %v648, %v647
          %665 = vmatprep.subr.bf16.mxu0 0
          %666 = vmatpush1.bf16.msra.mxu0 %v649
          %667 = vmatprep.subr.bf16.mxu0 0
          %668 = vmatpush1.bf16.msra.mxu0 %v650
          %669 = vmatprep.subr.bf16.mxu0 0
          %670 = vmatpush1.bf16.msra.mxu0 %v651
          %671 = vmatprep.subr.bf16.mxu0 0
          %672 = vmatpush1.bf16.msra.mxu0 %v652
          %673 = vmatprep.subr.bf16.mxu0 0
          %674 = vmatpush1.bf16.msra.mxu0 %v653
          %675 = vmatprep.subr.bf16.mxu0 0
          %676 = vmatpush1.bf16.msra.mxu0 %v654
          %677 = vmatprep.subr.bf16.mxu0 0
          %678 = vmatpush1.bf16.msra.mxu0 %v655
          %679 = vmatprep.subr.bf16.mxu0 0
          %680 = vmatpush1.bf16.msra.mxu0 %v656
          %681 = vmatprep.subr.bf16.mxu0 0
          %682 = vmatpush1.bf16.msra.mxu0 0
          %683 = vmatprep.subr.bf16.mxu0 0
          %684 = vmatpush1.bf16.msra.mxu0 0
          %685 = vmatprep.subr.bf16.mxu0 0
          %686 = vmatpush1.bf16.msra.mxu0 0
          %687 = vmatprep.subr.bf16.mxu0 0
          %688 = vmatpush1.bf16.msra.mxu0 0
          %689 = vmatprep.subr.bf16.mxu0 0
          %690 = vmatpush1.bf16.msra.mxu0 0
          %691 = vmatprep.subr.bf16.mxu0 0
          %692 = vmatpush1.bf16.msra.mxu0 0
          %693 = vmatprep.subr.bf16.mxu0 0
          %694 = vmatpush1.bf16.msra.mxu0 0
          %695 = vmatprep.subr.bf16.mxu0 0
          %696 = vmatpush1.bf16.msra.mxu0 0
          %697 = vmatprep.mubr.bf16.mxu0 0
          %698 = vmatmul.mubr.bf16.gmra.mrb[0].mxu0 %v601
          %v699 = vpop.f32.mrb[0].mxu0
          %v700 = vadd.f32 0.0, %v699
          %v701 = vpop.f32.mrb[0].mxu0
          %v702 = vpop.f32.mrb[0].mxu0
          %v703 = vadd.f32 0.0, %v702
          %v704 = vpop.f32.mrb[0].mxu0
          %705 = vmatprep.mubr.bf16.mxu0 0
          %706 = vmatmul.mubr.bf16.gmra.mrb[0].mxu0 %v602
          %v707 = vpop.f32.mrb[0].mxu0
          %v708 = vadd.f32 0.0, %v707
          %v709 = vpop.f32.mrb[0].mxu0
          %v710 = vpop.f32.mrb[0].mxu0
          %v711 = vadd.f32 0.0, %v710
          %v712 = vpop.f32.mrb[0].mxu0
          %713 = vmatprep.mubr.bf16.mxu0 0
          %714 = vmatmul.mubr.bf16.gmra.mrb[0].mxu0 %v603
          %v715 = vpop.f32.mrb[0].mxu0
          %v716 = vadd.f32 0.0, %v715
          %v717 = vpop.f32.mrb[0].mxu0
          %v718 = vpop.f32.mrb[0].mxu0
          %v719 = vadd.f32 0.0, %v718
          %v720 = vpop.f32.mrb[0].mxu0
          %721 = vmatprep.mubr.bf16.mxu0 0
          %722 = vmatmul.mubr.bf16.gmra.mrb[0].mxu0 %v604
          %v723 = vpop.f32.mrb[0].mxu0
          %v724 = vadd.f32 0.0, %v723
          %v725 = vpop.f32.mrb[0].mxu0
          %v726 = vpop.f32.mrb[0].mxu0
          %v727 = vadd.f32 0.0, %v726
          %v728 = vpop.f32.mrb[0].mxu0
          %729 = vmatprep.mubr.bf16.mxu0 0
          %730 = vmatmul.mubr.bf16.gmra.mrb[0].mxu0 %v605
          %v731 = vpop.f32.mrb[0].mxu0
          %v732 = vadd.f32 0.0, %v731
          %v733 = vpop.f32.mrb[0].mxu0
          %v734 = vpop.f32.mrb[0].mxu0
          %v735 = vadd.f32 0.0, %v734
          %v736 = vpop.f32.mrb[0].mxu0
          %737 = vmatprep.mubr.bf16.mxu0 0
          %738 = vmatmul.mubr.bf16.gmra.mrb[0].mxu0 %v606
          %v739 = vpop.f32.mrb[0].mxu0
          %v740 = vadd.f32 0.0, %v739
          %v741 = vpop.f32.mrb[0].mxu0
          %v742 = vpop.f32.mrb[0].mxu0
          %v743 = vadd.f32 0.0, %v742
          %v744 = vpop.f32.mrb[0].mxu0
          %745 = vmatprep.mubr.bf16.mxu0 0
          %746 = vmatmul.mubr.bf16.gmra.mrb[0].mxu0 %v607
          %v747 = vpop.f32.mrb[0].mxu0
          %v748 = vadd.f32 0.0, %v747
          %v749 = vpop.f32.mrb[0].mxu0
          %v750 = vpop.f32.mrb[0].mxu0
          %v751 = vadd.f32 0.0, %v750
          %v752 = vpop.f32.mrb[0].mxu0
          %753 = vmatprep.mubr.bf16.mxu0 0
          %754 = vmatmul.mubr.bf16.gmra.mrb[0].mxu0 %v608
          %v755 = vpop.f32.mrb[0].mxu0
          %v756 = vadd.f32 0.0, %v755
          %v757 = vpop.f32.mrb[0].mxu0
          %v758 = vpop.f32.mrb[0].mxu0
          %v759 = vadd.f32 0.0, %v758
          %v760 = vpop.f32.mrb[0].mxu0
          %761 = vdwg.mxu0
          %v762 = vpack.c.bf16 %v703, %v700
          %v763 = vpack.c.bf16 %v711, %v708
          %v764 = vpack.c.bf16 %v719, %v716
          %v765 = vpack.c.bf16 %v727, %v724
          %v766 = vpack.c.bf16 %v735, %v732
          %v767 = vpack.c.bf16 %v743, %v740
          %v768 = vpack.c.bf16 %v751, %v748
          %v769 = vpack.c.bf16 %v759, %v756
          %s770 = scalar_lea.vmem [#allocation3], 64
          %771 = vst [vmem:[%s770] sm:$0xff] %v762
          %772 = vst [vmem:[%s770 + $0x8] sm:$0xff] %v763
          %773 = vst [vmem:[%s770 + $0x10] sm:$0xff] %v764
          %774 = vst [vmem:[%s770 + $0x18] sm:$0xff] %v765
          %775 = vst [vmem:[%s770 + $0x20] sm:$0xff] %v766
          %776 = vst [vmem:[%s770 + $0x28] sm:$0xff] %v767
          %777 = vst [vmem:[%s770 + $0x30] sm:$0xff] %v768
          %778 = vst [vmem:[%s770 + $0x38] sm:$0xff] %v769
          %s779 = scalar_lea.vmem [#allocation7], 128
          %v780 = vld [vmem:[%s779] sm:$0xf]
          %v781 = vld [vmem:[%s779 + $0x4] sm:$0xf]
          %v782 = vld [vmem:[%s779 + $0x8] sm:$0xf]
          %v783 = vld [vmem:[%s779 + $0xc] sm:$0xf]
          %v784 = vld [vmem:[%s779 + $0x10] sm:$0xf]
          %v785 = vld [vmem:[%s779 + $0x14] sm:$0xf]
          %v786 = vld [vmem:[%s779 + $0x18] sm:$0xf]
          %v787 = vld [vmem:[%s779 + $0x1c] sm:$0xf]
          %v788 = vld [vmem:[%s779 + $0x20] sm:$0xf]
          %v789 = vld [vmem:[%s779 + $0x24] sm:$0xf]
          %v790 = vld [vmem:[%s779 + $0x28] sm:$0xf]
          %v791 = vld [vmem:[%s779 + $0x2c] sm:$0xf]
          %v792 = vld [vmem:[%s779 + $0x30] sm:$0xf]
          %v793 = vld [vmem:[%s779 + $0x34] sm:$0xf]
          %v794 = vld [vmem:[%s779 + $0x38] sm:$0xf]
          %v795 = vld [vmem:[%s779 + $0x3c] sm:$0xf]
          %v796 = vld [vmem:[#allocation9] sm:$0xf]
          %v797 = vld [vmem:[#allocation9 + $0x4] sm:$0xf]
          %v798 = vld [vmem:[#allocation9 + $0x8] sm:$0xf]
          %v799 = vld [vmem:[#allocation9 + $0xc] sm:$0xf]
          %v800 = vld [vmem:[#allocation9 + $0x10] sm:$0xf]
          %v801 = vld [vmem:[#allocation9 + $0x14] sm:$0xf]
          %v802 = vld [vmem:[#allocation9 + $0x18] sm:$0xf]
          %v803 = vld [vmem:[#allocation9 + $0x1c] sm:$0xf]
          %v804 = vld [vmem:[#allocation9 + $0x20] sm:$0xf]
          %v805 = vld [vmem:[#allocation9 + $0x24] sm:$0xf]
          %v806 = vld [vmem:[#allocation9 + $0x28] sm:$0xf]
          %v807 = vld [vmem:[#allocation9 + $0x2c] sm:$0xf]
          %v808 = vld [vmem:[#allocation9 + $0x30] sm:$0xf]
          %v809 = vld [vmem:[#allocation9 + $0x34] sm:$0xf]
          %v810 = vld [vmem:[#allocation9 + $0x38] sm:$0xf]
          %v811 = vld [vmem:[#allocation9 + $0x3c] sm:$0xf]
          %v828 = vunpack.c.l.b16 %v780
          %v829 = vunpack.c.l.b16 %v781
          %v830 = vunpack.c.l.b16 %v782
          %v831 = vunpack.c.l.b16 %v783
          %v832 = vunpack.c.l.b16 %v784
          %v833 = vunpack.c.l.b16 %v785
          %v834 = vunpack.c.l.b16 %v786
          %v835 = vunpack.c.l.b16 %v787
          %v836 = vunpack.c.l.b16 %v788
          %v837 = vunpack.c.l.b16 %v789
          %v838 = vunpack.c.l.b16 %v790
          %v839 = vunpack.c.l.b16 %v791
          %v840 = vunpack.c.l.b16 %v792
          %v841 = vunpack.c.l.b16 %v793
          %v842 = vunpack.c.l.b16 %v794
          %v843 = vunpack.c.l.b16 %v795
          %v844 = vpack.c.b16 %v829, %v828
          %v845 = vpack.c.b16 %v831, %v830
          %v846 = vpack.c.b16 %v833, %v832
          %v847 = vpack.c.b16 %v835, %v834
          %v848 = vpack.c.b16 %v837, %v836
          %v849 = vpack.c.b16 %v839, %v838
          %v850 = vpack.c.b16 %v841, %v840
          %v851 = vpack.c.b16 %v843, %v842
          %v876 = vunpack.c.l.b16 %v796
          %v877 = vunpack.c.l.b16 %v797
          %v878 = vunpack.c.l.b16 %v798
          %v879 = vunpack.c.l.b16 %v799
          %v880 = vunpack.c.l.b16 %v800
          %v881 = vunpack.c.l.b16 %v801
          %v882 = vunpack.c.l.b16 %v802
          %v883 = vunpack.c.l.b16 %v803
          %v884 = vunpack.c.l.b16 %v804
          %v885 = vunpack.c.l.b16 %v805
          %v886 = vunpack.c.l.b16 %v806
          %v887 = vunpack.c.l.b16 %v807
          %v888 = vunpack.c.l.b16 %v808
          %v889 = vunpack.c.l.b16 %v809
          %v890 = vunpack.c.l.b16 %v810
          %v891 = vunpack.c.l.b16 %v811
          %v892 = vpack.c.b16 %v877, %v876
          %v893 = vpack.c.b16 %v879, %v878
          %v894 = vpack.c.b16 %v881, %v880
          %v895 = vpack.c.b16 %v883, %v882
          %v896 = vpack.c.b16 %v885, %v884
          %v897 = vpack.c.b16 %v887, %v886
          %v898 = vpack.c.b16 %v889, %v888
          %v899 = vpack.c.b16 %v891, %v890
          %908 = vmatprep.subr.bf16.mxu0 0
          %909 = vmatpush1.bf16.msra.mxu0 %v892
          %910 = vmatprep.subr.bf16.mxu0 0
          %911 = vmatpush1.bf16.msra.mxu0 %v893
          %912 = vmatprep.subr.bf16.mxu0 0
          %913 = vmatpush1.bf16.msra.mxu0 %v894
          %914 = vmatprep.subr.bf16.mxu0 0
          %915 = vmatpush1.bf16.msra.mxu0 %v895
          %916 = vmatprep.subr.bf16.mxu0 0
          %917 = vmatpush1.bf16.msra.mxu0 %v896
          %918 = vmatprep.subr.bf16.mxu0 0
          %919 = vmatpush1.bf16.msra.mxu0 %v897
          %920 = vmatprep.subr.bf16.mxu0 0
          %921 = vmatpush1.bf16.msra.mxu0 %v898
          %922 = vmatprep.subr.bf16.mxu0 0
          %923 = vmatpush1.bf16.msra.mxu0 %v899
          %924 = vmatprep.subr.bf16.mxu0 0
          %925 = vmatpush1.bf16.msra.mxu0 0
          %926 = vmatprep.subr.bf16.mxu0 0
          %927 = vmatpush1.bf16.msra.mxu0 0
          %928 = vmatprep.subr.bf16.mxu0 0
          %929 = vmatpush1.bf16.msra.mxu0 0
          %930 = vmatprep.subr.bf16.mxu0 0
          %931 = vmatpush1.bf16.msra.mxu0 0
          %932 = vmatprep.subr.bf16.mxu0 0
          %933 = vmatpush1.bf16.msra.mxu0 0
          %934 = vmatprep.subr.bf16.mxu0 0
          %935 = vmatpush1.bf16.msra.mxu0 0
          %936 = vmatprep.subr.bf16.mxu0 0
          %937 = vmatpush1.bf16.msra.mxu0 0
          %938 = vmatprep.subr.bf16.mxu0 0
          %939 = vmatpush1.bf16.msra.mxu0 0
          %940 = vmatprep.mubr.bf16.mxu0 0
          %941 = vmatmul.mubr.bf16.gmra.mrb[0].mxu0 %v844
          %v942 = vpop.f32.mrb[0].mxu0
          %v943 = vadd.f32 0.0, %v942
          %v944 = vpop.f32.mrb[0].mxu0
          %v945 = vpop.f32.mrb[0].mxu0
          %v946 = vadd.f32 0.0, %v945
          %v947 = vpop.f32.mrb[0].mxu0
          %948 = vmatprep.mubr.bf16.mxu0 0
          %949 = vmatmul.mubr.bf16.gmra.mrb[0].mxu0 %v845
          %v950 = vpop.f32.mrb[0].mxu0
          %v951 = vadd.f32 0.0, %v950
          %v952 = vpop.f32.mrb[0].mxu0
          %v953 = vpop.f32.mrb[0].mxu0
          %v954 = vadd.f32 0.0, %v953
          %v955 = vpop.f32.mrb[0].mxu0
          %956 = vmatprep.mubr.bf16.mxu0 0
          %957 = vmatmul.mubr.bf16.gmra.mrb[0].mxu0 %v846
          %v958 = vpop.f32.mrb[0].mxu0
          %v959 = vadd.f32 0.0, %v958
          %v960 = vpop.f32.mrb[0].mxu0
          %v961 = vpop.f32.mrb[0].mxu0
          %v962 = vadd.f32 0.0, %v961
          %v963 = vpop.f32.mrb[0].mxu0
          %964 = vmatprep.mubr.bf16.mxu0 0
          %965 = vmatmul.mubr.bf16.gmra.mrb[0].mxu0 %v847
          %v966 = vpop.f32.mrb[0].mxu0
          %v967 = vadd.f32 0.0, %v966
          %v968 = vpop.f32.mrb[0].mxu0
          %v969 = vpop.f32.mrb[0].mxu0
          %v970 = vadd.f32 0.0, %v969
          %v971 = vpop.f32.mrb[0].mxu0
          %972 = vmatprep.mubr.bf16.mxu0 0
          %973 = vmatmul.mubr.bf16.gmra.mrb[0].mxu0 %v848
          %v974 = vpop.f32.mrb[0].mxu0
          %v975 = vadd.f32 0.0, %v974
          %v976 = vpop.f32.mrb[0].mxu0
          %v977 = vpop.f32.mrb[0].mxu0
          %v978 = vadd.f32 0.0, %v977
          %v979 = vpop.f32.mrb[0].mxu0
          %980 = vmatprep.mubr.bf16.mxu0 0
          %981 = vmatmul.mubr.bf16.gmra.mrb[0].mxu0 %v849
          %v982 = vpop.f32.mrb[0].mxu0
          %v983 = vadd.f32 0.0, %v982
          %v984 = vpop.f32.mrb[0].mxu0
          %v985 = vpop.f32.mrb[0].mxu0
          %v986 = vadd.f32 0.0, %v985
          %v987 = vpop.f32.mrb[0].mxu0
          %988 = vmatprep.mubr.bf16.mxu0 0
          %989 = vmatmul.mubr.bf16.gmra.mrb[0].mxu0 %v850
          %v990 = vpop.f32.mrb[0].mxu0
          %v991 = vadd.f32 0.0, %v990
          %v992 = vpop.f32.mrb[0].mxu0
          %v993 = vpop.f32.mrb[0].mxu0
          %v994 = vadd.f32 0.0, %v993
          %v995 = vpop.f32.mrb[0].mxu0
          %996 = vmatprep.mubr.bf16.mxu0 0
          %997 = vmatmul.mubr.bf16.gmra.mrb[0].mxu0 %v851
          %v998 = vpop.f32.mrb[0].mxu0
          %v999 = vadd.f32 0.0, %v998
          %v1000 = vpop.f32.mrb[0].mxu0
          %v1001 = vpop.f32.mrb[0].mxu0
          %v1002 = vadd.f32 0.0, %v1001
          %v1003 = vpop.f32.mrb[0].mxu0
          %1004 = vdwg.mxu0
          %v1005 = vpack.c.bf16 %v946, %v943
          %v1006 = vpack.c.bf16 %v954, %v951
          %v1007 = vpack.c.bf16 %v962, %v959
          %v1008 = vpack.c.bf16 %v970, %v967
          %v1009 = vpack.c.bf16 %v978, %v975
          %v1010 = vpack.c.bf16 %v986, %v983
          %v1011 = vpack.c.bf16 %v994, %v991
          %v1012 = vpack.c.bf16 %v1002, %v999
          %s1013 = scalar_lea.vmem [#allocation3], 128
          %1014 = vst [vmem:[%s1013] sm:$0xff] %v1005
          %1015 = vst [vmem:[%s1013 + $0x8] sm:$0xff] %v1006
          %1016 = vst [vmem:[%s1013 + $0x10] sm:$0xff] %v1007
          %1017 = vst [vmem:[%s1013 + $0x18] sm:$0xff] %v1008
          %1018 = vst [vmem:[%s1013 + $0x20] sm:$0xff] %v1009
          %1019 = vst [vmem:[%s1013 + $0x28] sm:$0xff] %v1010
          %1020 = vst [vmem:[%s1013 + $0x30] sm:$0xff] %v1011
          %1021 = vst [vmem:[%s1013 + $0x38] sm:$0xff] %v1012
          %s1022 = smul.u32 0, 3
          %s1023 = smul.addr %s1022, 4
          %s1024 = scalar_lea.vmem [#allocation4], %s1023
          %v1025 = vld [vmem:[%s1024] sm:$0xff]
          %v1026 = vld [vmem:[%s1024 + $0x8] sm:$0xf]
          %v1027 = vld [vmem:[%s1024 + $0xc] sm:$0xff]
          %v1028 = vld [vmem:[%s1024 + $0x14] sm:$0xf]
          %v1029 = vld [vmem:[%s1024 + $0x18] sm:$0xff]
          %v1030 = vld [vmem:[%s1024 + $0x20] sm:$0xf]
          %v1031 = vld [vmem:[%s1024 + $0x24] sm:$0xff]
          %v1032 = vld [vmem:[%s1024 + $0x2c] sm:$0xf]
          %v1033 = vld [vmem:[%s1024 + $0x30] sm:$0xff]
          %v1034 = vld [vmem:[%s1024 + $0x38] sm:$0xf]
          %v1035 = vld [vmem:[%s1024 + $0x3c] sm:$0xff]
          %v1036 = vld [vmem:[%s1024 + $0x44] sm:$0xf]
          %v1037 = vld [vmem:[%s1024 + $0x48] sm:$0xff]
          %v1038 = vld [vmem:[%s1024 + $0x50] sm:$0xf]
          %v1039 = vld [vmem:[%s1024 + $0x54] sm:$0xff]
          %v1040 = vld [vmem:[%s1024 + $0x5c] sm:$0xf]
          %v1041 = vld [vmem:[%s1024 + $0x60] sm:$0xff]
          %v1042 = vld [vmem:[%s1024 + $0x68] sm:$0xf]
          %v1043 = vld [vmem:[%s1024 + $0x6c] sm:$0xff]
          %v1044 = vld [vmem:[%s1024 + $0x74] sm:$0xf]
          %v1045 = vld [vmem:[%s1024 + $0x78] sm:$0xff]
          %v1046 = vld [vmem:[%s1024 + $0x80] sm:$0xf]
          %v1047 = vld [vmem:[%s1024 + $0x84] sm:$0xff]
          %v1048 = vld [vmem:[%s1024 + $0x8c] sm:$0xf]
          %v1049 = vld [vmem:[%s1024 + $0x90] sm:$0xff]
          %v1050 = vld [vmem:[%s1024 + $0x98] sm:$0xf]
          %v1051 = vld [vmem:[%s1024 + $0x9c] sm:$0xff]
          %v1052 = vld [vmem:[%s1024 + $0xa4] sm:$0xf]
          %v1053 = vld [vmem:[%s1024 + $0xa8] sm:$0xff]
          %v1054 = vld [vmem:[%s1024 + $0xb0] sm:$0xf]
          %v1055 = vld [vmem:[%s1024 + $0xb4] sm:$0xff]
          %v1056 = vld [vmem:[%s1024 + $0xbc] sm:$0xf]
          %v1057 = vld [vmem:[#allocation3] sm:$0xff]
          %v1058 = vld [vmem:[#allocation3 + $0x8] sm:$0xff]
          %v1059 = vld [vmem:[#allocation3 + $0x10] sm:$0xff]
          %v1060 = vld [vmem:[#allocation3 + $0x18] sm:$0xff]
          %v1061 = vld [vmem:[#allocation3 + $0x20] sm:$0xff]
          %v1062 = vld [vmem:[#allocation3 + $0x28] sm:$0xff]
          %v1063 = vld [vmem:[#allocation3 + $0x30] sm:$0xff]
          %v1064 = vld [vmem:[#allocation3 + $0x38] sm:$0xff]
          %v1065 = vld [vmem:[#allocation3 + $0x40] sm:$0xff]
          %v1066 = vld [vmem:[#allocation3 + $0x48] sm:$0xff]
          %v1067 = vld [vmem:[#allocation3 + $0x50] sm:$0xff]
          %v1068 = vld [vmem:[#allocation3 + $0x58] sm:$0xff]
          %v1069 = vld [vmem:[#allocation3 + $0x60] sm:$0xff]
          %v1070 = vld [vmem:[#allocation3 + $0x68] sm:$0xff]
          %v1071 = vld [vmem:[#allocation3 + $0x70] sm:$0xff]
          %v1072 = vld [vmem:[#allocation3 + $0x78] sm:$0xff]
          %v1073 = vld [vmem:[#allocation3 + $0x80] sm:$0xff]
          %v1074 = vld [vmem:[#allocation3 + $0x88] sm:$0xff]
          %v1075 = vld [vmem:[#allocation3 + $0x90] sm:$0xff]
          %v1076 = vld [vmem:[#allocation3 + $0x98] sm:$0xff]
          %v1077 = vld [vmem:[#allocation3 + $0xa0] sm:$0xff]
          %v1078 = vld [vmem:[#allocation3 + $0xa8] sm:$0xff]
          %v1079 = vld [vmem:[#allocation3 + $0xb0] sm:$0xff]
          %v1080 = vld [vmem:[#allocation3 + $0xb8] sm:$0xff]
          %v1081 = vld [vmem:[%s3] sm:$0x1]
          %v1083 = vlaneseq
          %v1084 = vshrl.u32 %v1083, 7
          %v1085 = vsub.s32 0, %v1084
          %v1086 = vrot.slane %v1081, %v1085
          %v1120 = vunpack.c.l.b16 %v1025
          %v1121 = vunpack.c.h.b16 %v1025
          %v1122 = vunpack.c.l.b16 %v1026
          %v1123 = vunpack.c.l.b16 %v1027
          %v1124 = vunpack.c.h.b16 %v1027
          %v1125 = vunpack.c.l.b16 %v1028
          %v1126 = vunpack.c.l.b16 %v1029
          %v1127 = vunpack.c.h.b16 %v1029
          %v1128 = vunpack.c.l.b16 %v1030
          %v1129 = vunpack.c.l.b16 %v1031
          %v1130 = vunpack.c.h.b16 %v1031
          %v1131 = vunpack.c.l.b16 %v1032
          %v1132 = vunpack.c.l.b16 %v1033
          %v1133 = vunpack.c.h.b16 %v1033
          %v1134 = vunpack.c.l.b16 %v1034
          %v1135 = vunpack.c.l.b16 %v1035
          %v1136 = vunpack.c.h.b16 %v1035
          %v1137 = vunpack.c.l.b16 %v1036
          %v1138 = vunpack.c.l.b16 %v1037
          %v1139 = vunpack.c.h.b16 %v1037
          %v1140 = vunpack.c.l.b16 %v1038
          %v1141 = vunpack.c.l.b16 %v1039
          %v1142 = vunpack.c.h.b16 %v1039
          %v1143 = vunpack.c.l.b16 %v1040
          %v1144 = vunpack.c.l.b16 %v1041
          %v1145 = vunpack.c.h.b16 %v1041
          %v1146 = vunpack.c.l.b16 %v1042
          %v1147 = vunpack.c.l.b16 %v1043
          %v1148 = vunpack.c.h.b16 %v1043
          %v1149 = vunpack.c.l.b16 %v1044
          %v1150 = vunpack.c.l.b16 %v1045
          %v1151 = vunpack.c.h.b16 %v1045
          %v1152 = vunpack.c.l.b16 %v1046
          %v1153 = vunpack.c.l.b16 %v1047
          %v1154 = vunpack.c.h.b16 %v1047
          %v1155 = vunpack.c.l.b16 %v1048
          %v1156 = vunpack.c.l.b16 %v1049
          %v1157 = vunpack.c.h.b16 %v1049
          %v1158 = vunpack.c.l.b16 %v1050
          %v1159 = vunpack.c.l.b16 %v1051
          %v1160 = vunpack.c.h.b16 %v1051
          %v1161 = vunpack.c.l.b16 %v1052
          %v1162 = vunpack.c.l.b16 %v1053
          %v1163 = vunpack.c.h.b16 %v1053
          %v1164 = vunpack.c.l.b16 %v1054
          %v1165 = vunpack.c.l.b16 %v1055
          %v1166 = vunpack.c.h.b16 %v1055
          %v1167 = vunpack.c.l.b16 %v1056
          %v1168 = vpack.c.b16 %v1123, %v1120
          %v1169 = vpack.c.b16 %v1124, %v1121
          %v1170 = vpack.c.b16 %v1125, %v1122
          %v1171 = vpack.c.b16 %v1129, %v1126
          %v1172 = vpack.c.b16 %v1130, %v1127
          %v1173 = vpack.c.b16 %v1131, %v1128
          %v1174 = vpack.c.b16 %v1135, %v1132
          %v1175 = vpack.c.b16 %v1136, %v1133
          %v1176 = vpack.c.b16 %v1137, %v1134
          %v1177 = vpack.c.b16 %v1141, %v1138
          %v1178 = vpack.c.b16 %v1142, %v1139
          %v1179 = vpack.c.b16 %v1143, %v1140
          %v1180 = vpack.c.b16 %v1147, %v1144
          %v1181 = vpack.c.b16 %v1148, %v1145
          %v1182 = vpack.c.b16 %v1149, %v1146
          %v1183 = vpack.c.b16 %v1153, %v1150
          %v1184 = vpack.c.b16 %v1154, %v1151
          %v1185 = vpack.c.b16 %v1155, %v1152
          %v1186 = vpack.c.b16 %v1159, %v1156
          %v1187 = vpack.c.b16 %v1160, %v1157
          %v1188 = vpack.c.b16 %v1161, %v1158
          %v1189 = vpack.c.b16 %v1165, %v1162
          %v1190 = vpack.c.b16 %v1166, %v1163
          %v1191 = vpack.c.b16 %v1167, %v1164
          %1216 = vmatprep.subr.bf16.mxu0 0
          %1217 = vmatpush1.bf16.msra.mxu0 %v1057
          %1218 = vmatprep.subr.bf16.mxu0 0
          %1219 = vmatpush1.bf16.msra.mxu0 %v1058
          %1220 = vmatprep.subr.bf16.mxu0 0
          %1221 = vmatpush1.bf16.msra.mxu0 %v1059
          %1222 = vmatprep.subr.bf16.mxu0 0
          %1223 = vmatpush1.bf16.msra.mxu0 %v1060
          %1224 = vmatprep.subr.bf16.mxu0 0
          %1225 = vmatpush1.bf16.msra.mxu0 %v1061
          %1226 = vmatprep.subr.bf16.mxu0 0
          %1227 = vmatpush1.bf16.msra.mxu0 %v1062
          %1228 = vmatprep.subr.bf16.mxu0 0
          %1229 = vmatpush1.bf16.msra.mxu0 %v1063
          %1230 = vmatprep.subr.bf16.mxu0 0
          %1231 = vmatpush1.bf16.msra.mxu0 %v1064
          %1232 = vmatprep.subr.bf16.mxu0 0
          %1233 = vmatpush1.bf16.msra.mxu0 %v1065
          %1234 = vmatprep.subr.bf16.mxu0 0
          %1235 = vmatpush1.bf16.msra.mxu0 %v1066
          %1236 = vmatprep.subr.bf16.mxu0 0
          %1237 = vmatpush1.bf16.msra.mxu0 %v1067
          %1238 = vmatprep.subr.bf16.mxu0 0
          %1239 = vmatpush1.bf16.msra.mxu0 %v1068
          %1240 = vmatprep.subr.bf16.mxu0 0
          %1241 = vmatpush1.bf16.msra.mxu0 %v1069
          %1242 = vmatprep.subr.bf16.mxu0 0
          %1243 = vmatpush1.bf16.msra.mxu0 %v1070
          %1244 = vmatprep.subr.bf16.mxu0 0
          %1245 = vmatpush1.bf16.msra.mxu0 %v1071
          %1246 = vmatprep.subr.bf16.mxu0 0
          %1247 = vmatpush1.bf16.msra.mxu0 %v1072
          %1248 = vmatprep.mubr.bf16.mxu0 %v1169
          %1249 = vmatmul.mubr.bf16.gmra.mrb[0].mxu0 %v1168
          %v1250 = vpop.f32.mrb[0].mxu0
          %v1251 = vadd.f32 %v1086, %v1250
          %v1252 = vpop.f32.mrb[0].mxu0
          %v1253 = vpop.f32.mrb[0].mxu0
          %v1254 = vadd.f32 %v1086, %v1253
          %v1255 = vpop.f32.mrb[0].mxu0
          %1256 = vmatprep.mubr.bf16.mxu0 %v1172
          %1257 = vmatmul.mubr.bf16.gmra.mrb[0].mxu0 %v1171
          %v1258 = vpop.f32.mrb[0].mxu0
          %v1259 = vadd.f32 %v1086, %v1258
          %v1260 = vpop.f32.mrb[0].mxu0
          %v1261 = vpop.f32.mrb[0].mxu0
          %v1262 = vadd.f32 %v1086, %v1261
          %v1263 = vpop.f32.mrb[0].mxu0
          %1264 = vmatprep.mubr.bf16.mxu0 %v1175
          %1265 = vmatmul.mubr.bf16.gmra.mrb[0].mxu0 %v1174
          %v1266 = vpop.f32.mrb[0].mxu0
          %v1267 = vadd.f32 %v1086, %v1266
          %v1268 = vpop.f32.mrb[0].mxu0
          %v1269 = vpop.f32.mrb[0].mxu0
          %v1270 = vadd.f32 %v1086, %v1269
          %v1271 = vpop.f32.mrb[0].mxu0
          %1272 = vmatprep.mubr.bf16.mxu0 %v1178
          %1273 = vmatmul.mubr.bf16.gmra.mrb[0].mxu0 %v1177
          %v1274 = vpop.f32.mrb[0].mxu0
          %v1275 = vadd.f32 %v1086, %v1274
          %v1276 = vpop.f32.mrb[0].mxu0
          %v1277 = vpop.f32.mrb[0].mxu0
          %v1278 = vadd.f32 %v1086, %v1277
          %v1279 = vpop.f32.mrb[0].mxu0
          %1280 = vmatprep.mubr.bf16.mxu0 %v1181
          %1281 = vmatmul.mubr.bf16.gmra.mrb[0].mxu0 %v1180
          %v1282 = vpop.f32.mrb[0].mxu0
          %v1283 = vadd.f32 %v1086, %v1282
          %v1284 = vpop.f32.mrb[0].mxu0
          %v1285 = vpop.f32.mrb[0].mxu0
          %v1286 = vadd.f32 %v1086, %v1285
          %v1287 = vpop.f32.mrb[0].mxu0
          %1288 = vmatprep.mubr.bf16.mxu0 %v1184
          %1289 = vmatmul.mubr.bf16.gmra.mrb[0].mxu0 %v1183
          %v1290 = vpop.f32.mrb[0].mxu0
          %v1291 = vadd.f32 %v1086, %v1290
          %v1292 = vpop.f32.mrb[0].mxu0
          %v1293 = vpop.f32.mrb[0].mxu0
          %v1294 = vadd.f32 %v1086, %v1293
          %v1295 = vpop.f32.mrb[0].mxu0
          %1296 = vmatprep.mubr.bf16.mxu0 %v1187
          %1297 = vmatmul.mubr.bf16.gmra.mrb[0].mxu0 %v1186
          %v1298 = vpop.f32.mrb[0].mxu0
          %v1299 = vadd.f32 %v1086, %v1298
          %v1300 = vpop.f32.mrb[0].mxu0
          %v1301 = vpop.f32.mrb[0].mxu0
          %v1302 = vadd.f32 %v1086, %v1301
          %v1303 = vpop.f32.mrb[0].mxu0
          %1304 = vmatprep.mubr.bf16.mxu0 %v1190
          %1305 = vmatmul.mubr.bf16.gmra.mrb[0].mxu0 %v1189
          %v1306 = vpop.f32.mrb[0].mxu0
          %v1307 = vadd.f32 %v1086, %v1306
          %v1308 = vpop.f32.mrb[0].mxu0
          %v1309 = vpop.f32.mrb[0].mxu0
          %v1310 = vadd.f32 %v1086, %v1309
          %v1311 = vpop.f32.mrb[0].mxu0
          %1312 = vdwg.mxu0
          %1313 = vmatprep.subr.bf16.mxu0 0
          %1314 = vmatpush1.bf16.msra.mxu0 %v1073
          %1315 = vmatprep.subr.bf16.mxu0 0
          %1316 = vmatpush1.bf16.msra.mxu0 %v1074
          %1317 = vmatprep.subr.bf16.mxu0 0
          %1318 = vmatpush1.bf16.msra.mxu0 %v1075
          %1319 = vmatprep.subr.bf16.mxu0 0
          %1320 = vmatpush1.bf16.msra.mxu0 %v1076
          %1321 = vmatprep.subr.bf16.mxu0 0
          %1322 = vmatpush1.bf16.msra.mxu0 %v1077
          %1323 = vmatprep.subr.bf16.mxu0 0
          %1324 = vmatpush1.bf16.msra.mxu0 %v1078
          %1325 = vmatprep.subr.bf16.mxu0 0
          %1326 = vmatpush1.bf16.msra.mxu0 %v1079
          %1327 = vmatprep.subr.bf16.mxu0 0
          %1328 = vmatpush1.bf16.msra.mxu0 %v1080
          %1329 = vmatprep.subr.bf16.mxu0 0
          %1330 = vmatpush1.bf16.msra.mxu0 0
          %1331 = vmatprep.subr.bf16.mxu0 0
          %1332 = vmatpush1.bf16.msra.mxu0 0
          %1333 = vmatprep.subr.bf16.mxu0 0
          %1334 = vmatpush1.bf16.msra.mxu0 0
          %1335 = vmatprep.subr.bf16.mxu0 0
          %1336 = vmatpush1.bf16.msra.mxu0 0
          %1337 = vmatprep.subr.bf16.mxu0 0
          %1338 = vmatpush1.bf16.msra.mxu0 0
          %1339 = vmatprep.subr.bf16.mxu0 0
          %1340 = vmatpush1.bf16.msra.mxu0 0
          %1341 = vmatprep.subr.bf16.mxu0 0
          %1342 = vmatpush1.bf16.msra.mxu0 0
          %1343 = vmatprep.subr.bf16.mxu0 0
          %1344 = vmatpush1.bf16.msra.mxu0 0
          %1345 = vmatprep.mubr.bf16.mxu0 0
          %1346 = vmatmul.mubr.bf16.gmra.mrb[0].mxu0 %v1170
          %v1347 = vpop.f32.mrb[0].mxu0
          %v1348 = vadd.f32 %v1251, %v1347
          %v1349 = vpop.f32.mrb[0].mxu0
          %v1350 = vpop.f32.mrb[0].mxu0
          %v1351 = vadd.f32 %v1254, %v1350
          %v1352 = vpop.f32.mrb[0].mxu0
          %1353 = vmatprep.mubr.bf16.mxu0 0
          %1354 = vmatmul.mubr.bf16.gmra.mrb[0].mxu0 %v1173
          %v1355 = vpop.f32.mrb[0].mxu0
          %v1356 = vadd.f32 %v1259, %v1355
          %v1357 = vpop.f32.mrb[0].mxu0
          %v1358 = vpop.f32.mrb[0].mxu0
          %v1359 = vadd.f32 %v1262, %v1358
          %v1360 = vpop.f32.mrb[0].mxu0
          %1361 = vmatprep.mubr.bf16.mxu0 0
          %1362 = vmatmul.mubr.bf16.gmra.mrb[0].mxu0 %v1176
          %v1363 = vpop.f32.mrb[0].mxu0
          %v1364 = vadd.f32 %v1267, %v1363
          %v1365 = vpop.f32.mrb[0].mxu0
          %v1366 = vpop.f32.mrb[0].mxu0
          %v1367 = vadd.f32 %v1270, %v1366
          %v1368 = vpop.f32.mrb[0].mxu0
          %1369 = vmatprep.mubr.bf16.mxu0 0
          %1370 = vmatmul.mubr.bf16.gmra.mrb[0].mxu0 %v1179
          %v1371 = vpop.f32.mrb[0].mxu0
          %v1372 = vadd.f32 %v1275, %v1371
          %v1373 = vpop.f32.mrb[0].mxu0
          %v1374 = vpop.f32.mrb[0].mxu0
          %v1375 = vadd.f32 %v1278, %v1374
          %v1376 = vpop.f32.mrb[0].mxu0
          %1377 = vmatprep.mubr.bf16.mxu0 0
          %1378 = vmatmul.mubr.bf16.gmra.mrb[0].mxu0 %v1182
          %v1379 = vpop.f32.mrb[0].mxu0
          %v1380 = vadd.f32 %v1283, %v1379
          %v1381 = vpop.f32.mrb[0].mxu0
          %v1382 = vpop.f32.mrb[0].mxu0
          %v1383 = vadd.f32 %v1286, %v1382
          %v1384 = vpop.f32.mrb[0].mxu0
          %1385 = vmatprep.mubr.bf16.mxu0 0
          %1386 = vmatmul.mubr.bf16.gmra.mrb[0].mxu0 %v1185
          %v1387 = vpop.f32.mrb[0].mxu0
          %v1388 = vadd.f32 %v1291, %v1387
          %v1389 = vpop.f32.mrb[0].mxu0
          %v1390 = vpop.f32.mrb[0].mxu0
          %v1391 = vadd.f32 %v1294, %v1390
          %v1392 = vpop.f32.mrb[0].mxu0
          %1393 = vmatprep.mubr.bf16.mxu0 0
          %1394 = vmatmul.mubr.bf16.gmra.mrb[0].mxu0 %v1188
          %v1395 = vpop.f32.mrb[0].mxu0
          %v1396 = vadd.f32 %v1299, %v1395
          %v1397 = vpop.f32.mrb[0].mxu0
          %v1398 = vpop.f32.mrb[0].mxu0
          %v1399 = vadd.f32 %v1302, %v1398
          %v1400 = vpop.f32.mrb[0].mxu0
          %1401 = vmatprep.mubr.bf16.mxu0 0
          %1402 = vmatmul.mubr.bf16.gmra.mrb[0].mxu0 %v1191
          %v1403 = vpop.f32.mrb[0].mxu0
          %v1404 = vadd.f32 %v1307, %v1403
          %v1405 = vpop.f32.mrb[0].mxu0
          %v1406 = vpop.f32.mrb[0].mxu0
          %v1407 = vadd.f32 %v1310, %v1406
          %v1408 = vpop.f32.mrb[0].mxu0
          %1409 = vdwg.mxu0
          %v1410 = vmax.f32 %v1348, 0.0
          %v1411 = vmax.f32 %v1351, 0.0
          %v1412 = vmax.f32 %v1356, 0.0
          %v1413 = vmax.f32 %v1359, 0.0
          %v1414 = vmax.f32 %v1364, 0.0
          %v1415 = vmax.f32 %v1367, 0.0
          %v1416 = vmax.f32 %v1372, 0.0
          %v1417 = vmax.f32 %v1375, 0.0
          %v1418 = vmax.f32 %v1380, 0.0
          %v1419 = vmax.f32 %v1383, 0.0
          %v1420 = vmax.f32 %v1388, 0.0
          %v1421 = vmax.f32 %v1391, 0.0
          %v1422 = vmax.f32 %v1396, 0.0
          %v1423 = vmax.f32 %v1399, 0.0
          %v1424 = vmax.f32 %v1404, 0.0
          %v1425 = vmax.f32 %v1407, 0.0
          %v1426 = vpack.c.bf16 %v1411, %v1410
          %v1427 = vpack.c.bf16 %v1413, %v1412
          %v1428 = vpack.c.bf16 %v1415, %v1414
          %v1429 = vpack.c.bf16 %v1417, %v1416
          %v1430 = vpack.c.bf16 %v1419, %v1418
          %v1431 = vpack.c.bf16 %v1421, %v1420
          %v1432 = vpack.c.bf16 %v1423, %v1422
          %v1433 = vpack.c.bf16 %v1425, %v1424
          %1434 = vst [vmem:[#allocation2] sm:$0xff] %v1426
          %1435 = vst [vmem:[#allocation2 + $0x8] sm:$0xff] %v1427
          %1436 = vst [vmem:[#allocation2 + $0x10] sm:$0xff] %v1428
          %1437 = vst [vmem:[#allocation2 + $0x18] sm:$0xff] %v1429
          %1438 = vst [vmem:[#allocation2 + $0x20] sm:$0xff] %v1430
          %1439 = vst [vmem:[#allocation2 + $0x28] sm:$0xff] %v1431
          %1440 = vst [vmem:[#allocation2 + $0x30] sm:$0xff] %v1432
          %1441 = vst [vmem:[#allocation2 + $0x38] sm:$0xff] %v1433
          %s1442 = smul.u32 16, 3
          %s1443 = smul.addr %s1442, 4
          %s1444 = scalar_lea.vmem [#allocation4], %s1443
          %v1445 = vld [vmem:[%s1444] sm:$0xff]
          %v1446 = vld [vmem:[%s1444 + $0x8] sm:$0xf]
          %v1447 = vld [vmem:[%s1444 + $0xc] sm:$0xff]
          %v1448 = vld [vmem:[%s1444 + $0x14] sm:$0xf]
          %v1449 = vld [vmem:[%s1444 + $0x18] sm:$0xff]
          %v1450 = vld [vmem:[%s1444 + $0x20] sm:$0xf]
          %v1451 = vld [vmem:[%s1444 + $0x24] sm:$0xff]
          %v1452 = vld [vmem:[%s1444 + $0x2c] sm:$0xf]
          %v1453 = vld [vmem:[%s1444 + $0x30] sm:$0xff]
          %v1454 = vld [vmem:[%s1444 + $0x38] sm:$0xf]
          %v1455 = vld [vmem:[%s1444 + $0x3c] sm:$0xff]
          %v1456 = vld [vmem:[%s1444 + $0x44] sm:$0xf]
          %v1457 = vld [vmem:[%s1444 + $0x48] sm:$0xff]
          %v1458 = vld [vmem:[%s1444 + $0x50] sm:$0xf]
          %v1459 = vld [vmem:[%s1444 + $0x54] sm:$0xff]
          %v1460 = vld [vmem:[%s1444 + $0x5c] sm:$0xf]
          %v1461 = vld [vmem:[%s1444 + $0x60] sm:$0xff]
          %v1462 = vld [vmem:[%s1444 + $0x68] sm:$0xf]
          %v1463 = vld [vmem:[%s1444 + $0x6c] sm:$0xff]
          %v1464 = vld [vmem:[%s1444 + $0x74] sm:$0xf]
          %v1465 = vld [vmem:[%s1444 + $0x78] sm:$0xff]
          %v1466 = vld [vmem:[%s1444 + $0x80] sm:$0xf]
          %v1467 = vld [vmem:[%s1444 + $0x84] sm:$0xff]
          %v1468 = vld [vmem:[%s1444 + $0x8c] sm:$0xf]
          %v1469 = vld [vmem:[%s1444 + $0x90] sm:$0xff]
          %v1470 = vld [vmem:[%s1444 + $0x98] sm:$0xf]
          %v1471 = vld [vmem:[%s1444 + $0x9c] sm:$0xff]
          %v1472 = vld [vmem:[%s1444 + $0xa4] sm:$0xf]
          %v1473 = vld [vmem:[%s1444 + $0xa8] sm:$0xff]
          %v1474 = vld [vmem:[%s1444 + $0xb0] sm:$0xf]
          %v1475 = vld [vmem:[%s1444 + $0xb4] sm:$0xff]
          %v1476 = vld [vmem:[%s1444 + $0xbc] sm:$0xf]
          %v1477 = vld [vmem:[#allocation3] sm:$0xff]
          %v1478 = vld [vmem:[#allocation3 + $0x8] sm:$0xff]
          %v1479 = vld [vmem:[#allocation3 + $0x10] sm:$0xff]
          %v1480 = vld [vmem:[#allocation3 + $0x18] sm:$0xff]
          %v1481 = vld [vmem:[#allocation3 + $0x20] sm:$0xff]
          %v1482 = vld [vmem:[#allocation3 + $0x28] sm:$0xff]
          %v1483 = vld [vmem:[#allocation3 + $0x30] sm:$0xff]
          %v1484 = vld [vmem:[#allocation3 + $0x38] sm:$0xff]
          %v1485 = vld [vmem:[#allocation3 + $0x40] sm:$0xff]
          %v1486 = vld [vmem:[#allocation3 + $0x48] sm:$0xff]
          %v1487 = vld [vmem:[#allocation3 + $0x50] sm:$0xff]
          %v1488 = vld [vmem:[#allocation3 + $0x58] sm:$0xff]
          %v1489 = vld [vmem:[#allocation3 + $0x60] sm:$0xff]
          %v1490 = vld [vmem:[#allocation3 + $0x68] sm:$0xff]
          %v1491 = vld [vmem:[#allocation3 + $0x70] sm:$0xff]
          %v1492 = vld [vmem:[#allocation3 + $0x78] sm:$0xff]
          %v1493 = vld [vmem:[#allocation3 + $0x80] sm:$0xff]
          %v1494 = vld [vmem:[#allocation3 + $0x88] sm:$0xff]
          %v1495 = vld [vmem:[#allocation3 + $0x90] sm:$0xff]
          %v1496 = vld [vmem:[#allocation3 + $0x98] sm:$0xff]
          %v1497 = vld [vmem:[#allocation3 + $0xa0] sm:$0xff]
          %v1498 = vld [vmem:[#allocation3 + $0xa8] sm:$0xff]
          %v1499 = vld [vmem:[#allocation3 + $0xb0] sm:$0xff]
          %v1500 = vld [vmem:[#allocation3 + $0xb8] sm:$0xff]
          %v1501 = vld [vmem:[%s3] sm:$0x1]
          %v1503 = vlaneseq
          %v1504 = vshrl.u32 %v1503, 7
          %v1505 = vsub.s32 0, %v1504
          %v1506 = vrot.slane %v1501, %v1505
          %v1540 = vunpack.c.l.b16 %v1445
          %v1541 = vunpack.c.h.b16 %v1445
          %v1542 = vunpack.c.l.b16 %v1446
          %v1543 = vunpack.c.l.b16 %v1447
          %v1544 = vunpack.c.h.b16 %v1447
          %v1545 = vunpack.c.l.b16 %v1448
          %v1546 = vunpack.c.l.b16 %v1449
          %v1547 = vunpack.c.h.b16 %v1449
          %v1548 = vunpack.c.l.b16 %v1450
          %v1549 = vunpack.c.l.b16 %v1451
          %v1550 = vunpack.c.h.b16 %v1451
          %v1551 = vunpack.c.l.b16 %v1452
          %v1552 = vunpack.c.l.b16 %v1453
          %v1553 = vunpack.c.h.b16 %v1453
          %v1554 = vunpack.c.l.b16 %v1454
          %v1555 = vunpack.c.l.b16 %v1455
          %v1556 = vunpack.c.h.b16 %v1455
          %v1557 = vunpack.c.l.b16 %v1456
          %v1558 = vunpack.c.l.b16 %v1457
          %v1559 = vunpack.c.h.b16 %v1457
          %v1560 = vunpack.c.l.b16 %v1458
          %v1561 = vunpack.c.l.b16 %v1459
          %v1562 = vunpack.c.h.b16 %v1459
          %v1563 = vunpack.c.l.b16 %v1460
          %v1564 = vunpack.c.l.b16 %v1461
          %v1565 = vunpack.c.h.b16 %v1461
          %v1566 = vunpack.c.l.b16 %v1462
          %v1567 = vunpack.c.l.b16 %v1463
          %v1568 = vunpack.c.h.b16 %v1463
          %v1569 = vunpack.c.l.b16 %v1464
          %v1570 = vunpack.c.l.b16 %v1465
          %v1571 = vunpack.c.h.b16 %v1465
          %v1572 = vunpack.c.l.b16 %v1466
          %v1573 = vunpack.c.l.b16 %v1467
          %v1574 = vunpack.c.h.b16 %v1467
          %v1575 = vunpack.c.l.b16 %v1468
          %v1576 = vunpack.c.l.b16 %v1469
          %v1577 = vunpack.c.h.b16 %v1469
          %v1578 = vunpack.c.l.b16 %v1470
          %v1579 = vunpack.c.l.b16 %v1471
          %v1580 = vunpack.c.h.b16 %v1471
          %v1581 = vunpack.c.l.b16 %v1472
          %v1582 = vunpack.c.l.b16 %v1473
          %v1583 = vunpack.c.h.b16 %v1473
          %v1584 = vunpack.c.l.b16 %v1474
          %v1585 = vunpack.c.l.b16 %v1475
          %v1586 = vunpack.c.h.b16 %v1475
          %v1587 = vunpack.c.l.b16 %v1476
          %v1588 = vpack.c.b16 %v1543, %v1540
          %v1589 = vpack.c.b16 %v1544, %v1541
          %v1590 = vpack.c.b16 %v1545, %v1542
          %v1591 = vpack.c.b16 %v1549, %v1546
          %v1592 = vpack.c.b16 %v1550, %v1547
          %v1593 = vpack.c.b16 %v1551, %v1548
          %v1594 = vpack.c.b16 %v1555, %v1552
          %v1595 = vpack.c.b16 %v1556, %v1553
          %v1596 = vpack.c.b16 %v1557, %v1554
          %v1597 = vpack.c.b16 %v1561, %v1558
          %v1598 = vpack.c.b16 %v1562, %v1559
          %v1599 = vpack.c.b16 %v1563, %v1560
          %v1600 = vpack.c.b16 %v1567, %v1564
          %v1601 = vpack.c.b16 %v1568, %v1565
          %v1602 = vpack.c.b16 %v1569, %v1566
          %v1603 = vpack.c.b16 %v1573, %v1570
          %v1604 = vpack.c.b16 %v1574, %v1571
          %v1605 = vpack.c.b16 %v1575, %v1572
          %v1606 = vpack.c.b16 %v1579, %v1576
          %v1607 = vpack.c.b16 %v1580, %v1577
          %v1608 = vpack.c.b16 %v1581, %v1578
          %v1609 = vpack.c.b16 %v1585, %v1582
          %v1610 = vpack.c.b16 %v1586, %v1583
          %v1611 = vpack.c.b16 %v1587, %v1584
          %1636 = vmatprep.subr.bf16.mxu0 0
          %1637 = vmatpush1.bf16.msra.mxu0 %v1477
          %1638 = vmatprep.subr.bf16.mxu0 0
          %1639 = vmatpush1.bf16.msra.mxu0 %v1478
          %1640 = vmatprep.subr.bf16.mxu0 0
          %1641 = vmatpush1.bf16.msra.mxu0 %v1479
          %1642 = vmatprep.subr.bf16.mxu0 0
          %1643 = vmatpush1.bf16.msra.mxu0 %v1480
          %1644 = vmatprep.subr.bf16.mxu0 0
          %1645 = vmatpush1.bf16.msra.mxu0 %v1481
          %1646 = vmatprep.subr.bf16.mxu0 0
          %1647 = vmatpush1.bf16.msra.mxu0 %v1482
          %1648 = vmatprep.subr.bf16.mxu0 0
          %1649 = vmatpush1.bf16.msra.mxu0 %v1483
          %1650 = vmatprep.subr.bf16.mxu0 0
          %1651 = vmatpush1.bf16.msra.mxu0 %v1484
          %1652 = vmatprep.subr.bf16.mxu0 0
          %1653 = vmatpush1.bf16.msra.mxu0 %v1485
          %1654 = vmatprep.subr.bf16.mxu0 0
          %1655 = vmatpush1.bf16.msra.mxu0 %v1486
          %1656 = vmatprep.subr.bf16.mxu0 0
          %1657 = vmatpush1.bf16.msra.mxu0 %v1487
          %1658 = vmatprep.subr.bf16.mxu0 0
          %1659 = vmatpush1.bf16.msra.mxu0 %v1488
          %1660 = vmatprep.subr.bf16.mxu0 0
          %1661 = vmatpush1.bf16.msra.mxu0 %v1489
          %1662 = vmatprep.subr.bf16.mxu0 0
          %1663 = vmatpush1.bf16.msra.mxu0 %v1490
          %1664 = vmatprep.subr.bf16.mxu0 0
          %1665 = vmatpush1.bf16.msra.mxu0 %v1491
          %1666 = vmatprep.subr.bf16.mxu0 0
          %1667 = vmatpush1.bf16.msra.mxu0 %v1492
          %1668 = vmatprep.mubr.bf16.mxu0 %v1589
          %1669 = vmatmul.mubr.bf16.gmra.mrb[0].mxu0 %v1588
          %v1670 = vpop.f32.mrb[0].mxu0
          %v1671 = vadd.f32 %v1506, %v1670
          %v1672 = vpop.f32.mrb[0].mxu0
          %v1673 = vpop.f32.mrb[0].mxu0
          %v1674 = vadd.f32 %v1506, %v1673
          %v1675 = vpop.f32.mrb[0].mxu0
          %1676 = vmatprep.mubr.bf16.mxu0 %v1592
          %1677 = vmatmul.mubr.bf16.gmra.mrb[0].mxu0 %v1591
          %v1678 = vpop.f32.mrb[0].mxu0
          %v1679 = vadd.f32 %v1506, %v1678
          %v1680 = vpop.f32.mrb[0].mxu0
          %v1681 = vpop.f32.mrb[0].mxu0
          %v1682 = vadd.f32 %v1506, %v1681
          %v1683 = vpop.f32.mrb[0].mxu0
          %1684 = vmatprep.mubr.bf16.mxu0 %v1595
          %1685 = vmatmul.mubr.bf16.gmra.mrb[0].mxu0 %v1594
          %v1686 = vpop.f32.mrb[0].mxu0
          %v1687 = vadd.f32 %v1506, %v1686
          %v1688 = vpop.f32.mrb[0].mxu0
          %v1689 = vpop.f32.mrb[0].mxu0
          %v1690 = vadd.f32 %v1506, %v1689
          %v1691 = vpop.f32.mrb[0].mxu0
          %1692 = vmatprep.mubr.bf16.mxu0 %v1598
          %1693 = vmatmul.mubr.bf16.gmra.mrb[0].mxu0 %v1597
          %v1694 = vpop.f32.mrb[0].mxu0
          %v1695 = vadd.f32 %v1506, %v1694
          %v1696 = vpop.f32.mrb[0].mxu0
          %v1697 = vpop.f32.mrb[0].mxu0
          %v1698 = vadd.f32 %v1506, %v1697
          %v1699 = vpop.f32.mrb[0].mxu0
          %1700 = vmatprep.mubr.bf16.mxu0 %v1601
          %1701 = vmatmul.mubr.bf16.gmra.mrb[0].mxu0 %v1600
          %v1702 = vpop.f32.mrb[0].mxu0
          %v1703 = vadd.f32 %v1506, %v1702
          %v1704 = vpop.f32.mrb[0].mxu0
          %v1705 = vpop.f32.mrb[0].mxu0
          %v1706 = vadd.f32 %v1506, %v1705
          %v1707 = vpop.f32.mrb[0].mxu0
          %1708 = vmatprep.mubr.bf16.mxu0 %v1604
          %1709 = vmatmul.mubr.bf16.gmra.mrb[0].mxu0 %v1603
          %v1710 = vpop.f32.mrb[0].mxu0
          %v1711 = vadd.f32 %v1506, %v1710
          %v1712 = vpop.f32.mrb[0].mxu0
          %v1713 = vpop.f32.mrb[0].mxu0
          %v1714 = vadd.f32 %v1506, %v1713
          %v1715 = vpop.f32.mrb[0].mxu0
          %1716 = vmatprep.mubr.bf16.mxu0 %v1607
          %1717 = vmatmul.mubr.bf16.gmra.mrb[0].mxu0 %v1606
          %v1718 = vpop.f32.mrb[0].mxu0
          %v1719 = vadd.f32 %v1506, %v1718
          %v1720 = vpop.f32.mrb[0].mxu0
          %v1721 = vpop.f32.mrb[0].mxu0
          %v1722 = vadd.f32 %v1506, %v1721
          %v1723 = vpop.f32.mrb[0].mxu0
          %1724 = vmatprep.mubr.bf16.mxu0 %v1610
          %1725 = vmatmul.mubr.bf16.gmra.mrb[0].mxu0 %v1609
          %v1726 = vpop.f32.mrb[0].mxu0
          %v1727 = vadd.f32 %v1506, %v1726
          %v1728 = vpop.f32.mrb[0].mxu0
          %v1729 = vpop.f32.mrb[0].mxu0
          %v1730 = vadd.f32 %v1506, %v1729
          %v1731 = vpop.f32.mrb[0].mxu0
          %1732 = vdwg.mxu0
          %1733 = vmatprep.subr.bf16.mxu0 0
          %1734 = vmatpush1.bf16.msra.mxu0 %v1493
          %1735 = vmatprep.subr.bf16.mxu0 0
          %1736 = vmatpush1.bf16.msra.mxu0 %v1494
          %1737 = vmatprep.subr.bf16.mxu0 0
          %1738 = vmatpush1.bf16.msra.mxu0 %v1495
          %1739 = vmatprep.subr.bf16.mxu0 0
          %1740 = vmatpush1.bf16.msra.mxu0 %v1496
          %1741 = vmatprep.subr.bf16.mxu0 0
          %1742 = vmatpush1.bf16.msra.mxu0 %v1497
          %1743 = vmatprep.subr.bf16.mxu0 0
          %1744 = vmatpush1.bf16.msra.mxu0 %v1498
          %1745 = vmatprep.subr.bf16.mxu0 0
          %1746 = vmatpush1.bf16.msra.mxu0 %v1499
          %1747 = vmatprep.subr.bf16.mxu0 0
          %1748 = vmatpush1.bf16.msra.mxu0 %v1500
          %1749 = vmatprep.subr.bf16.mxu0 0
          %1750 = vmatpush1.bf16.msra.mxu0 0
          %1751 = vmatprep.subr.bf16.mxu0 0
          %1752 = vmatpush1.bf16.msra.mxu0 0
          %1753 = vmatprep.subr.bf16.mxu0 0
          %1754 = vmatpush1.bf16.msra.mxu0 0
          %1755 = vmatprep.subr.bf16.mxu0 0
          %1756 = vmatpush1.bf16.msra.mxu0 0
          %1757 = vmatprep.subr.bf16.mxu0 0
          %1758 = vmatpush1.bf16.msra.mxu0 0
          %1759 = vmatprep.subr.bf16.mxu0 0
          %1760 = vmatpush1.bf16.msra.mxu0 0
          %1761 = vmatprep.subr.bf16.mxu0 0
          %1762 = vmatpush1.bf16.msra.mxu0 0
          %1763 = vmatprep.subr.bf16.mxu0 0
          %1764 = vmatpush1.bf16.msra.mxu0 0
          %1765 = vmatprep.mubr.bf16.mxu0 0
          %1766 = vmatmul.mubr.bf16.gmra.mrb[0].mxu0 %v1590
          %v1767 = vpop.f32.mrb[0].mxu0
          %v1768 = vadd.f32 %v1671, %v1767
          %v1769 = vpop.f32.mrb[0].mxu0
          %v1770 = vpop.f32.mrb[0].mxu0
          %v1771 = vadd.f32 %v1674, %v1770
          %v1772 = vpop.f32.mrb[0].mxu0
          %1773 = vmatprep.mubr.bf16.mxu0 0
          %1774 = vmatmul.mubr.bf16.gmra.mrb[0].mxu0 %v1593
          %v1775 = vpop.f32.mrb[0].mxu0
          %v1776 = vadd.f32 %v1679, %v1775
          %v1777 = vpop.f32.mrb[0].mxu0
          %v1778 = vpop.f32.mrb[0].mxu0
          %v1779 = vadd.f32 %v1682, %v1778
          %v1780 = vpop.f32.mrb[0].mxu0
          %1781 = vmatprep.mubr.bf16.mxu0 0
          %1782 = vmatmul.mubr.bf16.gmra.mrb[0].mxu0 %v1596
          %v1783 = vpop.f32.mrb[0].mxu0
          %v1784 = vadd.f32 %v1687, %v1783
          %v1785 = vpop.f32.mrb[0].mxu0
          %v1786 = vpop.f32.mrb[0].mxu0
          %v1787 = vadd.f32 %v1690, %v1786
          %v1788 = vpop.f32.mrb[0].mxu0
          %1789 = vmatprep.mubr.bf16.mxu0 0
          %1790 = vmatmul.mubr.bf16.gmra.mrb[0].mxu0 %v1599
          %v1791 = vpop.f32.mrb[0].mxu0
          %v1792 = vadd.f32 %v1695, %v1791
          %v1793 = vpop.f32.mrb[0].mxu0
          %v1794 = vpop.f32.mrb[0].mxu0
          %v1795 = vadd.f32 %v1698, %v1794
          %v1796 = vpop.f32.mrb[0].mxu0
          %1797 = vmatprep.mubr.bf16.mxu0 0
          %1798 = vmatmul.mubr.bf16.gmra.mrb[0].mxu0 %v1602
          %v1799 = vpop.f32.mrb[0].mxu0
          %v1800 = vadd.f32 %v1703, %v1799
          %v1801 = vpop.f32.mrb[0].mxu0
          %v1802 = vpop.f32.mrb[0].mxu0
          %v1803 = vadd.f32 %v1706, %v1802
          %v1804 = vpop.f32.mrb[0].mxu0
          %1805 = vmatprep.mubr.bf16.mxu0 0
          %1806 = vmatmul.mubr.bf16.gmra.mrb[0].mxu0 %v1605
          %v1807 = vpop.f32.mrb[0].mxu0
          %v1808 = vadd.f32 %v1711, %v1807
          %v1809 = vpop.f32.mrb[0].mxu0
          %v1810 = vpop.f32.mrb[0].mxu0
          %v1811 = vadd.f32 %v1714, %v1810
          %v1812 = vpop.f32.mrb[0].mxu0
          %1813 = vmatprep.mubr.bf16.mxu0 0
          %1814 = vmatmul.mubr.bf16.gmra.mrb[0].mxu0 %v1608
          %v1815 = vpop.f32.mrb[0].mxu0
          %v1816 = vadd.f32 %v1719, %v1815
          %v1817 = vpop.f32.mrb[0].mxu0
          %v1818 = vpop.f32.mrb[0].mxu0
          %v1819 = vadd.f32 %v1722, %v1818
          %v1820 = vpop.f32.mrb[0].mxu0
          %1821 = vmatprep.mubr.bf16.mxu0 0
          %1822 = vmatmul.mubr.bf16.gmra.mrb[0].mxu0 %v1611
          %v1823 = vpop.f32.mrb[0].mxu0
          %v1824 = vadd.f32 %v1727, %v1823
          %v1825 = vpop.f32.mrb[0].mxu0
          %v1826 = vpop.f32.mrb[0].mxu0
          %v1827 = vadd.f32 %v1730, %v1826
          %v1828 = vpop.f32.mrb[0].mxu0
          %1829 = vdwg.mxu0
          %v1830 = vmax.f32 %v1768, 0.0
          %v1831 = vmax.f32 %v1771, 0.0
          %v1832 = vmax.f32 %v1776, 0.0
          %v1833 = vmax.f32 %v1779, 0.0
          %v1834 = vmax.f32 %v1784, 0.0
          %v1835 = vmax.f32 %v1787, 0.0
          %v1836 = vmax.f32 %v1792, 0.0
          %v1837 = vmax.f32 %v1795, 0.0
          %v1838 = vmax.f32 %v1800, 0.0
          %v1839 = vmax.f32 %v1803, 0.0
          %v1840 = vmax.f32 %v1808, 0.0
          %v1841 = vmax.f32 %v1811, 0.0
          %v1842 = vmax.f32 %v1816, 0.0
          %v1843 = vmax.f32 %v1819, 0.0
          %v1844 = vmax.f32 %v1824, 0.0
          %v1845 = vmax.f32 %v1827, 0.0
          %v1846 = vpack.c.bf16 %v1831, %v1830
          %v1847 = vpack.c.bf16 %v1833, %v1832
          %v1848 = vpack.c.bf16 %v1835, %v1834
          %v1849 = vpack.c.bf16 %v1837, %v1836
          %v1850 = vpack.c.bf16 %v1839, %v1838
          %v1851 = vpack.c.bf16 %v1841, %v1840
          %v1852 = vpack.c.bf16 %v1843, %v1842
          %v1853 = vpack.c.bf16 %v1845, %v1844
          %s1854 = scalar_lea.vmem [#allocation2], 64
          %1855 = vst [vmem:[%s1854] sm:$0xff] %v1846
          %1856 = vst [vmem:[%s1854 + $0x8] sm:$0xff] %v1847
          %1857 = vst [vmem:[%s1854 + $0x10] sm:$0xff] %v1848
          %1858 = vst [vmem:[%s1854 + $0x18] sm:$0xff] %v1849
          %1859 = vst [vmem:[%s1854 + $0x20] sm:$0xff] %v1850
          %1860 = vst [vmem:[%s1854 + $0x28] sm:$0xff] %v1851
          %1861 = vst [vmem:[%s1854 + $0x30] sm:$0xff] %v1852
          %1862 = vst [vmem:[%s1854 + $0x38] sm:$0xff] %v1853
          %s1863 = smul.u32 32, 3
          %s1864 = smul.addr %s1863, 4
          %s1865 = scalar_lea.vmem [#allocation4], %s1864
          %v1866 = vld [vmem:[%s1865] sm:$0xff]
          %v1867 = vld [vmem:[%s1865 + $0x8] sm:$0xf]
          %v1868 = vld [vmem:[%s1865 + $0xc] sm:$0xff]
          %v1869 = vld [vmem:[%s1865 + $0x14] sm:$0xf]
          %v1870 = vld [vmem:[%s1865 + $0x18] sm:$0xff]
          %v1871 = vld [vmem:[%s1865 + $0x20] sm:$0xf]
          %v1872 = vld [vmem:[%s1865 + $0x24] sm:$0xff]
          %v1873 = vld [vmem:[%s1865 + $0x2c] sm:$0xf]
          %v1874 = vld [vmem:[%s1865 + $0x30] sm:$0xff]
          %v1875 = vld [vmem:[%s1865 + $0x38] sm:$0xf]
          %v1876 = vld [vmem:[%s1865 + $0x3c] sm:$0xff]
          %v1877 = vld [vmem:[%s1865 + $0x44] sm:$0xf]
          %v1878 = vld [vmem:[%s1865 + $0x48] sm:$0xff]
          %v1879 = vld [vmem:[%s1865 + $0x50] sm:$0xf]
          %v1880 = vld [vmem:[%s1865 + $0x54] sm:$0xff]
          %v1881 = vld [vmem:[%s1865 + $0x5c] sm:$0xf]
          %v1882 = vld [vmem:[%s1865 + $0x60] sm:$0xff]
          %v1883 = vld [vmem:[%s1865 + $0x68] sm:$0xf]
          %v1884 = vld [vmem:[%s1865 + $0x6c] sm:$0xff]
          %v1885 = vld [vmem:[%s1865 + $0x74] sm:$0xf]
          %v1886 = vld [vmem:[%s1865 + $0x78] sm:$0xff]
          %v1887 = vld [vmem:[%s1865 + $0x80] sm:$0xf]
          %v1888 = vld [vmem:[%s1865 + $0x84] sm:$0xff]
          %v1889 = vld [vmem:[%s1865 + $0x8c] sm:$0xf]
          %v1890 = vld [vmem:[%s1865 + $0x90] sm:$0xff]
          %v1891 = vld [vmem:[%s1865 + $0x98] sm:$0xf]
          %v1892 = vld [vmem:[%s1865 + $0x9c] sm:$0xff]
          %v1893 = vld [vmem:[%s1865 + $0xa4] sm:$0xf]
          %v1894 = vld [vmem:[%s1865 + $0xa8] sm:$0xff]
          %v1895 = vld [vmem:[%s1865 + $0xb0] sm:$0xf]
          %v1896 = vld [vmem:[%s1865 + $0xb4] sm:$0xff]
          %v1897 = vld [vmem:[%s1865 + $0xbc] sm:$0xf]
          %v1898 = vld [vmem:[#allocation3] sm:$0xff]
          %v1899 = vld [vmem:[#allocation3 + $0x8] sm:$0xff]
          %v1900 = vld [vmem:[#allocation3 + $0x10] sm:$0xff]
          %v1901 = vld [vmem:[#allocation3 + $0x18] sm:$0xff]
          %v1902 = vld [vmem:[#allocation3 + $0x20] sm:$0xff]
          %v1903 = vld [vmem:[#allocation3 + $0x28] sm:$0xff]
          %v1904 = vld [vmem:[#allocation3 + $0x30] sm:$0xff]
          %v1905 = vld [vmem:[#allocation3 + $0x38] sm:$0xff]
          %v1906 = vld [vmem:[#allocation3 + $0x40] sm:$0xff]
          %v1907 = vld [vmem:[#allocation3 + $0x48] sm:$0xff]
          %v1908 = vld [vmem:[#allocation3 + $0x50] sm:$0xff]
          %v1909 = vld [vmem:[#allocation3 + $0x58] sm:$0xff]
          %v1910 = vld [vmem:[#allocation3 + $0x60] sm:$0xff]
          %v1911 = vld [vmem:[#allocation3 + $0x68] sm:$0xff]
          %v1912 = vld [vmem:[#allocation3 + $0x70] sm:$0xff]
          %v1913 = vld [vmem:[#allocation3 + $0x78] sm:$0xff]
          %v1914 = vld [vmem:[#allocation3 + $0x80] sm:$0xff]
          %v1915 = vld [vmem:[#allocation3 + $0x88] sm:$0xff]
          %v1916 = vld [vmem:[#allocation3 + $0x90] sm:$0xff]
          %v1917 = vld [vmem:[#allocation3 + $0x98] sm:$0xff]
          %v1918 = vld [vmem:[#allocation3 + $0xa0] sm:$0xff]
          %v1919 = vld [vmem:[#allocation3 + $0xa8] sm:$0xff]
          %v1920 = vld [vmem:[#allocation3 + $0xb0] sm:$0xff]
          %v1921 = vld [vmem:[#allocation3 + $0xb8] sm:$0xff]
          %v1922 = vld [vmem:[%s3] sm:$0x1]
          %v1924 = vlaneseq
          %v1925 = vshrl.u32 %v1924, 7
          %v1926 = vsub.s32 0, %v1925
          %v1927 = vrot.slane %v1922, %v1926
          %v1961 = vunpack.c.l.b16 %v1866
          %v1962 = vunpack.c.h.b16 %v1866
          %v1963 = vunpack.c.l.b16 %v1867
          %v1964 = vunpack.c.l.b16 %v1868
          %v1965 = vunpack.c.h.b16 %v1868
          %v1966 = vunpack.c.l.b16 %v1869
          %v1967 = vunpack.c.l.b16 %v1870
          %v1968 = vunpack.c.h.b16 %v1870
          %v1969 = vunpack.c.l.b16 %v1871
          %v1970 = vunpack.c.l.b16 %v1872
          %v1971 = vunpack.c.h.b16 %v1872
          %v1972 = vunpack.c.l.b16 %v1873
          %v1973 = vunpack.c.l.b16 %v1874
          %v1974 = vunpack.c.h.b16 %v1874
          %v1975 = vunpack.c.l.b16 %v1875
          %v1976 = vunpack.c.l.b16 %v1876
          %v1977 = vunpack.c.h.b16 %v1876
          %v1978 = vunpack.c.l.b16 %v1877
          %v1979 = vunpack.c.l.b16 %v1878
          %v1980 = vunpack.c.h.b16 %v1878
          %v1981 = vunpack.c.l.b16 %v1879
          %v1982 = vunpack.c.l.b16 %v1880
          %v1983 = vunpack.c.h.b16 %v1880
          %v1984 = vunpack.c.l.b16 %v1881
          %v1985 = vunpack.c.l.b16 %v1882
          %v1986 = vunpack.c.h.b16 %v1882
          %v1987 = vunpack.c.l.b16 %v1883
          %v1988 = vunpack.c.l.b16 %v1884
          %v1989 = vunpack.c.h.b16 %v1884
          %v1990 = vunpack.c.l.b16 %v1885
          %v1991 = vunpack.c.l.b16 %v1886
          %v1992 = vunpack.c.h.b16 %v1886
          %v1993 = vunpack.c.l.b16 %v1887
          %v1994 = vunpack.c.l.b16 %v1888
          %v1995 = vunpack.c.h.b16 %v1888
          %v1996 = vunpack.c.l.b16 %v1889
          %v1997 = vunpack.c.l.b16 %v1890
          %v1998 = vunpack.c.h.b16 %v1890
          %v1999 = vunpack.c.l.b16 %v1891
          %v2000 = vunpack.c.l.b16 %v1892
          %v2001 = vunpack.c.h.b16 %v1892
          %v2002 = vunpack.c.l.b16 %v1893
          %v2003 = vunpack.c.l.b16 %v1894
          %v2004 = vunpack.c.h.b16 %v1894
          %v2005 = vunpack.c.l.b16 %v1895
          %v2006 = vunpack.c.l.b16 %v1896
          %v2007 = vunpack.c.h.b16 %v1896
          %v2008 = vunpack.c.l.b16 %v1897
          %v2009 = vpack.c.b16 %v1964, %v1961
          %v2010 = vpack.c.b16 %v1965, %v1962
          %v2011 = vpack.c.b16 %v1966, %v1963
          %v2012 = vpack.c.b16 %v1970, %v1967
          %v2013 = vpack.c.b16 %v1971, %v1968
          %v2014 = vpack.c.b16 %v1972, %v1969
          %v2015 = vpack.c.b16 %v1976, %v1973
          %v2016 = vpack.c.b16 %v1977, %v1974
          %v2017 = vpack.c.b16 %v1978, %v1975
          %v2018 = vpack.c.b16 %v1982, %v1979
          %v2019 = vpack.c.b16 %v1983, %v1980
          %v2020 = vpack.c.b16 %v1984, %v1981
          %v2021 = vpack.c.b16 %v1988, %v1985
          %v2022 = vpack.c.b16 %v1989, %v1986
          %v2023 = vpack.c.b16 %v1990, %v1987
          %v2024 = vpack.c.b16 %v1994, %v1991
          %v2025 = vpack.c.b16 %v1995, %v1992
          %v2026 = vpack.c.b16 %v1996, %v1993
          %v2027 = vpack.c.b16 %v2000, %v1997
          %v2028 = vpack.c.b16 %v2001, %v1998
          %v2029 = vpack.c.b16 %v2002, %v1999
          %v2030 = vpack.c.b16 %v2006, %v2003
          %v2031 = vpack.c.b16 %v2007, %v2004
          %v2032 = vpack.c.b16 %v2008, %v2005
          %2057 = vmatprep.subr.bf16.mxu0 0
          %2058 = vmatpush1.bf16.msra.mxu0 %v1898
          %2059 = vmatprep.subr.bf16.mxu0 0
          %2060 = vmatpush1.bf16.msra.mxu0 %v1899
          %2061 = vmatprep.subr.bf16.mxu0 0
          %2062 = vmatpush1.bf16.msra.mxu0 %v1900
          %2063 = vmatprep.subr.bf16.mxu0 0
          %2064 = vmatpush1.bf16.msra.mxu0 %v1901
          %2065 = vmatprep.subr.bf16.mxu0 0
          %2066 = vmatpush1.bf16.msra.mxu0 %v1902
          %2067 = vmatprep.subr.bf16.mxu0 0
          %2068 = vmatpush1.bf16.msra.mxu0 %v1903
          %2069 = vmatprep.subr.bf16.mxu0 0
          %2070 = vmatpush1.bf16.msra.mxu0 %v1904
          %2071 = vmatprep.subr.bf16.mxu0 0
          %2072 = vmatpush1.bf16.msra.mxu0 %v1905
          %2073 = vmatprep.subr.bf16.mxu0 0
          %2074 = vmatpush1.bf16.msra.mxu0 %v1906
          %2075 = vmatprep.subr.bf16.mxu0 0
          %2076 = vmatpush1.bf16.msra.mxu0 %v1907
          %2077 = vmatprep.subr.bf16.mxu0 0
          %2078 = vmatpush1.bf16.msra.mxu0 %v1908
          %2079 = vmatprep.subr.bf16.mxu0 0
          %2080 = vmatpush1.bf16.msra.mxu0 %v1909
          %2081 = vmatprep.subr.bf16.mxu0 0
          %2082 = vmatpush1.bf16.msra.mxu0 %v1910
          %2083 = vmatprep.subr.bf16.mxu0 0
          %2084 = vmatpush1.bf16.msra.mxu0 %v1911
          %2085 = vmatprep.subr.bf16.mxu0 0
          %2086 = vmatpush1.bf16.msra.mxu0 %v1912
          %2087 = vmatprep.subr.bf16.mxu0 0
          %2088 = vmatpush1.bf16.msra.mxu0 %v1913
          %2089 = vmatprep.mubr.bf16.mxu0 %v2010
          %2090 = vmatmul.mubr.bf16.gmra.mrb[0].mxu0 %v2009
          %v2091 = vpop.f32.mrb[0].mxu0
          %v2092 = vadd.f32 %v1927, %v2091
          %v2093 = vpop.f32.mrb[0].mxu0
          %v2094 = vpop.f32.mrb[0].mxu0
          %v2095 = vadd.f32 %v1927, %v2094
          %v2096 = vpop.f32.mrb[0].mxu0
          %2097 = vmatprep.mubr.bf16.mxu0 %v2013
          %2098 = vmatmul.mubr.bf16.gmra.mrb[0].mxu0 %v2012
          %v2099 = vpop.f32.mrb[0].mxu0
          %v2100 = vadd.f32 %v1927, %v2099
          %v2101 = vpop.f32.mrb[0].mxu0
          %v2102 = vpop.f32.mrb[0].mxu0
          %v2103 = vadd.f32 %v1927, %v2102
          %v2104 = vpop.f32.mrb[0].mxu0
          %2105 = vmatprep.mubr.bf16.mxu0 %v2016
          %2106 = vmatmul.mubr.bf16.gmra.mrb[0].mxu0 %v2015
          %v2107 = vpop.f32.mrb[0].mxu0
          %v2108 = vadd.f32 %v1927, %v2107
          %v2109 = vpop.f32.mrb[0].mxu0
          %v2110 = vpop.f32.mrb[0].mxu0
          %v2111 = vadd.f32 %v1927, %v2110
          %v2112 = vpop.f32.mrb[0].mxu0
          %2113 = vmatprep.mubr.bf16.mxu0 %v2019
          %2114 = vmatmul.mubr.bf16.gmra.mrb[0].mxu0 %v2018
          %v2115 = vpop.f32.mrb[0].mxu0
          %v2116 = vadd.f32 %v1927, %v2115
          %v2117 = vpop.f32.mrb[0].mxu0
          %v2118 = vpop.f32.mrb[0].mxu0
          %v2119 = vadd.f32 %v1927, %v2118
          %v2120 = vpop.f32.mrb[0].mxu0
          %2121 = vmatprep.mubr.bf16.mxu0 %v2022
          %2122 = vmatmul.mubr.bf16.gmra.mrb[0].mxu0 %v2021
          %v2123 = vpop.f32.mrb[0].mxu0
          %v2124 = vadd.f32 %v1927, %v2123
          %v2125 = vpop.f32.mrb[0].mxu0
          %v2126 = vpop.f32.mrb[0].mxu0
          %v2127 = vadd.f32 %v1927, %v2126
          %v2128 = vpop.f32.mrb[0].mxu0
          %2129 = vmatprep.mubr.bf16.mxu0 %v2025
          %2130 = vmatmul.mubr.bf16.gmra.mrb[0].mxu0 %v2024
          %v2131 = vpop.f32.mrb[0].mxu0
          %v2132 = vadd.f32 %v1927, %v2131
          %v2133 = vpop.f32.mrb[0].mxu0
          %v2134 = vpop.f32.mrb[0].mxu0
          %v2135 = vadd.f32 %v1927, %v2134
          %v2136 = vpop.f32.mrb[0].mxu0
          %2137 = vmatprep.mubr.bf16.mxu0 %v2028
          %2138 = vmatmul.mubr.bf16.gmra.mrb[0].mxu0 %v2027
          %v2139 = vpop.f32.mrb[0].mxu0
          %v2140 = vadd.f32 %v1927, %v2139
          %v2141 = vpop.f32.mrb[0].mxu0
          %v2142 = vpop.f32.mrb[0].mxu0
          %v2143 = vadd.f32 %v1927, %v2142
          %v2144 = vpop.f32.mrb[0].mxu0
          %2145 = vmatprep.mubr.bf16.mxu0 %v2031
          %2146 = vmatmul.mubr.bf16.gmra.mrb[0].mxu0 %v2030
          %v2147 = vpop.f32.mrb[0].mxu0
          %v2148 = vadd.f32 %v1927, %v2147
          %v2149 = vpop.f32.mrb[0].mxu0
          %v2150 = vpop.f32.mrb[0].mxu0
          %v2151 = vadd.f32 %v1927, %v2150
          %v2152 = vpop.f32.mrb[0].mxu0
          %2153 = vdwg.mxu0
          %2154 = vmatprep.subr.bf16.mxu0 0
          %2155 = vmatpush1.bf16.msra.mxu0 %v1914
          %2156 = vmatprep.subr.bf16.mxu0 0
          %2157 = vmatpush1.bf16.msra.mxu0 %v1915
          %2158 = vmatprep.subr.bf16.mxu0 0
          %2159 = vmatpush1.bf16.msra.mxu0 %v1916
          %2160 = vmatprep.subr.bf16.mxu0 0
          %2161 = vmatpush1.bf16.msra.mxu0 %v1917
          %2162 = vmatprep.subr.bf16.mxu0 0
          %2163 = vmatpush1.bf16.msra.mxu0 %v1918
          %2164 = vmatprep.subr.bf16.mxu0 0
          %2165 = vmatpush1.bf16.msra.mxu0 %v1919
          %2166 = vmatprep.subr.bf16.mxu0 0
          %2167 = vmatpush1.bf16.msra.mxu0 %v1920
          %2168 = vmatprep.subr.bf16.mxu0 0
          %2169 = vmatpush1.bf16.msra.mxu0 %v1921
          %2170 = vmatprep.subr.bf16.mxu0 0
          %2171 = vmatpush1.bf16.msra.mxu0 0
          %2172 = vmatprep.subr.bf16.mxu0 0
          %2173 = vmatpush1.bf16.msra.mxu0 0
          %2174 = vmatprep.subr.bf16.mxu0 0
          %2175 = vmatpush1.bf16.msra.mxu0 0
          %2176 = vmatprep.subr.bf16.mxu0 0
          %2177 = vmatpush1.bf16.msra.mxu0 0
          %2178 = vmatprep.subr.bf16.mxu0 0
          %2179 = vmatpush1.bf16.msra.mxu0 0
          %2180 = vmatprep.subr.bf16.mxu0 0
          %2181 = vmatpush1.bf16.msra.mxu0 0
          %2182 = vmatprep.subr.bf16.mxu0 0
          %2183 = vmatpush1.bf16.msra.mxu0 0
          %2184 = vmatprep.subr.bf16.mxu0 0
          %2185 = vmatpush1.bf16.msra.mxu0 0
          %2186 = vmatprep.mubr.bf16.mxu0 0
          %2187 = vmatmul.mubr.bf16.gmra.mrb[0].mxu0 %v2011
          %v2188 = vpop.f32.mrb[0].mxu0
          %v2189 = vadd.f32 %v2092, %v2188
          %v2190 = vpop.f32.mrb[0].mxu0
          %v2191 = vpop.f32.mrb[0].mxu0
          %v2192 = vadd.f32 %v2095, %v2191
          %v2193 = vpop.f32.mrb[0].mxu0
          %2194 = vmatprep.mubr.bf16.mxu0 0
          %2195 = vmatmul.mubr.bf16.gmra.mrb[0].mxu0 %v2014
          %v2196 = vpop.f32.mrb[0].mxu0
          %v2197 = vadd.f32 %v2100, %v2196
          %v2198 = vpop.f32.mrb[0].mxu0
          %v2199 = vpop.f32.mrb[0].mxu0
          %v2200 = vadd.f32 %v2103, %v2199
          %v2201 = vpop.f32.mrb[0].mxu0
          %2202 = vmatprep.mubr.bf16.mxu0 0
          %2203 = vmatmul.mubr.bf16.gmra.mrb[0].mxu0 %v2017
          %v2204 = vpop.f32.mrb[0].mxu0
          %v2205 = vadd.f32 %v2108, %v2204
          %v2206 = vpop.f32.mrb[0].mxu0
          %v2207 = vpop.f32.mrb[0].mxu0
          %v2208 = vadd.f32 %v2111, %v2207
          %v2209 = vpop.f32.mrb[0].mxu0
          %2210 = vmatprep.mubr.bf16.mxu0 0
          %2211 = vmatmul.mubr.bf16.gmra.mrb[0].mxu0 %v2020
          %v2212 = vpop.f32.mrb[0].mxu0
          %v2213 = vadd.f32 %v2116, %v2212
          %v2214 = vpop.f32.mrb[0].mxu0
          %v2215 = vpop.f32.mrb[0].mxu0
          %v2216 = vadd.f32 %v2119, %v2215
          %v2217 = vpop.f32.mrb[0].mxu0
          %2218 = vmatprep.mubr.bf16.mxu0 0
          %2219 = vmatmul.mubr.bf16.gmra.mrb[0].mxu0 %v2023
          %v2220 = vpop.f32.mrb[0].mxu0
          %v2221 = vadd.f32 %v2124, %v2220
          %v2222 = vpop.f32.mrb[0].mxu0
          %v2223 = vpop.f32.mrb[0].mxu0
          %v2224 = vadd.f32 %v2127, %v2223
          %v2225 = vpop.f32.mrb[0].mxu0
          %2226 = vmatprep.mubr.bf16.mxu0 0
          %2227 = vmatmul.mubr.bf16.gmra.mrb[0].mxu0 %v2026
          %v2228 = vpop.f32.mrb[0].mxu0
          %v2229 = vadd.f32 %v2132, %v2228
          %v2230 = vpop.f32.mrb[0].mxu0
          %v2231 = vpop.f32.mrb[0].mxu0
          %v2232 = vadd.f32 %v2135, %v2231
          %v2233 = vpop.f32.mrb[0].mxu0
          %2234 = vmatprep.mubr.bf16.mxu0 0
          %2235 = vmatmul.mubr.bf16.gmra.mrb[0].mxu0 %v2029
          %v2236 = vpop.f32.mrb[0].mxu0
          %v2237 = vadd.f32 %v2140, %v2236
          %v2238 = vpop.f32.mrb[0].mxu0
          %v2239 = vpop.f32.mrb[0].mxu0
          %v2240 = vadd.f32 %v2143, %v2239
          %v2241 = vpop.f32.mrb[0].mxu0
          %2242 = vmatprep.mubr.bf16.mxu0 0
          %2243 = vmatmul.mubr.bf16.gmra.mrb[0].mxu0 %v2032
          %v2244 = vpop.f32.mrb[0].mxu0
          %v2245 = vadd.f32 %v2148, %v2244
          %v2246 = vpop.f32.mrb[0].mxu0
          %v2247 = vpop.f32.mrb[0].mxu0
          %v2248 = vadd.f32 %v2151, %v2247
          %v2249 = vpop.f32.mrb[0].mxu0
          %2250 = vdwg.mxu0
          %v2251 = vmax.f32 %v2189, 0.0
          %v2252 = vmax.f32 %v2192, 0.0
          %v2253 = vmax.f32 %v2197, 0.0
          %v2254 = vmax.f32 %v2200, 0.0
          %v2255 = vmax.f32 %v2205, 0.0
          %v2256 = vmax.f32 %v2208, 0.0
          %v2257 = vmax.f32 %v2213, 0.0
          %v2258 = vmax.f32 %v2216, 0.0
          %v2259 = vmax.f32 %v2221, 0.0
          %v2260 = vmax.f32 %v2224, 0.0
          %v2261 = vmax.f32 %v2229, 0.0
          %v2262 = vmax.f32 %v2232, 0.0
          %v2263 = vmax.f32 %v2237, 0.0
          %v2264 = vmax.f32 %v2240, 0.0
          %v2265 = vmax.f32 %v2245, 0.0
          %v2266 = vmax.f32 %v2248, 0.0
          %v2267 = vpack.c.bf16 %v2252, %v2251
          %v2268 = vpack.c.bf16 %v2254, %v2253
          %v2269 = vpack.c.bf16 %v2256, %v2255
          %v2270 = vpack.c.bf16 %v2258, %v2257
          %v2271 = vpack.c.bf16 %v2260, %v2259
          %v2272 = vpack.c.bf16 %v2262, %v2261
          %v2273 = vpack.c.bf16 %v2264, %v2263
          %v2274 = vpack.c.bf16 %v2266, %v2265
          %s2275 = scalar_lea.vmem [#allocation2], 128
          %2276 = vst [vmem:[%s2275] sm:$0xff] %v2267
          %2277 = vst [vmem:[%s2275 + $0x8] sm:$0xff] %v2268
          %2278 = vst [vmem:[%s2275 + $0x10] sm:$0xff] %v2269
          %2279 = vst [vmem:[%s2275 + $0x18] sm:$0xff] %v2270
          %2280 = vst [vmem:[%s2275 + $0x20] sm:$0xff] %v2271
          %2281 = vst [vmem:[%s2275 + $0x28] sm:$0xff] %v2272
          %2282 = vst [vmem:[%s2275 + $0x30] sm:$0xff] %v2273
          %2283 = vst [vmem:[%s2275 + $0x38] sm:$0xff] %v2274
          %v2284 = vld [vmem:[#allocation2] sm:$0xff]
          %v2285 = vld [vmem:[#allocation2 + $0x8] sm:$0xff]
          %v2286 = vld [vmem:[#allocation2 + $0x10] sm:$0xff]
          %v2287 = vld [vmem:[#allocation2 + $0x18] sm:$0xff]
          %v2288 = vld [vmem:[#allocation2 + $0x20] sm:$0xff]
          %v2289 = vld [vmem:[#allocation2 + $0x28] sm:$0xff]
          %v2290 = vld [vmem:[#allocation2 + $0x30] sm:$0xff]
          %v2291 = vld [vmem:[#allocation2 + $0x38] sm:$0xff]
          %v2292 = vld [vmem:[#allocation10] sm:$0xf]
          %v2293 = vld [vmem:[#allocation10 + $0x4] sm:$0xf]
          %v2294 = vld [vmem:[#allocation10 + $0x8] sm:$0xf]
          %v2295 = vld [vmem:[#allocation10 + $0xc] sm:$0xf]
          %v2296 = vld [vmem:[#allocation10 + $0x10] sm:$0xf]
          %v2297 = vld [vmem:[#allocation10 + $0x14] sm:$0xf]
          %v2298 = vld [vmem:[#allocation10 + $0x18] sm:$0xf]
          %v2299 = vld [vmem:[#allocation10 + $0x1c] sm:$0xf]
          %v2300 = vld [vmem:[#allocation10 + $0x20] sm:$0xf]
          %v2301 = vld [vmem:[#allocation10 + $0x24] sm:$0xf]
          %v2302 = vld [vmem:[#allocation10 + $0x28] sm:$0xf]
          %v2303 = vld [vmem:[#allocation10 + $0x2c] sm:$0xf]
          %v2304 = vld [vmem:[#allocation10 + $0x30] sm:$0xf]
          %v2305 = vld [vmem:[#allocation10 + $0x34] sm:$0xf]
          %v2306 = vld [vmem:[#allocation10 + $0x38] sm:$0xf]
          %v2307 = vld [vmem:[#allocation10 + $0x3c] sm:$0xf]
          %v2324 = vunpack.c.l.b16 %v2292
          %v2325 = vunpack.c.l.b16 %v2293
          %v2326 = vunpack.c.l.b16 %v2294
          %v2327 = vunpack.c.l.b16 %v2295
          %v2328 = vunpack.c.l.b16 %v2296
          %v2329 = vunpack.c.l.b16 %v2297
          %v2330 = vunpack.c.l.b16 %v2298
          %v2331 = vunpack.c.l.b16 %v2299
          %v2332 = vunpack.c.l.b16 %v2300
          %v2333 = vunpack.c.l.b16 %v2301
          %v2334 = vunpack.c.l.b16 %v2302
          %v2335 = vunpack.c.l.b16 %v2303
          %v2336 = vunpack.c.l.b16 %v2304
          %v2337 = vunpack.c.l.b16 %v2305
          %v2338 = vunpack.c.l.b16 %v2306
          %v2339 = vunpack.c.l.b16 %v2307
          %v2340 = vpack.c.b16 %v2325, %v2324
          %v2341 = vpack.c.b16 %v2327, %v2326
          %v2342 = vpack.c.b16 %v2329, %v2328
          %v2343 = vpack.c.b16 %v2331, %v2330
          %v2344 = vpack.c.b16 %v2333, %v2332
          %v2345 = vpack.c.b16 %v2335, %v2334
          %v2346 = vpack.c.b16 %v2337, %v2336
          %v2347 = vpack.c.b16 %v2339, %v2338
          %2356 = vmatprep.subr.bf16.mxu0 0
          %2357 = vmatpush1.bf16.msra.mxu0 %v2340
          %2358 = vmatprep.subr.bf16.mxu0 0
          %2359 = vmatpush1.bf16.msra.mxu0 %v2341
          %2360 = vmatprep.subr.bf16.mxu0 0
          %2361 = vmatpush1.bf16.msra.mxu0 %v2342
          %2362 = vmatprep.subr.bf16.mxu0 0
          %2363 = vmatpush1.bf16.msra.mxu0 %v2343
          %2364 = vmatprep.subr.bf16.mxu0 0
          %2365 = vmatpush1.bf16.msra.mxu0 %v2344
          %2366 = vmatprep.subr.bf16.mxu0 0
          %2367 = vmatpush1.bf16.msra.mxu0 %v2345
          %2368 = vmatprep.subr.bf16.mxu0 0
          %2369 = vmatpush1.bf16.msra.mxu0 %v2346
          %2370 = vmatprep.subr.bf16.mxu0 0
          %2371 = vmatpush1.bf16.msra.mxu0 %v2347
          %2372 = vmatprep.subr.bf16.mxu0 0
          %2373 = vmatpush1.bf16.msra.mxu0 0
          %2374 = vmatprep.subr.bf16.mxu0 0
          %2375 = vmatpush1.bf16.msra.mxu0 0
          %2376 = vmatprep.subr.bf16.mxu0 0
          %2377 = vmatpush1.bf16.msra.mxu0 0
          %2378 = vmatprep.subr.bf16.mxu0 0
          %2379 = vmatpush1.bf16.msra.mxu0 0
          %2380 = vmatprep.subr.bf16.mxu0 0
          %2381 = vmatpush1.bf16.msra.mxu0 0
          %2382 = vmatprep.subr.bf16.mxu0 0
          %2383 = vmatpush1.bf16.msra.mxu0 0
          %2384 = vmatprep.subr.bf16.mxu0 0
          %2385 = vmatpush1.bf16.msra.mxu0 0
          %2386 = vmatprep.subr.bf16.mxu0 0
          %2387 = vmatpush1.bf16.msra.mxu0 0
          %2388 = vmatprep.mubr.bf16.mxu0 0
          %2389 = vmatmul.mubr.bf16.gmra.mrb[0].mxu0 %v2284
          %v2390 = vpop.f32.mrb[0].mxu0
          %v2391 = vadd.f32 0.0, %v2390
          %v2392 = vpop.f32.mrb[0].mxu0
          %v2393 = vpop.f32.mrb[0].mxu0
          %v2394 = vadd.f32 0.0, %v2393
          %v2395 = vpop.f32.mrb[0].mxu0
          %2396 = vmatprep.mubr.bf16.mxu0 0
          %2397 = vmatmul.mubr.bf16.gmra.mrb[0].mxu0 %v2285
          %v2398 = vpop.f32.mrb[0].mxu0
          %v2399 = vadd.f32 0.0, %v2398
          %v2400 = vpop.f32.mrb[0].mxu0
          %v2401 = vpop.f32.mrb[0].mxu0
          %v2402 = vadd.f32 0.0, %v2401
          %v2403 = vpop.f32.mrb[0].mxu0
          %2404 = vmatprep.mubr.bf16.mxu0 0
          %2405 = vmatmul.mubr.bf16.gmra.mrb[0].mxu0 %v2286
          %v2406 = vpop.f32.mrb[0].mxu0
          %v2407 = vadd.f32 0.0, %v2406
          %v2408 = vpop.f32.mrb[0].mxu0
          %v2409 = vpop.f32.mrb[0].mxu0
          %v2410 = vadd.f32 0.0, %v2409
          %v2411 = vpop.f32.mrb[0].mxu0
          %2412 = vmatprep.mubr.bf16.mxu0 0
          %2413 = vmatmul.mubr.bf16.gmra.mrb[0].mxu0 %v2287
          %v2414 = vpop.f32.mrb[0].mxu0
          %v2415 = vadd.f32 0.0, %v2414
          %v2416 = vpop.f32.mrb[0].mxu0
          %v2417 = vpop.f32.mrb[0].mxu0
          %v2418 = vadd.f32 0.0, %v2417
          %v2419 = vpop.f32.mrb[0].mxu0
          %2420 = vmatprep.mubr.bf16.mxu0 0
          %2421 = vmatmul.mubr.bf16.gmra.mrb[0].mxu0 %v2288
          %v2422 = vpop.f32.mrb[0].mxu0
          %v2423 = vadd.f32 0.0, %v2422
          %v2424 = vpop.f32.mrb[0].mxu0
          %v2425 = vpop.f32.mrb[0].mxu0
          %v2426 = vadd.f32 0.0, %v2425
          %v2427 = vpop.f32.mrb[0].mxu0
          %2428 = vmatprep.mubr.bf16.mxu0 0
          %2429 = vmatmul.mubr.bf16.gmra.mrb[0].mxu0 %v2289
          %v2430 = vpop.f32.mrb[0].mxu0
          %v2431 = vadd.f32 0.0, %v2430
          %v2432 = vpop.f32.mrb[0].mxu0
          %v2433 = vpop.f32.mrb[0].mxu0
          %v2434 = vadd.f32 0.0, %v2433
          %v2435 = vpop.f32.mrb[0].mxu0
          %2436 = vmatprep.mubr.bf16.mxu0 0
          %2437 = vmatmul.mubr.bf16.gmra.mrb[0].mxu0 %v2290
          %v2438 = vpop.f32.mrb[0].mxu0
          %v2439 = vadd.f32 0.0, %v2438
          %v2440 = vpop.f32.mrb[0].mxu0
          %v2441 = vpop.f32.mrb[0].mxu0
          %v2442 = vadd.f32 0.0, %v2441
          %v2443 = vpop.f32.mrb[0].mxu0
          %2444 = vmatprep.mubr.bf16.mxu0 0
          %2445 = vmatmul.mubr.bf16.gmra.mrb[0].mxu0 %v2291
          %v2446 = vpop.f32.mrb[0].mxu0
          %v2447 = vadd.f32 0.0, %v2446
          %v2448 = vpop.f32.mrb[0].mxu0
          %v2449 = vpop.f32.mrb[0].mxu0
          %v2450 = vadd.f32 0.0, %v2449
          %v2451 = vpop.f32.mrb[0].mxu0
          %2452 = vdwg.mxu0
          %v2453 = vpack.c.bf16 %v2394, %v2391
          %v2454 = vpack.c.bf16 %v2402, %v2399
          %v2455 = vpack.c.bf16 %v2410, %v2407
          %v2456 = vpack.c.bf16 %v2418, %v2415
          %v2457 = vpack.c.bf16 %v2426, %v2423
          %v2458 = vpack.c.bf16 %v2434, %v2431
          %v2459 = vpack.c.bf16 %v2442, %v2439
          %v2460 = vpack.c.bf16 %v2450, %v2447
          %2461 = vst [vmem:[#allocation3] sm:$0xff] %v2453
          %2462 = vst [vmem:[#allocation3 + $0x8] sm:$0xff] %v2454
          %2463 = vst [vmem:[#allocation3 + $0x10] sm:$0xff] %v2455
          %2464 = vst [vmem:[#allocation3 + $0x18] sm:$0xff] %v2456
          %2465 = vst [vmem:[#allocation3 + $0x20] sm:$0xff] %v2457
          %2466 = vst [vmem:[#allocation3 + $0x28] sm:$0xff] %v2458
          %2467 = vst [vmem:[#allocation3 + $0x30] sm:$0xff] %v2459
          %2468 = vst [vmem:[#allocation3 + $0x38] sm:$0xff] %v2460
          %v2469 = vld [vmem:[%s1854] sm:$0xff]
          %v2470 = vld [vmem:[%s1854 + $0x8] sm:$0xff]
          %v2471 = vld [vmem:[%s1854 + $0x10] sm:$0xff]
          %v2472 = vld [vmem:[%s1854 + $0x18] sm:$0xff]
          %v2473 = vld [vmem:[%s1854 + $0x20] sm:$0xff]
          %v2474 = vld [vmem:[%s1854 + $0x28] sm:$0xff]
          %v2475 = vld [vmem:[%s1854 + $0x30] sm:$0xff]
          %v2476 = vld [vmem:[%s1854 + $0x38] sm:$0xff]
          %v2477 = vld [vmem:[#allocation10] sm:$0xf]
          %v2478 = vld [vmem:[#allocation10 + $0x4] sm:$0xf]
          %v2479 = vld [vmem:[#allocation10 + $0x8] sm:$0xf]
          %v2480 = vld [vmem:[#allocation10 + $0xc] sm:$0xf]
          %v2481 = vld [vmem:[#allocation10 + $0x10] sm:$0xf]
          %v2482 = vld [vmem:[#allocation10 + $0x14] sm:$0xf]
          %v2483 = vld [vmem:[#allocation10 + $0x18] sm:$0xf]
          %v2484 = vld [vmem:[#allocation10 + $0x1c] sm:$0xf]
          %v2485 = vld [vmem:[#allocation10 + $0x20] sm:$0xf]
          %v2486 = vld [vmem:[#allocation10 + $0x24] sm:$0xf]
          %v2487 = vld [vmem:[#allocation10 + $0x28] sm:$0xf]
          %v2488 = vld [vmem:[#allocation10 + $0x2c] sm:$0xf]
          %v2489 = vld [vmem:[#allocation10 + $0x30] sm:$0xf]
          %v2490 = vld [vmem:[#allocation10 + $0x34] sm:$0xf]
          %v2491 = vld [vmem:[#allocation10 + $0x38] sm:$0xf]
          %v2492 = vld [vmem:[#allocation10 + $0x3c] sm:$0xf]
          %v2509 = vunpack.c.l.b16 %v2477
          %v2510 = vunpack.c.l.b16 %v2478
          %v2511 = vunpack.c.l.b16 %v2479
          %v2512 = vunpack.c.l.b16 %v2480
          %v2513 = vunpack.c.l.b16 %v2481
          %v2514 = vunpack.c.l.b16 %v2482
          %v2515 = vunpack.c.l.b16 %v2483
          %v2516 = vunpack.c.l.b16 %v2484
          %v2517 = vunpack.c.l.b16 %v2485
          %v2518 = vunpack.c.l.b16 %v2486
          %v2519 = vunpack.c.l.b16 %v2487
          %v2520 = vunpack.c.l.b16 %v2488
          %v2521 = vunpack.c.l.b16 %v2489
          %v2522 = vunpack.c.l.b16 %v2490
          %v2523 = vunpack.c.l.b16 %v2491
          %v2524 = vunpack.c.l.b16 %v2492
          %v2525 = vpack.c.b16 %v2510, %v2509
          %v2526 = vpack.c.b16 %v2512, %v2511
          %v2527 = vpack.c.b16 %v2514, %v2513
          %v2528 = vpack.c.b16 %v2516, %v2515
          %v2529 = vpack.c.b16 %v2518, %v2517
          %v2530 = vpack.c.b16 %v2520, %v2519
          %v2531 = vpack.c.b16 %v2522, %v2521
          %v2532 = vpack.c.b16 %v2524, %v2523
          %2541 = vmatprep.subr.bf16.mxu0 0
          %2542 = vmatpush1.bf16.msra.mxu0 %v2525
          %2543 = vmatprep.subr.bf16.mxu0 0
          %2544 = vmatpush1.bf16.msra.mxu0 %v2526
          %2545 = vmatprep.subr.bf16.mxu0 0
          %2546 = vmatpush1.bf16.msra.mxu0 %v2527
          %2547 = vmatprep.subr.bf16.mxu0 0
          %2548 = vmatpush1.bf16.msra.mxu0 %v2528
          %2549 = vmatprep.subr.bf16.mxu0 0
          %2550 = vmatpush1.bf16.msra.mxu0 %v2529
          %2551 = vmatprep.subr.bf16.mxu0 0
          %2552 = vmatpush1.bf16.msra.mxu0 %v2530
          %2553 = vmatprep.subr.bf16.mxu0 0
          %2554 = vmatpush1.bf16.msra.mxu0 %v2531
          %2555 = vmatprep.subr.bf16.mxu0 0
          %2556 = vmatpush1.bf16.msra.mxu0 %v2532
          %2557 = vmatprep.subr.bf16.mxu0 0
          %2558 = vmatpush1.bf16.msra.mxu0 0
          %2559 = vmatprep.subr.bf16.mxu0 0
          %2560 = vmatpush1.bf16.msra.mxu0 0
          %2561 = vmatprep.subr.bf16.mxu0 0
          %2562 = vmatpush1.bf16.msra.mxu0 0
          %2563 = vmatprep.subr.bf16.mxu0 0
          %2564 = vmatpush1.bf16.msra.mxu0 0
          %2565 = vmatprep.subr.bf16.mxu0 0
          %2566 = vmatpush1.bf16.msra.mxu0 0
          %2567 = vmatprep.subr.bf16.mxu0 0
          %2568 = vmatpush1.bf16.msra.mxu0 0
          %2569 = vmatprep.subr.bf16.mxu0 0
          %2570 = vmatpush1.bf16.msra.mxu0 0
          %2571 = vmatprep.subr.bf16.mxu0 0
          %2572 = vmatpush1.bf16.msra.mxu0 0
          %2573 = vmatprep.mubr.bf16.mxu0 0
          %2574 = vmatmul.mubr.bf16.gmra.mrb[0].mxu0 %v2469
          %v2575 = vpop.f32.mrb[0].mxu0
          %v2576 = vadd.f32 0.0, %v2575
          %v2577 = vpop.f32.mrb[0].mxu0
          %v2578 = vpop.f32.mrb[0].mxu0
          %v2579 = vadd.f32 0.0, %v2578
          %v2580 = vpop.f32.mrb[0].mxu0
          %2581 = vmatprep.mubr.bf16.mxu0 0
          %2582 = vmatmul.mubr.bf16.gmra.mrb[0].mxu0 %v2470
          %v2583 = vpop.f32.mrb[0].mxu0
          %v2584 = vadd.f32 0.0, %v2583
          %v2585 = vpop.f32.mrb[0].mxu0
          %v2586 = vpop.f32.mrb[0].mxu0
          %v2587 = vadd.f32 0.0, %v2586
          %v2588 = vpop.f32.mrb[0].mxu0
          %2589 = vmatprep.mubr.bf16.mxu0 0
          %2590 = vmatmul.mubr.bf16.gmra.mrb[0].mxu0 %v2471
          %v2591 = vpop.f32.mrb[0].mxu0
          %v2592 = vadd.f32 0.0, %v2591
          %v2593 = vpop.f32.mrb[0].mxu0
          %v2594 = vpop.f32.mrb[0].mxu0
          %v2595 = vadd.f32 0.0, %v2594
          %v2596 = vpop.f32.mrb[0].mxu0
          %2597 = vmatprep.mubr.bf16.mxu0 0
          %2598 = vmatmul.mubr.bf16.gmra.mrb[0].mxu0 %v2472
          %v2599 = vpop.f32.mrb[0].mxu0
          %v2600 = vadd.f32 0.0, %v2599
          %v2601 = vpop.f32.mrb[0].mxu0
          %v2602 = vpop.f32.mrb[0].mxu0
          %v2603 = vadd.f32 0.0, %v2602
          %v2604 = vpop.f32.mrb[0].mxu0
          %2605 = vmatprep.mubr.bf16.mxu0 0
          %2606 = vmatmul.mubr.bf16.gmra.mrb[0].mxu0 %v2473
          %v2607 = vpop.f32.mrb[0].mxu0
          %v2608 = vadd.f32 0.0, %v2607
          %v2609 = vpop.f32.mrb[0].mxu0
          %v2610 = vpop.f32.mrb[0].mxu0
          %v2611 = vadd.f32 0.0, %v2610
          %v2612 = vpop.f32.mrb[0].mxu0
          %2613 = vmatprep.mubr.bf16.mxu0 0
          %2614 = vmatmul.mubr.bf16.gmra.mrb[0].mxu0 %v2474
          %v2615 = vpop.f32.mrb[0].mxu0
          %v2616 = vadd.f32 0.0, %v2615
          %v2617 = vpop.f32.mrb[0].mxu0
          %v2618 = vpop.f32.mrb[0].mxu0
          %v2619 = vadd.f32 0.0, %v2618
          %v2620 = vpop.f32.mrb[0].mxu0
          %2621 = vmatprep.mubr.bf16.mxu0 0
          %2622 = vmatmul.mubr.bf16.gmra.mrb[0].mxu0 %v2475
          %v2623 = vpop.f32.mrb[0].mxu0
          %v2624 = vadd.f32 0.0, %v2623
          %v2625 = vpop.f32.mrb[0].mxu0
          %v2626 = vpop.f32.mrb[0].mxu0
          %v2627 = vadd.f32 0.0, %v2626
          %v2628 = vpop.f32.mrb[0].mxu0
          %2629 = vmatprep.mubr.bf16.mxu0 0
          %2630 = vmatmul.mubr.bf16.gmra.mrb[0].mxu0 %v2476
          %v2631 = vpop.f32.mrb[0].mxu0
          %v2632 = vadd.f32 0.0, %v2631
          %v2633 = vpop.f32.mrb[0].mxu0
          %v2634 = vpop.f32.mrb[0].mxu0
          %v2635 = vadd.f32 0.0, %v2634
          %v2636 = vpop.f32.mrb[0].mxu0
          %2637 = vdwg.mxu0
          %v2638 = vpack.c.bf16 %v2579, %v2576
          %v2639 = vpack.c.bf16 %v2587, %v2584
          %v2640 = vpack.c.bf16 %v2595, %v2592
          %v2641 = vpack.c.bf16 %v2603, %v2600
          %v2642 = vpack.c.bf16 %v2611, %v2608
          %v2643 = vpack.c.bf16 %v2619, %v2616
          %v2644 = vpack.c.bf16 %v2627, %v2624
          %v2645 = vpack.c.bf16 %v2635, %v2632
          %2646 = vst [vmem:[%s770] sm:$0xff] %v2638
          %2647 = vst [vmem:[%s770 + $0x8] sm:$0xff] %v2639
          %2648 = vst [vmem:[%s770 + $0x10] sm:$0xff] %v2640
          %2649 = vst [vmem:[%s770 + $0x18] sm:$0xff] %v2641
          %2650 = vst [vmem:[%s770 + $0x20] sm:$0xff] %v2642
          %2651 = vst [vmem:[%s770 + $0x28] sm:$0xff] %v2643
          %2652 = vst [vmem:[%s770 + $0x30] sm:$0xff] %v2644
          %2653 = vst [vmem:[%s770 + $0x38] sm:$0xff] %v2645
          %v2654 = vld [vmem:[%s2275] sm:$0xff]
          %v2655 = vld [vmem:[%s2275 + $0x8] sm:$0xff]
          %v2656 = vld [vmem:[%s2275 + $0x10] sm:$0xff]
          %v2657 = vld [vmem:[%s2275 + $0x18] sm:$0xff]
          %v2658 = vld [vmem:[%s2275 + $0x20] sm:$0xff]
          %v2659 = vld [vmem:[%s2275 + $0x28] sm:$0xff]
          %v2660 = vld [vmem:[%s2275 + $0x30] sm:$0xff]
          %v2661 = vld [vmem:[%s2275 + $0x38] sm:$0xff]
          %v2662 = vld [vmem:[#allocation10] sm:$0xf]
          %v2663 = vld [vmem:[#allocation10 + $0x4] sm:$0xf]
          %v2664 = vld [vmem:[#allocation10 + $0x8] sm:$0xf]
          %v2665 = vld [vmem:[#allocation10 + $0xc] sm:$0xf]
          %v2666 = vld [vmem:[#allocation10 + $0x10] sm:$0xf]
          %v2667 = vld [vmem:[#allocation10 + $0x14] sm:$0xf]
          %v2668 = vld [vmem:[#allocation10 + $0x18] sm:$0xf]
          %v2669 = vld [vmem:[#allocation10 + $0x1c] sm:$0xf]
          %v2670 = vld [vmem:[#allocation10 + $0x20] sm:$0xf]
          %v2671 = vld [vmem:[#allocation10 + $0x24] sm:$0xf]
          %v2672 = vld [vmem:[#allocation10 + $0x28] sm:$0xf]
          %v2673 = vld [vmem:[#allocation10 + $0x2c] sm:$0xf]
          %v2674 = vld [vmem:[#allocation10 + $0x30] sm:$0xf]
          %v2675 = vld [vmem:[#allocation10 + $0x34] sm:$0xf]
          %v2676 = vld [vmem:[#allocation10 + $0x38] sm:$0xf]
          %v2677 = vld [vmem:[#allocation10 + $0x3c] sm:$0xf]
          %v2694 = vunpack.c.l.b16 %v2662
          %v2695 = vunpack.c.l.b16 %v2663
          %v2696 = vunpack.c.l.b16 %v2664
          %v2697 = vunpack.c.l.b16 %v2665
          %v2698 = vunpack.c.l.b16 %v2666
          %v2699 = vunpack.c.l.b16 %v2667
          %v2700 = vunpack.c.l.b16 %v2668
          %v2701 = vunpack.c.l.b16 %v2669
          %v2702 = vunpack.c.l.b16 %v2670
          %v2703 = vunpack.c.l.b16 %v2671
          %v2704 = vunpack.c.l.b16 %v2672
          %v2705 = vunpack.c.l.b16 %v2673
          %v2706 = vunpack.c.l.b16 %v2674
          %v2707 = vunpack.c.l.b16 %v2675
          %v2708 = vunpack.c.l.b16 %v2676
          %v2709 = vunpack.c.l.b16 %v2677
          %v2710 = vpack.c.b16 %v2695, %v2694
          %v2711 = vpack.c.b16 %v2697, %v2696
          %v2712 = vpack.c.b16 %v2699, %v2698
          %v2713 = vpack.c.b16 %v2701, %v2700
          %v2714 = vpack.c.b16 %v2703, %v2702
          %v2715 = vpack.c.b16 %v2705, %v2704
          %v2716 = vpack.c.b16 %v2707, %v2706
          %v2717 = vpack.c.b16 %v2709, %v2708
          %2726 = vmatprep.subr.bf16.mxu0 0
          %2727 = vmatpush1.bf16.msra.mxu0 %v2710
          %2728 = vmatprep.subr.bf16.mxu0 0
          %2729 = vmatpush1.bf16.msra.mxu0 %v2711
          %2730 = vmatprep.subr.bf16.mxu0 0
          %2731 = vmatpush1.bf16.msra.mxu0 %v2712
          %2732 = vmatprep.subr.bf16.mxu0 0
          %2733 = vmatpush1.bf16.msra.mxu0 %v2713
          %2734 = vmatprep.subr.bf16.mxu0 0
          %2735 = vmatpush1.bf16.msra.mxu0 %v2714
          %2736 = vmatprep.subr.bf16.mxu0 0
          %2737 = vmatpush1.bf16.msra.mxu0 %v2715
          %2738 = vmatprep.subr.bf16.mxu0 0
          %2739 = vmatpush1.bf16.msra.mxu0 %v2716
          %2740 = vmatprep.subr.bf16.mxu0 0
          %2741 = vmatpush1.bf16.msra.mxu0 %v2717
          %2742 = vmatprep.subr.bf16.mxu0 0
          %2743 = vmatpush1.bf16.msra.mxu0 0
          %2744 = vmatprep.subr.bf16.mxu0 0
          %2745 = vmatpush1.bf16.msra.mxu0 0
          %2746 = vmatprep.subr.bf16.mxu0 0
          %2747 = vmatpush1.bf16.msra.mxu0 0
          %2748 = vmatprep.subr.bf16.mxu0 0
          %2749 = vmatpush1.bf16.msra.mxu0 0
          %2750 = vmatprep.subr.bf16.mxu0 0
          %2751 = vmatpush1.bf16.msra.mxu0 0
          %2752 = vmatprep.subr.bf16.mxu0 0
          %2753 = vmatpush1.bf16.msra.mxu0 0
          %2754 = vmatprep.subr.bf16.mxu0 0
          %2755 = vmatpush1.bf16.msra.mxu0 0
          %2756 = vmatprep.subr.bf16.mxu0 0
          %2757 = vmatpush1.bf16.msra.mxu0 0
          %2758 = vmatprep.mubr.bf16.mxu0 0
          %2759 = vmatmul.mubr.bf16.gmra.mrb[0].mxu0 %v2654
          %v2760 = vpop.f32.mrb[0].mxu0
          %v2761 = vadd.f32 0.0, %v2760
          %v2762 = vpop.f32.mrb[0].mxu0
          %v2763 = vpop.f32.mrb[0].mxu0
          %v2764 = vadd.f32 0.0, %v2763
          %v2765 = vpop.f32.mrb[0].mxu0
          %2766 = vmatprep.mubr.bf16.mxu0 0
          %2767 = vmatmul.mubr.bf16.gmra.mrb[0].mxu0 %v2655
          %v2768 = vpop.f32.mrb[0].mxu0
          %v2769 = vadd.f32 0.0, %v2768
          %v2770 = vpop.f32.mrb[0].mxu0
          %v2771 = vpop.f32.mrb[0].mxu0
          %v2772 = vadd.f32 0.0, %v2771
          %v2773 = vpop.f32.mrb[0].mxu0
          %2774 = vmatprep.mubr.bf16.mxu0 0
          %2775 = vmatmul.mubr.bf16.gmra.mrb[0].mxu0 %v2656
          %v2776 = vpop.f32.mrb[0].mxu0
          %v2777 = vadd.f32 0.0, %v2776
          %v2778 = vpop.f32.mrb[0].mxu0
          %v2779 = vpop.f32.mrb[0].mxu0
          %v2780 = vadd.f32 0.0, %v2779
          %v2781 = vpop.f32.mrb[0].mxu0
          %2782 = vmatprep.mubr.bf16.mxu0 0
          %2783 = vmatmul.mubr.bf16.gmra.mrb[0].mxu0 %v2657
          %v2784 = vpop.f32.mrb[0].mxu0
          %v2785 = vadd.f32 0.0, %v2784
          %v2786 = vpop.f32.mrb[0].mxu0
          %v2787 = vpop.f32.mrb[0].mxu0
          %v2788 = vadd.f32 0.0, %v2787
          %v2789 = vpop.f32.mrb[0].mxu0
          %2790 = vmatprep.mubr.bf16.mxu0 0
          %2791 = vmatmul.mubr.bf16.gmra.mrb[0].mxu0 %v2658
          %v2792 = vpop.f32.mrb[0].mxu0
          %v2793 = vadd.f32 0.0, %v2792
          %v2794 = vpop.f32.mrb[0].mxu0
          %v2795 = vpop.f32.mrb[0].mxu0
          %v2796 = vadd.f32 0.0, %v2795
          %v2797 = vpop.f32.mrb[0].mxu0
          %2798 = vmatprep.mubr.bf16.mxu0 0
          %2799 = vmatmul.mubr.bf16.gmra.mrb[0].mxu0 %v2659
          %v2800 = vpop.f32.mrb[0].mxu0
          %v2801 = vadd.f32 0.0, %v2800
          %v2802 = vpop.f32.mrb[0].mxu0
          %v2803 = vpop.f32.mrb[0].mxu0
          %v2804 = vadd.f32 0.0, %v2803
          %v2805 = vpop.f32.mrb[0].mxu0
          %2806 = vmatprep.mubr.bf16.mxu0 0
          %2807 = vmatmul.mubr.bf16.gmra.mrb[0].mxu0 %v2660
          %v2808 = vpop.f32.mrb[0].mxu0
          %v2809 = vadd.f32 0.0, %v2808
          %v2810 = vpop.f32.mrb[0].mxu0
          %v2811 = vpop.f32.mrb[0].mxu0
          %v2812 = vadd.f32 0.0, %v2811
          %v2813 = vpop.f32.mrb[0].mxu0
          %2814 = vmatprep.mubr.bf16.mxu0 0
          %2815 = vmatmul.mubr.bf16.gmra.mrb[0].mxu0 %v2661
          %v2816 = vpop.f32.mrb[0].mxu0
          %v2817 = vadd.f32 0.0, %v2816
          %v2818 = vpop.f32.mrb[0].mxu0
          %v2819 = vpop.f32.mrb[0].mxu0
          %v2820 = vadd.f32 0.0, %v2819
          %v2821 = vpop.f32.mrb[0].mxu0
          %2822 = vdwg.mxu0
          %v2823 = vpack.c.bf16 %v2764, %v2761
          %v2824 = vpack.c.bf16 %v2772, %v2769
          %v2825 = vpack.c.bf16 %v2780, %v2777
          %v2826 = vpack.c.bf16 %v2788, %v2785
          %v2827 = vpack.c.bf16 %v2796, %v2793
          %v2828 = vpack.c.bf16 %v2804, %v2801
          %v2829 = vpack.c.bf16 %v2812, %v2809
          %v2830 = vpack.c.bf16 %v2820, %v2817
          %2831 = vst [vmem:[%s1013] sm:$0xff] %v2823
          %2832 = vst [vmem:[%s1013 + $0x8] sm:$0xff] %v2824
          %2833 = vst [vmem:[%s1013 + $0x10] sm:$0xff] %v2825
          %2834 = vst [vmem:[%s1013 + $0x18] sm:$0xff] %v2826
          %2835 = vst [vmem:[%s1013 + $0x20] sm:$0xff] %v2827
          %2836 = vst [vmem:[%s1013 + $0x28] sm:$0xff] %v2828
          %2837 = vst [vmem:[%s1013 + $0x30] sm:$0xff] %v2829
          %2838 = vst [vmem:[%s1013 + $0x38] sm:$0xff] %v2830
        $region64: #{tpu_custom_call.1} parent=43 // pred_fallthru
          _
        %s2839 = smul.u32 %s23, 128
        %s2840 = sshra.s32 %s2839, 3
        %s2841 = sand.u32 %s2839, 7
        %s2842 = smul.u32 %s2840, 3
        %s2843 = smul.addr %s2842, 4
        %s2844 = scalar_lea.vmem [#allocation4], %s2843
        %v2845 = vld [vmem:[%s2844] sm:$0xff]
        %v2846 = vld [vmem:[%s2844 + $0x8] sm:$0xf]
        %v2847 = vld [vmem:[%s2844 + $0xc] sm:$0xff]
        %v2848 = vld [vmem:[%s2844 + $0x14] sm:$0xf]
        %v2849 = vld [vmem:[%s2844 + $0x18] sm:$0xff]
        %v2850 = vld [vmem:[%s2844 + $0x20] sm:$0xf]
        %v2851 = vld [vmem:[%s2844 + $0x24] sm:$0xff]
        %v2852 = vld [vmem:[%s2844 + $0x2c] sm:$0xf]
        %v2853 = vld [vmem:[%s2844 + $0x30] sm:$0xff]
        %v2854 = vld [vmem:[%s2844 + $0x38] sm:$0xf]
        %v2855 = vld [vmem:[%s2844 + $0x3c] sm:$0xff]
        %v2856 = vld [vmem:[%s2844 + $0x44] sm:$0xf]
        %v2857 = vld [vmem:[%s2844 + $0x48] sm:$0xff]
        %v2858 = vld [vmem:[%s2844 + $0x50] sm:$0xf]
        %v2859 = vld [vmem:[%s2844 + $0x54] sm:$0xff]
        %v2860 = vld [vmem:[%s2844 + $0x5c] sm:$0xf]
        %v2861 = vld [vmem:[%s2844 + $0x60] sm:$0xff]
        %v2862 = vld [vmem:[%s2844 + $0x68] sm:$0xf]
        %v2863 = vld [vmem:[%s2844 + $0x6c] sm:$0xff]
        %v2864 = vld [vmem:[%s2844 + $0x74] sm:$0xf]
        %v2865 = vld [vmem:[%s2844 + $0x78] sm:$0xff]
        %v2866 = vld [vmem:[%s2844 + $0x80] sm:$0xf]
        %v2867 = vld [vmem:[%s2844 + $0x84] sm:$0xff]
        %v2868 = vld [vmem:[%s2844 + $0x8c] sm:$0xf]
        %v2869 = vld [vmem:[%s2844 + $0x90] sm:$0xff]
        %v2870 = vld [vmem:[%s2844 + $0x98] sm:$0xf]
        %v2871 = vld [vmem:[%s2844 + $0x9c] sm:$0xff]
        %v2872 = vld [vmem:[%s2844 + $0xa4] sm:$0xf]
        %v2873 = vld [vmem:[%s2844 + $0xa8] sm:$0xff]
        %v2874 = vld [vmem:[%s2844 + $0xb0] sm:$0xf]
        %v2875 = vld [vmem:[%s2844 + $0xb4] sm:$0xff]
        %v2876 = vld [vmem:[%s2844 + $0xbc] sm:$0xf]
        %v2877 = vld [vmem:[#allocation3] sm:$0xff]
        %v2878 = vld [vmem:[#allocation3 + $0x8] sm:$0xff]
        %v2879 = vld [vmem:[#allocation3 + $0x10] sm:$0xff]
        %v2880 = vld [vmem:[#allocation3 + $0x18] sm:$0xff]
        %v2881 = vld [vmem:[#allocation3 + $0x20] sm:$0xff]
        %v2882 = vld [vmem:[#allocation3 + $0x28] sm:$0xff]
        %v2883 = vld [vmem:[#allocation3 + $0x30] sm:$0xff]
        %v2884 = vld [vmem:[#allocation3 + $0x38] sm:$0xff]
        %v2885 = vld [vmem:[#allocation3 + $0x40] sm:$0xff]
        %v2886 = vld [vmem:[#allocation3 + $0x48] sm:$0xff]
        %v2887 = vld [vmem:[#allocation3 + $0x50] sm:$0xff]
        %v2888 = vld [vmem:[#allocation3 + $0x58] sm:$0xff]
        %v2889 = vld [vmem:[#allocation3 + $0x60] sm:$0xff]
        %v2890 = vld [vmem:[#allocation3 + $0x68] sm:$0xff]
        %v2891 = vld [vmem:[#allocation3 + $0x70] sm:$0xff]
        %v2892 = vld [vmem:[#allocation3 + $0x78] sm:$0xff]
        %v2893 = vld [vmem:[#allocation3 + $0x80] sm:$0xff]
        %v2894 = vld [vmem:[#allocation3 + $0x88] sm:$0xff]
        %v2895 = vld [vmem:[#allocation3 + $0x90] sm:$0xff]
        %v2896 = vld [vmem:[#allocation3 + $0x98] sm:$0xff]
        %v2897 = vld [vmem:[#allocation3 + $0xa0] sm:$0xff]
        %v2898 = vld [vmem:[#allocation3 + $0xa8] sm:$0xff]
        %v2899 = vld [vmem:[#allocation3 + $0xb0] sm:$0xff]
        %v2900 = vld [vmem:[#allocation3 + $0xb8] sm:$0xff]
        %v2901 = vld [vmem:[%s5] sm:$0x1]
        %v2903 = vlaneseq
        %v2904 = vshrl.u32 %v2903, 7
        %v2905 = vsub.s32 0, %v2904
        %v2906 = vrot.slane %v2901, %v2905
        %v2940 = vunpack.c.l.b16 %v2845
        %v2941 = vunpack.c.h.b16 %v2845
        %v2942 = vunpack.c.l.b16 %v2846
        %v2943 = vunpack.c.l.b16 %v2847
        %v2944 = vunpack.c.h.b16 %v2847
        %v2945 = vunpack.c.l.b16 %v2848
        %v2946 = vunpack.c.l.b16 %v2849
        %v2947 = vunpack.c.h.b16 %v2849
        %v2948 = vunpack.c.l.b16 %v2850
        %v2949 = vunpack.c.l.b16 %v2851
        %v2950 = vunpack.c.h.b16 %v2851
        %v2951 = vunpack.c.l.b16 %v2852
        %v2952 = vunpack.c.l.b16 %v2853
        %v2953 = vunpack.c.h.b16 %v2853
        %v2954 = vunpack.c.l.b16 %v2854
        %v2955 = vunpack.c.l.b16 %v2855
        %v2956 = vunpack.c.h.b16 %v2855
        %v2957 = vunpack.c.l.b16 %v2856
        %v2958 = vunpack.c.l.b16 %v2857
        %v2959 = vunpack.c.h.b16 %v2857
        %v2960 = vunpack.c.l.b16 %v2858
        %v2961 = vunpack.c.l.b16 %v2859
        %v2962 = vunpack.c.h.b16 %v2859
        %v2963 = vunpack.c.l.b16 %v2860
        %v2964 = vunpack.c.l.b16 %v2861
        %v2965 = vunpack.c.h.b16 %v2861
        %v2966 = vunpack.c.l.b16 %v2862
        %v2967 = vunpack.c.l.b16 %v2863
        %v2968 = vunpack.c.h.b16 %v2863
        %v2969 = vunpack.c.l.b16 %v2864
        %v2970 = vunpack.c.l.b16 %v2865
        %v2971 = vunpack.c.h.b16 %v2865
        %v2972 = vunpack.c.l.b16 %v2866
        %v2973 = vunpack.c.l.b16 %v2867
        %v2974 = vunpack.c.h.b16 %v2867
        %v2975 = vunpack.c.l.b16 %v2868
        %v2976 = vunpack.c.l.b16 %v2869
        %v2977 = vunpack.c.h.b16 %v2869
        %v2978 = vunpack.c.l.b16 %v2870
        %v2979 = vunpack.c.l.b16 %v2871
        %v2980 = vunpack.c.h.b16 %v2871
        %v2981 = vunpack.c.l.b16 %v2872
        %v2982 = vunpack.c.l.b16 %v2873
        %v2983 = vunpack.c.h.b16 %v2873
        %v2984 = vunpack.c.l.b16 %v2874
        %v2985 = vunpack.c.l.b16 %v2875
        %v2986 = vunpack.c.h.b16 %v2875
        %v2987 = vunpack.c.l.b16 %v2876
        %v2988 = vpack.c.b16 %v2943, %v2940
        %v2989 = vpack.c.b16 %v2944, %v2941
        %v2990 = vpack.c.b16 %v2945, %v2942
        %v2991 = vpack.c.b16 %v2949, %v2946
        %v2992 = vpack.c.b16 %v2950, %v2947
        %v2993 = vpack.c.b16 %v2951, %v2948
        %v2994 = vpack.c.b16 %v2955, %v2952
        %v2995 = vpack.c.b16 %v2956, %v2953
        %v2996 = vpack.c.b16 %v2957, %v2954
        %v2997 = vpack.c.b16 %v2961, %v2958
        %v2998 = vpack.c.b16 %v2962, %v2959
        %v2999 = vpack.c.b16 %v2963, %v2960
        %v3000 = vpack.c.b16 %v2967, %v2964
        %v3001 = vpack.c.b16 %v2968, %v2965
        %v3002 = vpack.c.b16 %v2969, %v2966
        %v3003 = vpack.c.b16 %v2973, %v2970
        %v3004 = vpack.c.b16 %v2974, %v2971
        %v3005 = vpack.c.b16 %v2975, %v2972
        %v3006 = vpack.c.b16 %v2979, %v2976
        %v3007 = vpack.c.b16 %v2980, %v2977
        %v3008 = vpack.c.b16 %v2981, %v2978
        %v3009 = vpack.c.b16 %v2985, %v2982
        %v3010 = vpack.c.b16 %v2986, %v2983
        %v3011 = vpack.c.b16 %v2987, %v2984
        %3036 = vmatprep.subr.bf16.mxu0 0
        %3037 = vmatpush1.bf16.msra.mxu0 %v2877
        %3038 = vmatprep.subr.bf16.mxu0 0
        %3039 = vmatpush1.bf16.msra.mxu0 %v2878
        %3040 = vmatprep.subr.bf16.mxu0 0
        %3041 = vmatpush1.bf16.msra.mxu0 %v2879
        %3042 = vmatprep.subr.bf16.mxu0 0
        %3043 = vmatpush1.bf16.msra.mxu0 %v2880
        %3044 = vmatprep.subr.bf16.mxu0 0
        %3045 = vmatpush1.bf16.msra.mxu0 %v2881
        %3046 = vmatprep.subr.bf16.mxu0 0
        %3047 = vmatpush1.bf16.msra.mxu0 %v2882
        %3048 = vmatprep.subr.bf16.mxu0 0
        %3049 = vmatpush1.bf16.msra.mxu0 %v2883
        %3050 = vmatprep.subr.bf16.mxu0 0
        %3051 = vmatpush1.bf16.msra.mxu0 %v2884
        %3052 = vmatprep.subr.bf16.mxu0 0
        %3053 = vmatpush1.bf16.msra.mxu0 %v2885
        %3054 = vmatprep.subr.bf16.mxu0 0
        %3055 = vmatpush1.bf16.msra.mxu0 %v2886
        %3056 = vmatprep.subr.bf16.mxu0 0
        %3057 = vmatpush1.bf16.msra.mxu0 %v2887
        %3058 = vmatprep.subr.bf16.mxu0 0
        %3059 = vmatpush1.bf16.msra.mxu0 %v2888
        %3060 = vmatprep.subr.bf16.mxu0 0
        %3061 = vmatpush1.bf16.msra.mxu0 %v2889
        %3062 = vmatprep.subr.bf16.mxu0 0
        %3063 = vmatpush1.bf16.msra.mxu0 %v2890
        %3064 = vmatprep.subr.bf16.mxu0 0
        %3065 = vmatpush1.bf16.msra.mxu0 %v2891
        %3066 = vmatprep.subr.bf16.mxu0 0
        %3067 = vmatpush1.bf16.msra.mxu0 %v2892
        %3068 = vmatprep.mubr.bf16.mxu0 %v2989
        %3069 = vmatmul.mubr.bf16.gmra.mrb[0].mxu0 %v2988
        %v3070 = vpop.f32.mrb[0].mxu0
        %v3071 = vadd.f32 %v2906, %v3070
        %v3072 = vpop.f32.mrb[0].mxu0
        %v3073 = vpop.f32.mrb[0].mxu0
        %v3074 = vadd.f32 %v2906, %v3073
        %v3075 = vpop.f32.mrb[0].mxu0
        %3076 = vmatprep.mubr.bf16.mxu0 %v2992
        %3077 = vmatmul.mubr.bf16.gmra.mrb[0].mxu0 %v2991
        %v3078 = vpop.f32.mrb[0].mxu0
        %v3079 = vadd.f32 %v2906, %v3078
        %v3080 = vpop.f32.mrb[0].mxu0
        %v3081 = vpop.f32.mrb[0].mxu0
        %v3082 = vadd.f32 %v2906, %v3081
        %v3083 = vpop.f32.mrb[0].mxu0
        %3084 = vmatprep.mubr.bf16.mxu0 %v2995
        %3085 = vmatmul.mubr.bf16.gmra.mrb[0].mxu0 %v2994
        %v3086 = vpop.f32.mrb[0].mxu0
        %v3087 = vadd.f32 %v2906, %v3086
        %v3088 = vpop.f32.mrb[0].mxu0
        %v3089 = vpop.f32.mrb[0].mxu0
        %v3090 = vadd.f32 %v2906, %v3089
        %v3091 = vpop.f32.mrb[0].mxu0
        %3092 = vmatprep.mubr.bf16.mxu0 %v2998
        %3093 = vmatmul.mubr.bf16.gmra.mrb[0].mxu0 %v2997
        %v3094 = vpop.f32.mrb[0].mxu0
        %v3095 = vadd.f32 %v2906, %v3094
        %v3096 = vpop.f32.mrb[0].mxu0
        %v3097 = vpop.f32.mrb[0].mxu0
        %v3098 = vadd.f32 %v2906, %v3097
        %v3099 = vpop.f32.mrb[0].mxu0
        %3100 = vmatprep.mubr.bf16.mxu0 %v3001
        %3101 = vmatmul.mubr.bf16.gmra.mrb[0].mxu0 %v3000
        %v3102 = vpop.f32.mrb[0].mxu0
        %v3103 = vadd.f32 %v2906, %v3102
        %v3104 = vpop.f32.mrb[0].mxu0
        %v3105 = vpop.f32.mrb[0].mxu0
        %v3106 = vadd.f32 %v2906, %v3105
        %v3107 = vpop.f32.mrb[0].mxu0
        %3108 = vmatprep.mubr.bf16.mxu0 %v3004
        %3109 = vmatmul.mubr.bf16.gmra.mrb[0].mxu0 %v3003
        %v3110 = vpop.f32.mrb[0].mxu0
        %v3111 = vadd.f32 %v2906, %v3110
        %v3112 = vpop.f32.mrb[0].mxu0
        %v3113 = vpop.f32.mrb[0].mxu0
        %v3114 = vadd.f32 %v2906, %v3113
        %v3115 = vpop.f32.mrb[0].mxu0
        %3116 = vmatprep.mubr.bf16.mxu0 %v3007
        %3117 = vmatmul.mubr.bf16.gmra.mrb[0].mxu0 %v3006
        %v3118 = vpop.f32.mrb[0].mxu0
        %v3119 = vadd.f32 %v2906, %v3118
        %v3120 = vpop.f32.mrb[0].mxu0
        %v3121 = vpop.f32.mrb[0].mxu0
        %v3122 = vadd.f32 %v2906, %v3121
        %v3123 = vpop.f32.mrb[0].mxu0
        %3124 = vmatprep.mubr.bf16.mxu0 %v3010
        %3125 = vmatmul.mubr.bf16.gmra.mrb[0].mxu0 %v3009
        %v3126 = vpop.f32.mrb[0].mxu0
        %v3127 = vadd.f32 %v2906, %v3126
        %v3128 = vpop.f32.mrb[0].mxu0
        %v3129 = vpop.f32.mrb[0].mxu0
        %v3130 = vadd.f32 %v2906, %v3129
        %v3131 = vpop.f32.mrb[0].mxu0
        %3132 = vdwg.mxu0
        %3133 = vmatprep.subr.bf16.mxu0 0
        %3134 = vmatpush1.bf16.msra.mxu0 %v2893
        %3135 = vmatprep.subr.bf16.mxu0 0
        %3136 = vmatpush1.bf16.msra.mxu0 %v2894
        %3137 = vmatprep.subr.bf16.mxu0 0
        %3138 = vmatpush1.bf16.msra.mxu0 %v2895
        %3139 = vmatprep.subr.bf16.mxu0 0
        %3140 = vmatpush1.bf16.msra.mxu0 %v2896
        %3141 = vmatprep.subr.bf16.mxu0 0
        %3142 = vmatpush1.bf16.msra.mxu0 %v2897
        %3143 = vmatprep.subr.bf16.mxu0 0
        %3144 = vmatpush1.bf16.msra.mxu0 %v2898
        %3145 = vmatprep.subr.bf16.mxu0 0
        %3146 = vmatpush1.bf16.msra.mxu0 %v2899
        %3147 = vmatprep.subr.bf16.mxu0 0
        %3148 = vmatpush1.bf16.msra.mxu0 %v2900
        %3149 = vmatprep.subr.bf16.mxu0 0
        %3150 = vmatpush1.bf16.msra.mxu0 0
        %3151 = vmatprep.subr.bf16.mxu0 0
        %3152 = vmatpush1.bf16.msra.mxu0 0
        %3153 = vmatprep.subr.bf16.mxu0 0
        %3154 = vmatpush1.bf16.msra.mxu0 0
        %3155 = vmatprep.subr.bf16.mxu0 0
        %3156 = vmatpush1.bf16.msra.mxu0 0
        %3157 = vmatprep.subr.bf16.mxu0 0
        %3158 = vmatpush1.bf16.msra.mxu0 0
        %3159 = vmatprep.subr.bf16.mxu0 0
        %3160 = vmatpush1.bf16.msra.mxu0 0
        %3161 = vmatprep.subr.bf16.mxu0 0
        %3162 = vmatpush1.bf16.msra.mxu0 0
        %3163 = vmatprep.subr.bf16.mxu0 0
        %3164 = vmatpush1.bf16.msra.mxu0 0
        %3165 = vmatprep.mubr.bf16.mxu0 0
        %3166 = vmatmul.mubr.bf16.gmra.mrb[0].mxu0 %v2990
        %v3167 = vpop.f32.mrb[0].mxu0
        %v3168 = vadd.f32 %v3071, %v3167
        %v3169 = vpop.f32.mrb[0].mxu0
        %v3170 = vpop.f32.mrb[0].mxu0
        %v3171 = vadd.f32 %v3074, %v3170
        %v3172 = vpop.f32.mrb[0].mxu0
        %3173 = vmatprep.mubr.bf16.mxu0 0
        %3174 = vmatmul.mubr.bf16.gmra.mrb[0].mxu0 %v2993
        %v3175 = vpop.f32.mrb[0].mxu0
        %v3176 = vadd.f32 %v3079, %v3175
        %v3177 = vpop.f32.mrb[0].mxu0
        %v3178 = vpop.f32.mrb[0].mxu0
        %v3179 = vadd.f32 %v3082, %v3178
        %v3180 = vpop.f32.mrb[0].mxu0
        %3181 = vmatprep.mubr.bf16.mxu0 0
        %3182 = vmatmul.mubr.bf16.gmra.mrb[0].mxu0 %v2996
        %v3183 = vpop.f32.mrb[0].mxu0
        %v3184 = vadd.f32 %v3087, %v3183
        %v3185 = vpop.f32.mrb[0].mxu0
        %v3186 = vpop.f32.mrb[0].mxu0
        %v3187 = vadd.f32 %v3090, %v3186
        %v3188 = vpop.f32.mrb[0].mxu0
        %3189 = vmatprep.mubr.bf16.mxu0 0
        %3190 = vmatmul.mubr.bf16.gmra.mrb[0].mxu0 %v2999
        %v3191 = vpop.f32.mrb[0].mxu0
        %v3192 = vadd.f32 %v3095, %v3191
        %v3193 = vpop.f32.mrb[0].mxu0
        %v3194 = vpop.f32.mrb[0].mxu0
        %v3195 = vadd.f32 %v3098, %v3194
        %v3196 = vpop.f32.mrb[0].mxu0
        %3197 = vmatprep.mubr.bf16.mxu0 0
        %3198 = vmatmul.mubr.bf16.gmra.mrb[0].mxu0 %v3002
        %v3199 = vpop.f32.mrb[0].mxu0
        %v3200 = vadd.f32 %v3103, %v3199
        %v3201 = vpop.f32.mrb[0].mxu0
        %v3202 = vpop.f32.mrb[0].mxu0
        %v3203 = vadd.f32 %v3106, %v3202
        %v3204 = vpop.f32.mrb[0].mxu0
        %3205 = vmatprep.mubr.bf16.mxu0 0
        %3206 = vmatmul.mubr.bf16.gmra.mrb[0].mxu0 %v3005
        %v3207 = vpop.f32.mrb[0].mxu0
        %v3208 = vadd.f32 %v3111, %v3207
        %v3209 = vpop.f32.mrb[0].mxu0
        %v3210 = vpop.f32.mrb[0].mxu0
        %v3211 = vadd.f32 %v3114, %v3210
        %v3212 = vpop.f32.mrb[0].mxu0
        %3213 = vmatprep.mubr.bf16.mxu0 0
        %3214 = vmatmul.mubr.bf16.gmra.mrb[0].mxu0 %v3008
        %v3215 = vpop.f32.mrb[0].mxu0
        %v3216 = vadd.f32 %v3119, %v3215
        %v3217 = vpop.f32.mrb[0].mxu0
        %v3218 = vpop.f32.mrb[0].mxu0
        %v3219 = vadd.f32 %v3122, %v3218
        %v3220 = vpop.f32.mrb[0].mxu0
        %3221 = vmatprep.mubr.bf16.mxu0 0
        %3222 = vmatmul.mubr.bf16.gmra.mrb[0].mxu0 %v3011
        %v3223 = vpop.f32.mrb[0].mxu0
        %v3224 = vadd.f32 %v3127, %v3223
        %v3225 = vpop.f32.mrb[0].mxu0
        %v3226 = vpop.f32.mrb[0].mxu0
        %v3227 = vadd.f32 %v3130, %v3226
        %v3228 = vpop.f32.mrb[0].mxu0
        %3229 = vdwg.mxu0
        %3230 = vst [vmem:[%s288] sm:$0xff] %v3168
        %3231 = vst [vmem:[%s288 + $0x8] sm:$0xff] %v3171
        %3232 = vst [vmem:[%s288 + $0x10] sm:$0xff] %v3176
        %3233 = vst [vmem:[%s288 + $0x18] sm:$0xff] %v3179
        %3234 = vst [vmem:[%s288 + $0x20] sm:$0xff] %v3184
        %3235 = vst [vmem:[%s288 + $0x28] sm:$0xff] %v3187
        %3236 = vst [vmem:[%s288 + $0x30] sm:$0xff] %v3192
        %3237 = vst [vmem:[%s288 + $0x38] sm:$0xff] %v3195
        %3238 = vst [vmem:[%s288 + $0x40] sm:$0xff] %v3200
        %3239 = vst [vmem:[%s288 + $0x48] sm:$0xff] %v3203
        %3240 = vst [vmem:[%s288 + $0x50] sm:$0xff] %v3208
        %3241 = vst [vmem:[%s288 + $0x58] sm:$0xff] %v3211
        %3242 = vst [vmem:[%s288 + $0x60] sm:$0xff] %v3216
        %3243 = vst [vmem:[%s288 + $0x68] sm:$0xff] %v3219
        %3244 = vst [vmem:[%s288 + $0x70] sm:$0xff] %v3224
        %3245 = vst [vmem:[%s288 + $0x78] sm:$0xff] %v3227
        %s3246 = sand.u32 %s157, 1
        %s3247 = scalar_lea.sflag [#allocation6], %s3246
        %s3248 = sand.u32 %s157, 1
        %s3249 = smul.addr %s3248, 128
        %s3250 = scalar_lea.vmem [#allocation12], %s3249
        // Predicated region
        $region65: #{tpu_custom_call.1} parent=43 // pred_check
          %p3251 = pneg %p167
        $region66: #{tpu_custom_call.1} parent=43 // pred_check_branch
          %3253 = sbr.rel (%p3251) target = $region68
        $region67: #{tpu_custom_call.1} parent=43 // pred_region
          %s3254 = smul.u32 16, %s23
          %s3256 = ssub.s32 2048, 2048
          %3257 = vsyncadd %s3247, %s3256
          %s3258 = smul.addr %s3254, 128
          %s3259 = scalar_lea.hbm %s6, %s3258
          %s3260 = sshll.u32 %s3250, 4
          %s3261 = int_to_ptr.vmem [resolvable:$true] %s3260
          %3266 = dma.vmem_to_hbm [thread:$0]  %s3261, 2048, %s3259, %s3247, 128, 128, 8
        $region68: #{tpu_custom_call.1} parent=43 // pred_fallthru
          _
      $region44: #{tpu_custom_call.1} parent=5 // pred_fallthru
        _
      %p3267 = scmp.le.s32.totalorder 2, %s18
      // Predicated region
      $region69: #{tpu_custom_call.1} parent=5 // pred_check
        %p3268 = pneg %p3267
      $region70: #{tpu_custom_call.1} parent=5 // pred_check_branch
        %3270 = sbr.rel (%p3268) target = $region72
      $region71: #{tpu_custom_call.1} parent=5 // pred_region
        %s3271 = ssub.s32 %s18, 2
        // Predicated region
        $region73: #{tpu_custom_call.1} parent=71 // pred_check
          %p3272 = pneg %p173
        $region74: #{tpu_custom_call.1} parent=71 // pred_check_branch
          %3274 = sbr.rel (%p3272) target = $region76
        $region75: #{tpu_custom_call.1} parent=71 // pred_region
          %s3275 = sand.u32 %s158, 1
          %s3276 = scalar_lea.sflag [#allocation6], %s3275
          %s3277 = sand.u32 %s158, 1
          %s3278 = smul.addr %s3277, 128
          %s3279 = scalar_lea.vmem [#allocation12], %s3278
          %3280 = dma.done %s3276, 2048
        $region76: #{tpu_custom_call.1} parent=71 // pred_fallthru
          _
      $region72: #{tpu_custom_call.1} parent=5 // pred_fallthru
        _
    $region6: #{tpu_custom_call.1} parent=1 // loop_footer
      %s22 = sadd.s32 1, %s18
    $region7: #{tpu_custom_call.1} parent=1 // loop_footer_branch
      %17 = sbr.rel target = $region3
    $region8: #{tpu_custom_call.1} parent=1 // loop_exit
      _
    %3281 = vsyncpa [#allocation5], 1
    %s3282 = scalar_lea.sflag [#allocation5], 1
    %3283 = vsyncpa %s3282, 1
    %3284 = vsyncpa [#allocation8], 1
    %3285 = vsyncpa [#allocation11], 1
    %3286 = vsyncpa [#allocation6], 1
    %s3287 = scalar_lea.sflag [#allocation6], 1
    %3288 = vsyncpa %s3287, 1

</llo_original>
